<compile_context>
chip_gen: v6e
topology: v6e:2x2x1
jax: 0.10.0
libtpu: 0.0.40
codegen_flags: <defaults>
</compile_context>

<pallas_src>
from functools import partial

import jax
import jax.numpy as jnp
from jax.experimental import pallas as pl
from jax.experimental.pallas import tpu as pltpu

HIDDEN = 512      # nn.Linear(input_dim,512), (512,512), (512,512), (512,output_dim)
LANE = 128        # TPU lane width — feature dims padded to a multiple of this
SUBLANE = 8       # f32 sublane width — batch tile is a multiple of this
MAX_TILE_B = 256  # fills the MXU M dimension, well within per-step VMEM budgets


def _round_up(x, m):
    return (x + m - 1) // m * m


def _mlp_kernel(x_ref, w1_ref, b1_ref, w2_ref, b2_ref, w3_ref, b3_ref,
                w4_ref, b4_ref, o_ref):
    """One batch tile of Linear->ReLU, Linear->ReLU, Linear->ReLU, Linear.

    Weights arrive as bf16; activations are cast to bf16 only right before
    each MXU dot; every dot accumulates in f32. Bias-add / ReLU run in f32.
    """
    bf16 = jnp.bfloat16

    h = jnp.dot(x_ref[...].astype(bf16), w1_ref[...],
                preferred_element_type=jnp.float32)
    h = jnp.maximum(h + b1_ref[...], 0.0)

    h = jnp.dot(h.astype(bf16), w2_ref[...],
                preferred_element_type=jnp.float32)
    h = jnp.maximum(h + b2_ref[...], 0.0)

    h = jnp.dot(h.astype(bf16), w3_ref[...],
                preferred_element_type=jnp.float32)
    h = jnp.maximum(h + b3_ref[...], 0.0)

    h = jnp.dot(h.astype(bf16), w4_ref[...],
                preferred_element_type=jnp.float32) + b4_ref[...]

    o_ref[...] = h.astype(o_ref.dtype)


@partial(jax.jit, static_argnums=(2, 3, 4, 5, 6))
def _generator_forward_impl(z, params, tile_b, B_pad, in_dim_p, out_dim_p,
                            single_buffer_weights):
    (w1, b1), (w2, b2), (w3, b3), (w4, b4) = params
    B, in_dim = z.shape
    out_dim = w4.shape[1]
    grid = (B_pad // tile_b,)

    # ---- one-time parameter / input prep (zero-pad to lane-dense, cast) ----
    zp = jnp.pad(z.astype(jnp.float32),
                 ((0, B_pad - B), (0, in_dim_p - in_dim)))
    w1p = jnp.pad(w1, ((0, in_dim_p - in_dim), (0, 0))).astype(jnp.bfloat16)
    w2b = w2.astype(jnp.bfloat16)
    w3b = w3.astype(jnp.bfloat16)
    w4p = jnp.pad(w4, ((0, 0), (0, out_dim_p - out_dim))).astype(jnp.bfloat16)
    b1r = b1.reshape(1, -1).astype(jnp.float32)
    b2r = b2.reshape(1, -1).astype(jnp.float32)
    b3r = b3.reshape(1, -1).astype(jnp.float32)
    b4r = jnp.pad(b4, (0, out_dim_p - out_dim)).reshape(1, -1).astype(jnp.float32)
    # TODO(synk): optional int8 (v5e/v6e) / fp8 (v7x) quantization of the two
    # 512x512 layers skipped to stay within the bf16 accuracy budget.

    weight_mode = pl.Buffered(1) if single_buffer_weights else None

    def wspec(arr):  # grid-invariant weight/bias block (same tile every step)
        return pl.BlockSpec(arr.shape, lambda i: (0, 0),
                            pipeline_mode=weight_mode)

    out = pl.pallas_call(
        _mlp_kernel,
        out_shape=jax.ShapeDtypeStruct((B_pad, out_dim_p), jnp.float32),
        grid_spec=pltpu.PrefetchScalarGridSpec(
            num_scalar_prefetch=0,
            grid=grid,
            in_specs=[
                pl.BlockSpec((tile_b, in_dim_p), lambda i: (i, 0)),  # x tile
                wspec(w1p), wspec(b1r),
                wspec(w2b), wspec(b2r),
                wspec(w3b), wspec(b3r),
                wspec(w4p), wspec(b4r),
            ],
            out_specs=pl.BlockSpec((tile_b, out_dim_p), lambda i: (i, 0)),
        ),
        compiler_params=pltpu.CompilerParams(
            dimension_semantics=("parallel",),
            vmem_limit_bytes=32 * 1024 * 1024,
        ),
    )(zp, w1p, b1r, w2b, b2r, w3b, b3r, w4p, b4r)

    return out[:B, :out_dim]


def generator_forward(z, params, *, tile_b=None):
    """Forward pass of Generator. z: (B, input_dim) -> (B, output_dim) float32."""
    B, in_dim = z.shape
    out_dim = params[3][0].shape[1]

    in_dim_p = _round_up(in_dim, LANE)
    out_dim_p = _round_up(out_dim, LANE)

    if tile_b is None:
        tile_b = min(MAX_TILE_B, _round_up(B, SUBLANE))
    tile_b = max(SUBLANE, _round_up(int(tile_b), SUBLANE))
    B_pad = _round_up(B, tile_b)

    try:
        # Weights never change across grid steps: a single VMEM buffer suffices.
        return _generator_forward_impl(z, params, tile_b, B_pad,
                                       in_dim_p, out_dim_p, True)
    except Exception:
        # Fallback: default double-buffering (weights are only ~1.3 MB in bf16).
        return _generator_forward_impl(z, params, tile_b, B_pad,
                                       in_dim_p, out_dim_p, False)


def init_generator_params(key, input_dim, output_dim):
    """Deterministic PyTorch-default-style init: U(-1/sqrt(fan_in), 1/sqrt(fan_in)).

    Weights are stored (in_features, out_features) so y = x @ W + b (same math
    as nn.Linear, just pre-transposed).
    """
    dims = [(input_dim, HIDDEN), (HIDDEN, HIDDEN), (HIDDEN, HIDDEN),
            (HIDDEN, output_dim)]
    params = []
    for (fan_in, fan_out) in dims:
        key, kw, kb = jax.random.split(key, 3)
        bound = 1.0 / (fan_in ** 0.5)
        w = jax.random.uniform(kw, (fan_in, fan_out), jnp.float32, -bound, bound)
        b = jax.random.uniform(kb, (fan_out,), jnp.float32, -bound, bound)
        params.append((w, b))
    return tuple(params)


def generator_ref(z, params, weight_dtype=jnp.float32):
    """Pure-JAX reference. weight_dtype=bfloat16 mirrors the kernel's MXU inputs."""
    def lin(x, w, b):
        return jnp.dot(x.astype(weight_dtype), w.astype(weight_dtype),
                       preferred_element_type=jnp.float32) + b
    (w1, b1), (w2, b2), (w3, b3), (w4, b4) = params
    h = jnp.maximum(lin(z, w1, b1), 0.0)
    h = jnp.maximum(lin(h, w2, b2), 0.0)
    h = jnp.maximum(lin(h, w3, b3), 0.0)
    return lin(h, w4, b4)


if __name__ == "__main__":
    key = jax.random.PRNGKey(0)
    B, input_dim, output_dim = 8, 32, 32
    kz, kp = jax.random.split(key)
    z = jax.random.normal(kz, (B, input_dim), jnp.float32)
    params = init_generator_params(kp, input_dim, output_dim)

    out = generator_forward(z, params)
    out = jax.block_until_ready(out)
    assert out.shape == (B, output_dim)

    # Reference that mirrors the kernel's numerics (bf16 MXU inputs, f32 accumulate).
    ref_bf16 = generator_ref(z, params, weight_dtype=jnp.bfloat16)
    # Original full-f32 reference: looser tolerance because MXU inputs are bf16.
    ref_f32 = generator_ref(z, params, weight_dtype=jnp.float32)

    assert jnp.allclose(out, ref_bf16, atol=1e-2, rtol=1e-2), "mismatch vs bf16 reference"
    assert jnp.allclose(out, ref_f32, atol=5e-2, rtol=5e-2), "mismatch vs f32 reference"
    print("KERNEL_OK")
</pallas_src>

<mosaic_0001>
module attributes {stable_mosaic.version = 11 : i64} {
  func.func @_mlp_kernel(%arg0: i32, %arg1: memref<8x128xf32, #tpu.memory_space<vmem>>, %arg2: memref<128x512xbf16, #tpu.memory_space<vmem>>, %arg3: memref<1x512xf32, #tpu.memory_space<vmem>>, %arg4: memref<512x512xbf16, #tpu.memory_space<vmem>>, %arg5: memref<1x512xf32, #tpu.memory_space<vmem>>, %arg6: memref<512x512xbf16, #tpu.memory_space<vmem>>, %arg7: memref<1x512xf32, #tpu.memory_space<vmem>>, %arg8: memref<512x128xbf16, #tpu.memory_space<vmem>>, %arg9: memref<1x128xf32, #tpu.memory_space<vmem>>, %arg10: memref<8x128xf32, #tpu.memory_space<vmem>>) attributes {dimension_semantics = [#tpu.dimension_semantics<parallel>], iteration_bounds = array<i64: 1>, scalar_prefetch = 0 : i64, scratch_operands = 0 : i64, tpu.core_type = #tpu.core_type<tc>, window_params = [{transform_indices = @transform_0, window_bounds = array<i64: 8, 128>}, {pipeline_mode = #tpu.pipeline_mode<synchronous>, transform_indices = @transform_1, window_bounds = array<i64: 128, 512>}, {pipeline_mode = #tpu.pipeline_mode<synchronous>, transform_indices = @transform_2, window_bounds = array<i64: 1, 512>}, {pipeline_mode = #tpu.pipeline_mode<synchronous>, transform_indices = @transform_3, window_bounds = array<i64: 512, 512>}, {pipeline_mode = #tpu.pipeline_mode<synchronous>, transform_indices = @transform_4, window_bounds = array<i64: 1, 512>}, {pipeline_mode = #tpu.pipeline_mode<synchronous>, transform_indices = @transform_5, window_bounds = array<i64: 512, 512>}, {pipeline_mode = #tpu.pipeline_mode<synchronous>, transform_indices = @transform_6, window_bounds = array<i64: 1, 512>}, {pipeline_mode = #tpu.pipeline_mode<synchronous>, transform_indices = @transform_7, window_bounds = array<i64: 512, 128>}, {pipeline_mode = #tpu.pipeline_mode<synchronous>, transform_indices = @transform_8, window_bounds = array<i64: 1, 128>}, {transform_indices = @transform_9, window_bounds = array<i64: 8, 128>}]} {
    %c0 = arith.constant 0 : index
    %c0_0 = arith.constant 0 : index
    %0 = vector.load %arg1[%c0, %c0_0] : memref<8x128xf32, #tpu.memory_space<vmem>>, vector<8x128xf32>
    %1 = arith.truncf %0 : vector<8x128xf32> to vector<8x128xbf16>
    %c0_1 = arith.constant 0 : index
    %c0_2 = arith.constant 0 : index
    %2 = vector.load %arg2[%c0_1, %c0_2] : memref<128x512xbf16, #tpu.memory_space<vmem>>, vector<128x512xbf16>
    %cst = arith.constant dense<0.000000e+00> : vector<8x512xf32>
    %3 = tpu.matmul %1, %2, %cst {dimension_numbers = #tpu.dot_dimension_numbers<[1], [0], [0], [1], [0, 0, 1, 1], [], []>} : vector<8x128xbf16>, vector<128x512xbf16>, vector<8x512xf32> -> vector<8x512xf32>
    %c0_3 = arith.constant 0 : index
    %c0_4 = arith.constant 0 : index
    %4 = vector.load %arg3[%c0_3, %c0_4] : memref<1x512xf32, #tpu.memory_space<vmem>>, vector<1x512xf32>
    %5 = vector.broadcast %4 : vector<1x512xf32> to vector<8x512xf32>
    %6 = arith.addf %3, %5 : vector<8x512xf32>
    %cst_5 = arith.constant 0.000000e+00 : f32
    %7 = vector.broadcast %cst_5 : f32 to vector<8x512xf32>
    %8 = arith.maximumf %6, %7 : vector<8x512xf32>
    %9 = arith.truncf %8 : vector<8x512xf32> to vector<8x512xbf16>
    %c0_6 = arith.constant 0 : index
    %c0_7 = arith.constant 0 : index
    %10 = vector.load %arg4[%c0_6, %c0_7] : memref<512x512xbf16, #tpu.memory_space<vmem>>, vector<512x512xbf16>
    %cst_8 = arith.constant dense<0.000000e+00> : vector<8x512xf32>
    %11 = tpu.matmul %9, %10, %cst_8 {dimension_numbers = #tpu.dot_dimension_numbers<[1], [0], [0], [1], [0, 0, 1, 1], [], []>} : vector<8x512xbf16>, vector<512x512xbf16>, vector<8x512xf32> -> vector<8x512xf32>
    %c0_9 = arith.constant 0 : index
    %c0_10 = arith.constant 0 : index
    %12 = vector.load %arg5[%c0_9, %c0_10] : memref<1x512xf32, #tpu.memory_space<vmem>>, vector<1x512xf32>
    %13 = vector.broadcast %12 : vector<1x512xf32> to vector<8x512xf32>
    %14 = arith.addf %11, %13 : vector<8x512xf32>
    %cst_11 = arith.constant 0.000000e+00 : f32
    %15 = vector.broadcast %cst_11 : f32 to vector<8x512xf32>
    %16 = arith.maximumf %14, %15 : vector<8x512xf32>
    %17 = arith.truncf %16 : vector<8x512xf32> to vector<8x512xbf16>
    %c0_12 = arith.constant 0 : index
    %c0_13 = arith.constant 0 : index
    %18 = vector.load %arg6[%c0_12, %c0_13] : memref<512x512xbf16, #tpu.memory_space<vmem>>, vector<512x512xbf16>
    %cst_14 = arith.constant dense<0.000000e+00> : vector<8x512xf32>
    %19 = tpu.matmul %17, %18, %cst_14 {dimension_numbers = #tpu.dot_dimension_numbers<[1], [0], [0], [1], [0, 0, 1, 1], [], []>} : vector<8x512xbf16>, vector<512x512xbf16>, vector<8x512xf32> -> vector<8x512xf32>
    %c0_15 = arith.constant 0 : index
    %c0_16 = arith.constant 0 : index
    %20 = vector.load %arg7[%c0_15, %c0_16] : memref<1x512xf32, #tpu.memory_space<vmem>>, vector<1x512xf32>
    %21 = vector.broadcast %20 : vector<1x512xf32> to vector<8x512xf32>
    %22 = arith.addf %19, %21 : vector<8x512xf32>
    %cst_17 = arith.constant 0.000000e+00 : f32
    %23 = vector.broadcast %cst_17 : f32 to vector<8x512xf32>
    %24 = arith.maximumf %22, %23 : vector<8x512xf32>
    %25 = arith.truncf %24 : vector<8x512xf32> to vector<8x512xbf16>
    %c0_18 = arith.constant 0 : index
    %c0_19 = arith.constant 0 : index
    %26 = vector.load %arg8[%c0_18, %c0_19] : memref<512x128xbf16, #tpu.memory_space<vmem>>, vector<512x128xbf16>
    %cst_20 = arith.constant dense<0.000000e+00> : vector<8x128xf32>
    %27 = tpu.matmul %25, %26, %cst_20 {dimension_numbers = #tpu.dot_dimension_numbers<[1], [0], [0], [1], [0, 0, 1, 1], [], []>} : vector<8x512xbf16>, vector<512x128xbf16>, vector<8x128xf32> -> vector<8x128xf32>
    %c0_21 = arith.constant 0 : index
    %c0_22 = arith.constant 0 : index
    %28 = vector.load %arg9[%c0_21, %c0_22] : memref<1x128xf32, #tpu.memory_space<vmem>>, vector<1x128xf32>
    %29 = vector.broadcast %28 : vector<1x128xf32> to vector<8x128xf32>
    %30 = arith.addf %27, %29 : vector<8x128xf32>
    %c0_23 = arith.constant 0 : index
    %c0_24 = arith.constant 0 : index
    %31 = vector.load %arg10[%c0_23, %c0_24] : memref<8x128xf32, #tpu.memory_space<vmem>>, vector<8x128xf32>
    tpu.vector_store %arg10[%c0_23, %c0_24], %30 {strides = array<i32>} : memref<8x128xf32, #tpu.memory_space<vmem>>, vector<8x128xf32>,
    return
  }
  func.func @transform_0(%arg0: i32) -> (i32, i32) {
    %c0_i32 = arith.constant 0 : i32
    %c0_i32_0 = arith.constant 0 : i32
    return %arg0, %c0_i32 : i32, i32
  }
  func.func @transform_1(%arg0: i32) -> (i32, i32) {
    %c0_i32 = arith.constant 0 : i32
    %c0_i32_0 = arith.constant 0 : i32
    %c0_i32_1 = arith.constant 0 : i32
    return %c0_i32, %c0_i32_0 : i32, i32
  }
  func.func @transform_2(%arg0: i32) -> (i32, i32) {
    %c0_i32 = arith.constant 0 : i32
    %c0_i32_0 = arith.constant 0 : i32
    %c0_i32_1 = arith.constant 0 : i32
    return %c0_i32, %c0_i32_0 : i32, i32
  }
  func.func @transform_3(%arg0: i32) -> (i32, i32) {
    %c0_i32 = arith.constant 0 : i32
    %c0_i32_0 = arith.constant 0 : i32
    %c0_i32_1 = arith.constant 0 : i32
    return %c0_i32, %c0_i32_0 : i32, i32
  }
  func.func @transform_4(%arg0: i32) -> (i32, i32) {
    %c0_i32 = arith.constant 0 : i32
    %c0_i32_0 = arith.constant 0 : i32
    %c0_i32_1 = arith.constant 0 : i32
    return %c0_i32, %c0_i32_0 : i32, i32
  }
  func.func @transform_5(%arg0: i32) -> (i32, i32) {
    %c0_i32 = arith.constant 0 : i32
    %c0_i32_0 = arith.constant 0 : i32
    %c0_i32_1 = arith.constant 0 : i32
    return %c0_i32, %c0_i32_0 : i32, i32
  }
  func.func @transform_6(%arg0: i32) -> (i32, i32) {
    %c0_i32 = arith.constant 0 : i32
    %c0_i32_0 = arith.constant 0 : i32
    %c0_i32_1 = arith.constant 0 : i32
    return %c0_i32, %c0_i32_0 : i32, i32
  }
  func.func @transform_7(%arg0: i32) -> (i32, i32) {
    %c0_i32 = arith.constant 0 : i32
    %c0_i32_0 = arith.constant 0 : i32
    %c0_i32_1 = arith.constant 0 : i32
    return %c0_i32, %c0_i32_0 : i32, i32
  }
  func.func @transform_8(%arg0: i32) -> (i32, i32) {
    %c0_i32 = arith.constant 0 : i32
    %c0_i32_0 = arith.constant 0 : i32
    %c0_i32_1 = arith.constant 0 : i32
    return %c0_i32, %c0_i32_0 : i32, i32
  }
  func.func @transform_9(%arg0: i32) -> (i32, i32) {
    %c0_i32 = arith.constant 0 : i32
    %c0_i32_0 = arith.constant 0 : i32
    return %arg0, %c0_i32 : i32, i32
  }
}

module attributes {stable_mosaic.version = 11 : i64} {
  func.func @_mlp_kernel(%arg0: i32, %arg1: memref<8x128xf32, #tpu.memory_space<vmem>>, %arg2: memref<128x512xbf16, #tpu.memory_space<vmem>>, %arg3: memref<1x512xf32, #tpu.memory_space<vmem>>, %arg4: memref<512x512xbf16, #tpu.memory_space<vmem>>, %arg5: memref<1x512xf32, #tpu.memory_space<vmem>>, %arg6: memref<512x512xbf16, #tpu.memory_space<vmem>>, %arg7: memref<1x512xf32, #tpu.memory_space<vmem>>, %arg8: memref<512x128xbf16, #tpu.memory_space<vmem>>, %arg9: memref<1x128xf32, #tpu.memory_space<vmem>>, %arg10: memref<8x128xf32, #tpu.memory_space<vmem>>) attributes {dimension_semantics = [#tpu.dimension_semantics<parallel>], iteration_bounds = array<i64: 1>, scalar_prefetch = 0 : i64, scratch_operands = 0 : i64, tpu.core_type = #tpu.core_type<tc>, window_params = [{transform_indices = @transform_0, window_bounds = array<i64: 8, 128>}, {pipeline_mode = #tpu.pipeline_mode<synchronous>, transform_indices = @transform_1, window_bounds = array<i64: 128, 512>}, {pipeline_mode = #tpu.pipeline_mode<synchronous>, transform_indices = @transform_2, window_bounds = array<i64: 1, 512>}, {pipeline_mode = #tpu.pipeline_mode<synchronous>, transform_indices = @transform_3, window_bounds = array<i64: 512, 512>}, {pipeline_mode = #tpu.pipeline_mode<synchronous>, transform_indices = @transform_4, window_bounds = array<i64: 1, 512>}, {pipeline_mode = #tpu.pipeline_mode<synchronous>, transform_indices = @transform_5, window_bounds = array<i64: 512, 512>}, {pipeline_mode = #tpu.pipeline_mode<synchronous>, transform_indices = @transform_6, window_bounds = array<i64: 1, 512>}, {pipeline_mode = #tpu.pipeline_mode<synchronous>, transform_indices = @transform_7, window_bounds = array<i64: 512, 128>}, {pipeline_mode = #tpu.pipeline_mode<synchronous>, transform_indices = @transform_8, window_bounds = array<i64: 1, 128>}, {transform_indices = @transform_9, window_bounds = array<i64: 8, 128>}]} {
    %c0 = arith.constant 0 : index
    %c0_0 = arith.constant 0 : index
    %0 = vector.load %arg1[%c0, %c0_0] : memref<8x128xf32, #tpu.memory_space<vmem>>, vector<8x128xf32>
    %1 = arith.truncf %0 : vector<8x128xf32> to vector<8x128xbf16>
    %c0_1 = arith.constant 0 : index
    %c0_2 = arith.constant 0 : index
    %2 = vector.load %arg2[%c0_1, %c0_2] : memref<128x512xbf16, #tpu.memory_space<vmem>>, vector<128x512xbf16>
    %cst = arith.constant dense<0.000000e+00> : vector<8x512xf32>
    %3 = tpu.matmul %1, %2, %cst {dimension_numbers = #tpu.dot_dimension_numbers<[1], [0], [0], [1], [0, 0, 1, 1], [], []>} : vector<8x128xbf16>, vector<128x512xbf16>, vector<8x512xf32> -> vector<8x512xf32>
    %c0_3 = arith.constant 0 : index
    %c0_4 = arith.constant 0 : index
    %4 = vector.load %arg3[%c0_3, %c0_4] : memref<1x512xf32, #tpu.memory_space<vmem>>, vector<1x512xf32>
    %5 = vector.broadcast %4 : vector<1x512xf32> to vector<8x512xf32>
    %6 = arith.addf %3, %5 : vector<8x512xf32>
    %cst_5 = arith.constant 0.000000e+00 : f32
    %7 = vector.broadcast %cst_5 : f32 to vector<8x512xf32>
    %8 = arith.maximumf %6, %7 : vector<8x512xf32>
    %9 = arith.truncf %8 : vector<8x512xf32> to vector<8x512xbf16>
    %c0_6 = arith.constant 0 : index
    %c0_7 = arith.constant 0 : index
    %10 = vector.load %arg4[%c0_6, %c0_7] : memref<512x512xbf16, #tpu.memory_space<vmem>>, vector<512x512xbf16>
    %cst_8 = arith.constant dense<0.000000e+00> : vector<8x512xf32>
    %11 = tpu.matmul %9, %10, %cst_8 {dimension_numbers = #tpu.dot_dimension_numbers<[1], [0], [0], [1], [0, 0, 1, 1], [], []>} : vector<8x512xbf16>, vector<512x512xbf16>, vector<8x512xf32> -> vector<8x512xf32>
    %c0_9 = arith.constant 0 : index
    %c0_10 = arith.constant 0 : index
    %12 = vector.load %arg5[%c0_9, %c0_10] : memref<1x512xf32, #tpu.memory_space<vmem>>, vector<1x512xf32>
    %13 = vector.broadcast %12 : vector<1x512xf32> to vector<8x512xf32>
    %14 = arith.addf %11, %13 : vector<8x512xf32>
    %cst_11 = arith.constant 0.000000e+00 : f32
    %15 = vector.broadcast %cst_11 : f32 to vector<8x512xf32>
    %16 = arith.maximumf %14, %15 : vector<8x512xf32>
    %17 = arith.truncf %16 : vector<8x512xf32> to vector<8x512xbf16>
    %c0_12 = arith.constant 0 : index
    %c0_13 = arith.constant 0 : index
    %18 = vector.load %arg6[%c0_12, %c0_13] : memref<512x512xbf16, #tpu.memory_space<vmem>>, vector<512x512xbf16>
    %cst_14 = arith.constant dense<0.000000e+00> : vector<8x512xf32>
    %19 = tpu.matmul %17, %18, %cst_14 {dimension_numbers = #tpu.dot_dimension_numbers<[1], [0], [0], [1], [0, 0, 1, 1], [], []>} : vector<8x512xbf16>, vector<512x512xbf16>, vector<8x512xf32> -> vector<8x512xf32>
    %c0_15 = arith.constant 0 : index
    %c0_16 = arith.constant 0 : index
    %20 = vector.load %arg7[%c0_15, %c0_16] : memref<1x512xf32, #tpu.memory_space<vmem>>, vector<1x512xf32>
    %21 = vector.broadcast %20 : vector<1x512xf32> to vector<8x512xf32>
    %22 = arith.addf %19, %21 : vector<8x512xf32>
    %cst_17 = arith.constant 0.000000e+00 : f32
    %23 = vector.broadcast %cst_17 : f32 to vector<8x512xf32>
    %24 = arith.maximumf %22, %23 : vector<8x512xf32>
    %25 = arith.truncf %24 : vector<8x512xf32> to vector<8x512xbf16>
    %c0_18 = arith.constant 0 : index
    %c0_19 = arith.constant 0 : index
    %26 = vector.load %arg8[%c0_18, %c0_19] : memref<512x128xbf16, #tpu.memory_space<vmem>>, vector<512x128xbf16>
    %cst_20 = arith.constant dense<0.000000e+00> : vector<8x128xf32>
    %27 = tpu.matmul %25, %26, %cst_20 {dimension_numbers = #tpu.dot_dimension_numbers<[1], [0], [0], [1], [0, 0, 1, 1], [], []>} : vector<8x512xbf16>, vector<512x128xbf16>, vector<8x128xf32> -> vector<8x128xf32>
    %c0_21 = arith.constant 0 : index
    %c0_22 = arith.constant 0 : index
    %28 = vector.load %arg9[%c0_21, %c0_22] : memref<1x128xf32, #tpu.memory_space<vmem>>, vector<1x128xf32>
    %29 = vector.broadcast %28 : vector<1x128xf32> to vector<8x128xf32>
    %30 = arith.addf %27, %29 : vector<8x128xf32>
    %c0_23 = arith.constant 0 : index
    %c0_24 = arith.constant 0 : index
    %31 = vector.load %arg10[%c0_23, %c0_24] : memref<8x128xf32, #tpu.memory_space<vmem>>, vector<8x128xf32>
    tpu.vector_store %arg10[%c0_23, %c0_24], %30 {strides = array<i32>} : memref<8x128xf32, #tpu.memory_space<vmem>>, vector<8x128xf32>,
    return
  }
  func.func @transform_0(%arg0: i32) -> (i32, i32) {
    %c0_i32 = arith.constant 0 : i32
    %c0_i32_0 = arith.constant 0 : i32
    return %arg0, %c0_i32 : i32, i32
  }
  func.func @transform_1(%arg0: i32) -> (i32, i32) {
    %c0_i32 = arith.constant 0 : i32
    %c0_i32_0 = arith.constant 0 : i32
    %c0_i32_1 = arith.constant 0 : i32
    return %c0_i32, %c0_i32_0 : i32, i32
  }
  func.func @transform_2(%arg0: i32) -> (i32, i32) {
    %c0_i32 = arith.constant 0 : i32
    %c0_i32_0 = arith.constant 0 : i32
    %c0_i32_1 = arith.constant 0 : i32
    return %c0_i32, %c0_i32_0 : i32, i32
  }
  func.func @transform_3(%arg0: i32) -> (i32, i32) {
    %c0_i32 = arith.constant 0 : i32
    %c0_i32_0 = arith.constant 0 : i32
    %c0_i32_1 = arith.constant 0 : i32
    return %c0_i32, %c0_i32_0 : i32, i32
  }
  func.func @transform_4(%arg0: i32) -> (i32, i32) {
    %c0_i32 = arith.constant 0 : i32
    %c0_i32_0 = arith.constant 0 : i32
    %c0_i32_1 = arith.constant 0 : i32
    return %c0_i32, %c0_i32_0 : i32, i32
  }
  func.func @transform_5(%arg0: i32) -> (i32, i32) {
    %c0_i32 = arith.constant 0 : i32
    %c0_i32_0 = arith.constant 0 : i32
    %c0_i32_1 = arith.constant 0 : i32
    return %c0_i32, %c0_i32_0 : i32, i32
  }
  func.func @transform_6(%arg0: i32) -> (i32, i32) {
    %c0_i32 = arith.constant 0 : i32
    %c0_i32_0 = arith.constant 0 : i32
    %c0_i32_1 = arith.constant 0 : i32
    return %c0_i32, %c0_i32_0 : i32, i32
  }
  func.func @transform_7(%arg0: i32) -> (i32, i32) {
    %c0_i32 = arith.constant 0 : i32
    %c0_i32_0 = arith.constant 0 : i32
    %c0_i32_1 = arith.constant 0 : i32
    return %c0_i32, %c0_i32_0 : i32, i32
  }
  func.func @transform_8(%arg0: i32) -> (i32, i32) {
    %c0_i32 = arith.constant 0 : i32
    %c0_i32_0 = arith.constant 0 : i32
    %c0_i32_1 = arith.constant 0 : i32
    return %c0_i32, %c0_i32_0 : i32, i32
  }
  func.func @transform_9(%arg0: i32) -> (i32, i32) {
    %c0_i32 = arith.constant 0 : i32
    %c0_i32_0 = arith.constant 0 : i32
    return %arg0, %c0_i32 : i32, i32
  }
}

</mosaic_0001>

<llo_original>
// kernel: _generator_forward_impl.1
$region0: #{_generator_forward_impl.1}
  #allocation0 [shape = 'u32[]', space=smem, size = 0x4, offset = 0x4, fixed_abs, tag = 'smem constant byte address 0x4 - core index']
  #allocation1 [shape = 'u32[144,128]{1,0:T(1,128)}', space=vmem, size = 0x12000, scoped, tag = 'internal scratch']
  %s0 = inlined_call_operand.vmem [shape: f32[8,128], index: 0, kind: input, shape index: {}]
  %s1 = inlined_call_operand.vmem [shape: bf16[128,512], index: 1, kind: input, shape index: {}]
  %s2 = inlined_call_operand.vmem [shape: f32[1,512], index: 2, kind: input, shape index: {}]
  %s3 = inlined_call_operand.vmem [shape: bf16[512,512], index: 3, kind: input, shape index: {}]
  %s4 = inlined_call_operand.vmem [shape: f32[1,512], index: 4, kind: input, shape index: {}]
  %s5 = inlined_call_operand.vmem [shape: bf16[512,512], index: 5, kind: input, shape index: {}]
  %s6 = inlined_call_operand.vmem [shape: f32[1,512], index: 6, kind: input, shape index: {}]
  %s7 = inlined_call_operand.vmem [shape: bf16[512,128], index: 7, kind: input, shape index: {}]
  %s8 = inlined_call_operand.vmem [shape: f32[1,128], index: 8, kind: input, shape index: {}]
  %s9 = inlined_call_operand.hbm [shape: f32[8,128], index: 9, kind: output, shape index: {}]
  %s10 = sld [smem:[#allocation0]]
  $region46: #{_generator_forward_impl.1} parent=0
    _
  %s12 = ssub.s32 1, %s10
  %s13 = scalar_select 0, %s12, %s10
  $region1: #{_generator_forward_impl.1} parent=0
    #allocation2 [shape = 'u8[4096]{0}', space=vmem, size = 0x1000, scoped, tag = 'output window, operand 0, single buffered']
    #allocation3 [shape = 's32[1]{0}', space=sflag, size = 0x4, scoped, tag = 'scoped memory for _generator_forward_impl.1']
    %14 = vsyncpa [#allocation3], 0
    // Predicated region
    $region2: #{_generator_forward_impl.1} parent=1 // pred_check
      _
    $region3: #{_generator_forward_impl.1} parent=1 // pred_check_branch
      %16 = sbr.rel (0) target = $region5
    $region4: #{_generator_forward_impl.1} parent=1 // pred_region
      _
    $region5: #{_generator_forward_impl.1} parent=1 // pred_fallthru
      _
    // Predicated region
    $region6: #{_generator_forward_impl.1} parent=1 // pred_check
      _
    $region7: #{_generator_forward_impl.1} parent=1 // pred_check_branch
      %18 = sbr.rel (0) target = $region9
    $region8: #{_generator_forward_impl.1} parent=1 // pred_region
      _
    $region9: #{_generator_forward_impl.1} parent=1 // pred_fallthru
      _
    // Predicated region
    $region10: #{_generator_forward_impl.1} parent=1 // pred_check
      _
    $region11: #{_generator_forward_impl.1} parent=1 // pred_check_branch
      %20 = sbr.rel (0) target = $region13
    $region12: #{_generator_forward_impl.1} parent=1 // pred_region
      _
    $region13: #{_generator_forward_impl.1} parent=1 // pred_fallthru
      _
    // Predicated region
    $region14: #{_generator_forward_impl.1} parent=1 // pred_check
      _
    $region15: #{_generator_forward_impl.1} parent=1 // pred_check_branch
      %22 = sbr.rel (0) target = $region17
    $region16: #{_generator_forward_impl.1} parent=1 // pred_region
      _
    $region17: #{_generator_forward_impl.1} parent=1 // pred_fallthru
      _
    // Predicated region
    $region18: #{_generator_forward_impl.1} parent=1 // pred_check
      _
    $region19: #{_generator_forward_impl.1} parent=1 // pred_check_branch
      %24 = sbr.rel (0) target = $region21
    $region20: #{_generator_forward_impl.1} parent=1 // pred_region
      _
    $region21: #{_generator_forward_impl.1} parent=1 // pred_fallthru
      _
    // Predicated region
    $region22: #{_generator_forward_impl.1} parent=1 // pred_check
      _
    $region23: #{_generator_forward_impl.1} parent=1 // pred_check_branch
      %26 = sbr.rel (0) target = $region25
    $region24: #{_generator_forward_impl.1} parent=1 // pred_region
      _
    $region25: #{_generator_forward_impl.1} parent=1 // pred_fallthru
      _
    // Predicated region
    $region26: #{_generator_forward_impl.1} parent=1 // pred_check
      _
    $region27: #{_generator_forward_impl.1} parent=1 // pred_check_branch
      %28 = sbr.rel (0) target = $region29
    $region28: #{_generator_forward_impl.1} parent=1 // pred_region
      _
    $region29: #{_generator_forward_impl.1} parent=1 // pred_fallthru
      _
    // Predicated region
    $region30: #{_generator_forward_impl.1} parent=1 // pred_check
      _
    $region31: #{_generator_forward_impl.1} parent=1 // pred_check_branch
      %30 = sbr.rel (0) target = $region33
    $region32: #{_generator_forward_impl.1} parent=1 // pred_region
      _
    $region33: #{_generator_forward_impl.1} parent=1 // pred_fallthru
      _
    // Predicated region
    $region34: #{_generator_forward_impl.1} parent=1 // pred_check
      _
    $region35: #{_generator_forward_impl.1} parent=1 // pred_check_branch
      %32 = sbr.rel (0) target = $region37
    $region36: #{_generator_forward_impl.1} parent=1 // pred_region
      _
    $region37: #{_generator_forward_impl.1} parent=1 // pred_fallthru
      _
    %v34 = vld [vmem:[%s0] sm:$0xff]
    %v35 = vpack.c.bf16 %v34, %v34
    %v36 = vld [vmem:[%s1] sm:$0xff]
    %v37 = vld [vmem:[%s1 + $0x8] sm:$0xff]
    %v38 = vld [vmem:[%s1 + $0x10] sm:$0xff]
    %v39 = vld [vmem:[%s1 + $0x18] sm:$0xff]
    %v40 = vld [vmem:[%s1 + $0x20] sm:$0xff]
    %v41 = vld [vmem:[%s1 + $0x28] sm:$0xff]
    %v42 = vld [vmem:[%s1 + $0x30] sm:$0xff]
    %v43 = vld [vmem:[%s1 + $0x38] sm:$0xff]
    %v44 = vld [vmem:[%s1 + $0x40] sm:$0xff]
    %v45 = vld [vmem:[%s1 + $0x48] sm:$0xff]
    %v46 = vld [vmem:[%s1 + $0x50] sm:$0xff]
    %v47 = vld [vmem:[%s1 + $0x58] sm:$0xff]
    %v48 = vld [vmem:[%s1 + $0x60] sm:$0xff]
    %v49 = vld [vmem:[%s1 + $0x68] sm:$0xff]
    %v50 = vld [vmem:[%s1 + $0x70] sm:$0xff]
    %v51 = vld [vmem:[%s1 + $0x78] sm:$0xff]
    %v52 = vld [vmem:[%s1 + $0x80] sm:$0xff]
    %v53 = vld [vmem:[%s1 + $0x88] sm:$0xff]
    %v54 = vld [vmem:[%s1 + $0x90] sm:$0xff]
    %v55 = vld [vmem:[%s1 + $0x98] sm:$0xff]
    %v56 = vld [vmem:[%s1 + $0xa0] sm:$0xff]
    %v57 = vld [vmem:[%s1 + $0xa8] sm:$0xff]
    %v58 = vld [vmem:[%s1 + $0xb0] sm:$0xff]
    %v59 = vld [vmem:[%s1 + $0xb8] sm:$0xff]
    %v60 = vld [vmem:[%s1 + $0xc0] sm:$0xff]
    %v61 = vld [vmem:[%s1 + $0xc8] sm:$0xff]
    %v62 = vld [vmem:[%s1 + $0xd0] sm:$0xff]
    %v63 = vld [vmem:[%s1 + $0xd8] sm:$0xff]
    %v64 = vld [vmem:[%s1 + $0xe0] sm:$0xff]
    %v65 = vld [vmem:[%s1 + $0xe8] sm:$0xff]
    %v66 = vld [vmem:[%s1 + $0xf0] sm:$0xff]
    %v67 = vld [vmem:[%s1 + $0xf8] sm:$0xff]
    %v68 = vld [vmem:[%s2] sm:$0xf]
    %v70 = vlaneseq
    %v71 = vshrl.u32 %v70, 7
    %v72 = vsub.s32 0, %v71
    %v73 = vrot.slane %v68, %v72
    %v74 = vlaneseq
    %v75 = vshrl.u32 %v74, 7
    %v76 = vsub.s32 1, %v75
    %v77 = vrot.slane %v68, %v76
    %v78 = vlaneseq
    %v79 = vshrl.u32 %v78, 7
    %v80 = vsub.s32 2, %v79
    %v81 = vrot.slane %v68, %v80
    %v82 = vlaneseq
    %v83 = vshrl.u32 %v82, 7
    %v84 = vsub.s32 3, %v83
    %v85 = vrot.slane %v68, %v84
    %v122 = vunpack.c.l.b16 %v36
    %v123 = vunpack.c.h.b16 %v36
    %v124 = vunpack.c.l.b16 %v37
    %v125 = vunpack.c.h.b16 %v37
    %v126 = vunpack.c.l.b16 %v38
    %v127 = vunpack.c.h.b16 %v38
    %v128 = vunpack.c.l.b16 %v39
    %v129 = vunpack.c.h.b16 %v39
    %v130 = vunpack.c.l.b16 %v40
    %v131 = vunpack.c.h.b16 %v40
    %v132 = vunpack.c.l.b16 %v41
    %v133 = vunpack.c.h.b16 %v41
    %v134 = vunpack.c.l.b16 %v42
    %v135 = vunpack.c.h.b16 %v42
    %v136 = vunpack.c.l.b16 %v43
    %v137 = vunpack.c.h.b16 %v43
    %v138 = vunpack.c.l.b16 %v44
    %v139 = vunpack.c.h.b16 %v44
    %v140 = vunpack.c.l.b16 %v45
    %v141 = vunpack.c.h.b16 %v45
    %v142 = vunpack.c.l.b16 %v46
    %v143 = vunpack.c.h.b16 %v46
    %v144 = vunpack.c.l.b16 %v47
    %v145 = vunpack.c.h.b16 %v47
    %v146 = vunpack.c.l.b16 %v48
    %v147 = vunpack.c.h.b16 %v48
    %v148 = vunpack.c.l.b16 %v49
    %v149 = vunpack.c.h.b16 %v49
    %v150 = vunpack.c.l.b16 %v50
    %v151 = vunpack.c.h.b16 %v50
    %v152 = vunpack.c.l.b16 %v51
    %v153 = vunpack.c.h.b16 %v51
    %v154 = vunpack.c.l.b16 %v52
    %v155 = vunpack.c.h.b16 %v52
    %v156 = vunpack.c.l.b16 %v53
    %v157 = vunpack.c.h.b16 %v53
    %v158 = vunpack.c.l.b16 %v54
    %v159 = vunpack.c.h.b16 %v54
    %v160 = vunpack.c.l.b16 %v55
    %v161 = vunpack.c.h.b16 %v55
    %v162 = vunpack.c.l.b16 %v56
    %v163 = vunpack.c.h.b16 %v56
    %v164 = vunpack.c.l.b16 %v57
    %v165 = vunpack.c.h.b16 %v57
    %v166 = vunpack.c.l.b16 %v58
    %v167 = vunpack.c.h.b16 %v58
    %v168 = vunpack.c.l.b16 %v59
    %v169 = vunpack.c.h.b16 %v59
    %v170 = vunpack.c.l.b16 %v60
    %v171 = vunpack.c.h.b16 %v60
    %v172 = vunpack.c.l.b16 %v61
    %v173 = vunpack.c.h.b16 %v61
    %v174 = vunpack.c.l.b16 %v62
    %v175 = vunpack.c.h.b16 %v62
    %v176 = vunpack.c.l.b16 %v63
    %v177 = vunpack.c.h.b16 %v63
    %v178 = vunpack.c.l.b16 %v64
    %v179 = vunpack.c.h.b16 %v64
    %v180 = vunpack.c.l.b16 %v65
    %v181 = vunpack.c.h.b16 %v65
    %v182 = vunpack.c.l.b16 %v66
    %v183 = vunpack.c.h.b16 %v66
    %v184 = vunpack.c.l.b16 %v67
    %v185 = vunpack.c.h.b16 %v67
    %v186 = vpack.c.b16 %v126, %v122
    %v187 = vpack.c.b16 %v127, %v123
    %v188 = vpack.c.b16 %v128, %v124
    %v189 = vpack.c.b16 %v129, %v125
    %v190 = vpack.c.b16 %v134, %v130
    %v191 = vpack.c.b16 %v135, %v131
    %v192 = vpack.c.b16 %v136, %v132
    %v193 = vpack.c.b16 %v137, %v133
    %v194 = vpack.c.b16 %v142, %v138
    %v195 = vpack.c.b16 %v143, %v139
    %v196 = vpack.c.b16 %v144, %v140
    %v197 = vpack.c.b16 %v145, %v141
    %v198 = vpack.c.b16 %v150, %v146
    %v199 = vpack.c.b16 %v151, %v147
    %v200 = vpack.c.b16 %v152, %v148
    %v201 = vpack.c.b16 %v153, %v149
    %v202 = vpack.c.b16 %v158, %v154
    %v203 = vpack.c.b16 %v159, %v155
    %v204 = vpack.c.b16 %v160, %v156
    %v205 = vpack.c.b16 %v161, %v157
    %v206 = vpack.c.b16 %v166, %v162
    %v207 = vpack.c.b16 %v167, %v163
    %v208 = vpack.c.b16 %v168, %v164
    %v209 = vpack.c.b16 %v169, %v165
    %v210 = vpack.c.b16 %v174, %v170
    %v211 = vpack.c.b16 %v175, %v171
    %v212 = vpack.c.b16 %v176, %v172
    %v213 = vpack.c.b16 %v177, %v173
    %v214 = vpack.c.b16 %v182, %v178
    %v215 = vpack.c.b16 %v183, %v179
    %v216 = vpack.c.b16 %v184, %v180
    %v217 = vpack.c.b16 %v185, %v181
    %250 = vmatprep.subr.bf16.mxu0 %v215
    %251 = vmatpush1.bf16.msra.mxu0 %v214
    %252 = vmatprep.subr.bf16.mxu0 %v211
    %253 = vmatpush1.bf16.msra.mxu0 %v210
    %254 = vmatprep.subr.bf16.mxu0 %v207
    %255 = vmatpush1.bf16.msra.mxu0 %v206
    %256 = vmatprep.subr.bf16.mxu0 %v203
    %257 = vmatpush1.bf16.msra.mxu0 %v202
    %258 = vmatprep.subr.bf16.mxu0 %v199
    %259 = vmatpush1.bf16.msra.mxu0 %v198
    %260 = vmatprep.subr.bf16.mxu0 %v195
    %261 = vmatpush1.bf16.msra.mxu0 %v194
    %262 = vmatprep.subr.bf16.mxu0 %v191
    %263 = vmatpush1.bf16.msra.mxu0 %v190
    %264 = vmatprep.subr.bf16.mxu0 %v187
    %265 = vmatpush1.bf16.msra.mxu0 %v186
    %266 = vmatprep.subr.bf16.mxu0 0
    %267 = vmatpush2.bf16.msra.mxu0 0
    %268 = vmatprep.subr.bf16.mxu0 0
    %269 = vmatpush2.bf16.msra.mxu0 0
    %270 = vmatprep.subr.bf16.mxu0 0
    %271 = vmatpush2.bf16.msra.mxu0 0
    %272 = vmatprep.subr.bf16.mxu0 0
    %273 = vmatpush2.bf16.msra.mxu0 0
    %274 = vmatprep.subr.bf16.mxu0 0
    %275 = vmatpush2.bf16.msra.mxu0 0
    %276 = vmatprep.subr.bf16.mxu0 0
    %277 = vmatpush2.bf16.msra.mxu0 0
    %278 = vmatprep.subr.bf16.mxu0 0
    %279 = vmatpush2.bf16.msra.mxu0 0
    %280 = vmatprep.subr.bf16.mxu0 0
    %281 = vmatpush2.bf16.msra.mxu0 0
    %282 = vmatprep.mubr.bf16.mxu0 0
    %283 = vmatmul.mubr.bf16.gmra.mxu0 %v35
    %v284 = vpop.f32.mrf.mxu0
    %v285 = vadd.f32 %v73, %v284
    %v286 = vpop.f32.mrf.mxu0
    %v287 = vadd.f32 %v77, %v286
    %v288 = vpop.f32.mrf.mxu0
    %v289 = vpop.f32.mrf.mxu0
    %290 = vdwg.mxu0
    %291 = vmatprep.subr.bf16.mxu0 %v217
    %292 = vmatpush1.bf16.msra.mxu0 %v216
    %293 = vmatprep.subr.bf16.mxu0 %v213
    %294 = vmatpush1.bf16.msra.mxu0 %v212
    %295 = vmatprep.subr.bf16.mxu0 %v209
    %296 = vmatpush1.bf16.msra.mxu0 %v208
    %297 = vmatprep.subr.bf16.mxu0 %v205
    %298 = vmatpush1.bf16.msra.mxu0 %v204
    %299 = vmatprep.subr.bf16.mxu0 %v201
    %300 = vmatpush1.bf16.msra.mxu0 %v200
    %301 = vmatprep.subr.bf16.mxu0 %v197
    %302 = vmatpush1.bf16.msra.mxu0 %v196
    %303 = vmatprep.subr.bf16.mxu0 %v193
    %304 = vmatpush1.bf16.msra.mxu0 %v192
    %305 = vmatprep.subr.bf16.mxu0 %v189
    %306 = vmatpush1.bf16.msra.mxu0 %v188
    %307 = vmatprep.subr.bf16.mxu0 0
    %308 = vmatpush2.bf16.msra.mxu0 0
    %309 = vmatprep.subr.bf16.mxu0 0
    %310 = vmatpush2.bf16.msra.mxu0 0
    %311 = vmatprep.subr.bf16.mxu0 0
    %312 = vmatpush2.bf16.msra.mxu0 0
    %313 = vmatprep.subr.bf16.mxu0 0
    %314 = vmatpush2.bf16.msra.mxu0 0
    %315 = vmatprep.subr.bf16.mxu0 0
    %316 = vmatpush2.bf16.msra.mxu0 0
    %317 = vmatprep.subr.bf16.mxu0 0
    %318 = vmatpush2.bf16.msra.mxu0 0
    %319 = vmatprep.subr.bf16.mxu0 0
    %320 = vmatpush2.bf16.msra.mxu0 0
    %321 = vmatprep.subr.bf16.mxu0 0
    %322 = vmatpush2.bf16.msra.mxu0 0
    %323 = vmatprep.mubr.bf16.mxu0 0
    %324 = vmatmul.mubr.bf16.gmra.mxu0 %v35
    %v325 = vpop.f32.mrf.mxu0
    %v326 = vadd.f32 %v81, %v325
    %v327 = vpop.f32.mrf.mxu0
    %v328 = vadd.f32 %v85, %v327
    %v329 = vpop.f32.mrf.mxu0
    %v330 = vpop.f32.mrf.mxu0
    %331 = vdwg.mxu0
    %v332 = vmax.f32 %v285, 0.0
    %v333 = vmax.f32 %v287, 0.0
    %v334 = vmax.f32 %v326, 0.0
    %v335 = vmax.f32 %v328, 0.0
    %v336 = vpack.c.bf16 %v332, %v332
    %v337 = vpack.c.bf16 %v333, %v333
    %v338 = vpack.c.bf16 %v334, %v334
    %v339 = vpack.c.bf16 %v335, %v335
    %v340 = vld [vmem:[%s3] sm:$0xff]
    %v341 = vld [vmem:[%s3 + $0x8] sm:$0xff]
    %v342 = vld [vmem:[%s3 + $0x10] sm:$0xff]
    %v343 = vld [vmem:[%s3 + $0x18] sm:$0xff]
    %v344 = vld [vmem:[%s3 + $0x20] sm:$0xff]
    %v345 = vld [vmem:[%s3 + $0x28] sm:$0xff]
    %v346 = vld [vmem:[%s3 + $0x30] sm:$0xff]
    %v347 = vld [vmem:[%s3 + $0x38] sm:$0xff]
    %v348 = vld [vmem:[%s3 + $0x40] sm:$0xff]
    %v349 = vld [vmem:[%s3 + $0x48] sm:$0xff]
    %v350 = vld [vmem:[%s3 + $0x50] sm:$0xff]
    %v351 = vld [vmem:[%s3 + $0x58] sm:$0xff]
    %v352 = vld [vmem:[%s3 + $0x60] sm:$0xff]
    %v353 = vld [vmem:[%s3 + $0x68] sm:$0xff]
    %v354 = vld [vmem:[%s3 + $0x70] sm:$0xff]
    %v355 = vld [vmem:[%s3 + $0x78] sm:$0xff]
    %v356 = vld [vmem:[%s3 + $0x80] sm:$0xff]
    %v357 = vld [vmem:[%s3 + $0x88] sm:$0xff]
    %v358 = vld [vmem:[%s3 + $0x90] sm:$0xff]
    %v359 = vld [vmem:[%s3 + $0x98] sm:$0xff]
    %v360 = vld [vmem:[%s3 + $0xa0] sm:$0xff]
    %v361 = vld [vmem:[%s3 + $0xa8] sm:$0xff]
    %v362 = vld [vmem:[%s3 + $0xb0] sm:$0xff]
    %v363 = vld [vmem:[%s3 + $0xb8] sm:$0xff]
    %v364 = vld [vmem:[%s3 + $0xc0] sm:$0xff]
    %v365 = vld [vmem:[%s3 + $0xc8] sm:$0xff]
    %v366 = vld [vmem:[%s3 + $0xd0] sm:$0xff]
    %v367 = vld [vmem:[%s3 + $0xd8] sm:$0xff]
    %v368 = vld [vmem:[%s3 + $0xe0] sm:$0xff]
    %v369 = vld [vmem:[%s3 + $0xe8] sm:$0xff]
    %v370 = vld [vmem:[%s3 + $0xf0] sm:$0xff]
    %v371 = vld [vmem:[%s3 + $0xf8] sm:$0xff]
    %v372 = vld [vmem:[%s3 + $0x100] sm:$0xff]
    %v373 = vld [vmem:[%s3 + $0x108] sm:$0xff]
    %v374 = vld [vmem:[%s3 + $0x110] sm:$0xff]
    %v375 = vld [vmem:[%s3 + $0x118] sm:$0xff]
    %v376 = vld [vmem:[%s3 + $0x120] sm:$0xff]
    %v377 = vld [vmem:[%s3 + $0x128] sm:$0xff]
    %v378 = vld [vmem:[%s3 + $0x130] sm:$0xff]
    %v379 = vld [vmem:[%s3 + $0x138] sm:$0xff]
    %v380 = vld [vmem:[%s3 + $0x140] sm:$0xff]
    %v381 = vld [vmem:[%s3 + $0x148] sm:$0xff]
    %v382 = vld [vmem:[%s3 + $0x150] sm:$0xff]
    %v383 = vld [vmem:[%s3 + $0x158] sm:$0xff]
    %v384 = vld [vmem:[%s3 + $0x160] sm:$0xff]
    %v385 = vld [vmem:[%s3 + $0x168] sm:$0xff]
    %v386 = vld [vmem:[%s3 + $0x170] sm:$0xff]
    %v387 = vld [vmem:[%s3 + $0x178] sm:$0xff]
    %v388 = vld [vmem:[%s3 + $0x180] sm:$0xff]
    %v389 = vld [vmem:[%s3 + $0x188] sm:$0xff]
    %v390 = vld [vmem:[%s3 + $0x190] sm:$0xff]
    %v391 = vld [vmem:[%s3 + $0x198] sm:$0xff]
    %v392 = vld [vmem:[%s3 + $0x1a0] sm:$0xff]
    %v393 = vld [vmem:[%s3 + $0x1a8] sm:$0xff]
    %v394 = vld [vmem:[%s3 + $0x1b0] sm:$0xff]
    %v395 = vld [vmem:[%s3 + $0x1b8] sm:$0xff]
    %v396 = vld [vmem:[%s3 + $0x1c0] sm:$0xff]
    %v397 = vld [vmem:[%s3 + $0x1c8] sm:$0xff]
    %v398 = vld [vmem:[%s3 + $0x1d0] sm:$0xff]
    %v399 = vld [vmem:[%s3 + $0x1d8] sm:$0xff]
    %v400 = vld [vmem:[%s3 + $0x1e0] sm:$0xff]
    %v401 = vld [vmem:[%s3 + $0x1e8] sm:$0xff]
    %v402 = vld [vmem:[%s3 + $0x1f0] sm:$0xff]
    %v403 = vld [vmem:[%s3 + $0x1f8] sm:$0xff]
    %v404 = vld [vmem:[%s3 + $0x200] sm:$0xff]
    %v405 = vld [vmem:[%s3 + $0x208] sm:$0xff]
    %v406 = vld [vmem:[%s3 + $0x210] sm:$0xff]
    %v407 = vld [vmem:[%s3 + $0x218] sm:$0xff]
    %v408 = vld [vmem:[%s3 + $0x220] sm:$0xff]
    %v409 = vld [vmem:[%s3 + $0x228] sm:$0xff]
    %v410 = vld [vmem:[%s3 + $0x230] sm:$0xff]
    %v411 = vld [vmem:[%s3 + $0x238] sm:$0xff]
    %v412 = vld [vmem:[%s3 + $0x240] sm:$0xff]
    %v413 = vld [vmem:[%s3 + $0x248] sm:$0xff]
    %v414 = vld [vmem:[%s3 + $0x250] sm:$0xff]
    %v415 = vld [vmem:[%s3 + $0x258] sm:$0xff]
    %v416 = vld [vmem:[%s3 + $0x260] sm:$0xff]
    %v417 = vld [vmem:[%s3 + $0x268] sm:$0xff]
    %v418 = vld [vmem:[%s3 + $0x270] sm:$0xff]
    %v419 = vld [vmem:[%s3 + $0x278] sm:$0xff]
    %v420 = vld [vmem:[%s3 + $0x280] sm:$0xff]
    %v421 = vld [vmem:[%s3 + $0x288] sm:$0xff]
    %v422 = vld [vmem:[%s3 + $0x290] sm:$0xff]
    %v423 = vld [vmem:[%s3 + $0x298] sm:$0xff]
    %v424 = vld [vmem:[%s3 + $0x2a0] sm:$0xff]
    %v425 = vld [vmem:[%s3 + $0x2a8] sm:$0xff]
    %v426 = vld [vmem:[%s3 + $0x2b0] sm:$0xff]
    %v427 = vld [vmem:[%s3 + $0x2b8] sm:$0xff]
    %v428 = vld [vmem:[%s3 + $0x2c0] sm:$0xff]
    %v429 = vld [vmem:[%s3 + $0x2c8] sm:$0xff]
    %v430 = vld [vmem:[%s3 + $0x2d0] sm:$0xff]
    %v431 = vld [vmem:[%s3 + $0x2d8] sm:$0xff]
    %v432 = vld [vmem:[%s3 + $0x2e0] sm:$0xff]
    %v433 = vld [vmem:[%s3 + $0x2e8] sm:$0xff]
    %v434 = vld [vmem:[%s3 + $0x2f0] sm:$0xff]
    %v435 = vld [vmem:[%s3 + $0x2f8] sm:$0xff]
    %v436 = vld [vmem:[%s3 + $0x300] sm:$0xff]
    %v437 = vld [vmem:[%s3 + $0x308] sm:$0xff]
    %v438 = vld [vmem:[%s3 + $0x310] sm:$0xff]
    %v439 = vld [vmem:[%s3 + $0x318] sm:$0xff]
    %v440 = vld [vmem:[%s3 + $0x320] sm:$0xff]
    %v441 = vld [vmem:[%s3 + $0x328] sm:$0xff]
    %v442 = vld [vmem:[%s3 + $0x330] sm:$0xff]
    %v443 = vld [vmem:[%s3 + $0x338] sm:$0xff]
    %v444 = vld [vmem:[%s3 + $0x340] sm:$0xff]
    %v445 = vld [vmem:[%s3 + $0x348] sm:$0xff]
    %v446 = vld [vmem:[%s3 + $0x350] sm:$0xff]
    %v447 = vld [vmem:[%s3 + $0x358] sm:$0xff]
    %v448 = vld [vmem:[%s3 + $0x360] sm:$0xff]
    %v449 = vld [vmem:[%s3 + $0x368] sm:$0xff]
    %v450 = vld [vmem:[%s3 + $0x370] sm:$0xff]
    %v451 = vld [vmem:[%s3 + $0x378] sm:$0xff]
    %v452 = vld [vmem:[%s3 + $0x380] sm:$0xff]
    %v453 = vld [vmem:[%s3 + $0x388] sm:$0xff]
    %v454 = vld [vmem:[%s3 + $0x390] sm:$0xff]
    %v455 = vld [vmem:[%s3 + $0x398] sm:$0xff]
    %v456 = vld [vmem:[%s3 + $0x3a0] sm:$0xff]
    %v457 = vld [vmem:[%s3 + $0x3a8] sm:$0xff]
    %v458 = vld [vmem:[%s3 + $0x3b0] sm:$0xff]
    %v459 = vld [vmem:[%s3 + $0x3b8] sm:$0xff]
    %v460 = vld [vmem:[%s3 + $0x3c0] sm:$0xff]
    %v461 = vld [vmem:[%s3 + $0x3c8] sm:$0xff]
    %v462 = vld [vmem:[%s3 + $0x3d0] sm:$0xff]
    %v463 = vld [vmem:[%s3 + $0x3d8] sm:$0xff]
    %v464 = vld [vmem:[%s3 + $0x3e0] sm:$0xff]
    %v465 = vld [vmem:[%s3 + $0x3e8] sm:$0xff]
    %v466 = vld [vmem:[%s3 + $0x3f0] sm:$0xff]
    %v467 = vld [vmem:[%s3 + $0x3f8] sm:$0xff]
    %v468 = vld [vmem:[%s4] sm:$0xf]
    %v470 = vlaneseq
    %v471 = vshrl.u32 %v470, 7
    %v472 = vsub.s32 0, %v471
    %v473 = vrot.slane %v468, %v472
    %v474 = vlaneseq
    %v475 = vshrl.u32 %v474, 7
    %v476 = vsub.s32 1, %v475
    %v477 = vrot.slane %v468, %v476
    %v478 = vlaneseq
    %v479 = vshrl.u32 %v478, 7
    %v480 = vsub.s32 2, %v479
    %v481 = vrot.slane %v468, %v480
    %v482 = vlaneseq
    %v483 = vshrl.u32 %v482, 7
    %v484 = vsub.s32 3, %v483
    %v485 = vrot.slane %v468, %v484
    %v618 = vunpack.c.l.b16 %v340
    %v619 = vunpack.c.h.b16 %v340
    %v620 = vunpack.c.l.b16 %v341
    %v621 = vunpack.c.h.b16 %v341
    %v622 = vunpack.c.l.b16 %v342
    %v623 = vunpack.c.h.b16 %v342
    %v624 = vunpack.c.l.b16 %v343
    %v625 = vunpack.c.h.b16 %v343
    %v626 = vunpack.c.l.b16 %v344
    %v627 = vunpack.c.h.b16 %v344
    %v628 = vunpack.c.l.b16 %v345
    %v629 = vunpack.c.h.b16 %v345
    %v630 = vunpack.c.l.b16 %v346
    %v631 = vunpack.c.h.b16 %v346
    %v632 = vunpack.c.l.b16 %v347
    %v633 = vunpack.c.h.b16 %v347
    %v634 = vunpack.c.l.b16 %v348
    %v635 = vunpack.c.h.b16 %v348
    %v636 = vunpack.c.l.b16 %v349
    %v637 = vunpack.c.h.b16 %v349
    %v638 = vunpack.c.l.b16 %v350
    %v639 = vunpack.c.h.b16 %v350
    %v640 = vunpack.c.l.b16 %v351
    %v641 = vunpack.c.h.b16 %v351
    %v642 = vunpack.c.l.b16 %v352
    %v643 = vunpack.c.h.b16 %v352
    %v644 = vunpack.c.l.b16 %v353
    %v645 = vunpack.c.h.b16 %v353
    %v646 = vunpack.c.l.b16 %v354
    %v647 = vunpack.c.h.b16 %v354
    %v648 = vunpack.c.l.b16 %v355
    %v649 = vunpack.c.h.b16 %v355
    %v650 = vunpack.c.l.b16 %v356
    %v651 = vunpack.c.h.b16 %v356
    %v652 = vunpack.c.l.b16 %v357
    %v653 = vunpack.c.h.b16 %v357
    %v654 = vunpack.c.l.b16 %v358
    %v655 = vunpack.c.h.b16 %v358
    %v656 = vunpack.c.l.b16 %v359
    %v657 = vunpack.c.h.b16 %v359
    %v658 = vunpack.c.l.b16 %v360
    %v659 = vunpack.c.h.b16 %v360
    %v660 = vunpack.c.l.b16 %v361
    %v661 = vunpack.c.h.b16 %v361
    %v662 = vunpack.c.l.b16 %v362
    %v663 = vunpack.c.h.b16 %v362
    %v664 = vunpack.c.l.b16 %v363
    %v665 = vunpack.c.h.b16 %v363
    %v666 = vunpack.c.l.b16 %v364
    %v667 = vunpack.c.h.b16 %v364
    %v668 = vunpack.c.l.b16 %v365
    %v669 = vunpack.c.h.b16 %v365
    %v670 = vunpack.c.l.b16 %v366
    %v671 = vunpack.c.h.b16 %v366
    %v672 = vunpack.c.l.b16 %v367
    %v673 = vunpack.c.h.b16 %v367
    %v674 = vunpack.c.l.b16 %v368
    %v675 = vunpack.c.h.b16 %v368
    %v676 = vunpack.c.l.b16 %v369
    %v677 = vunpack.c.h.b16 %v369
    %v678 = vunpack.c.l.b16 %v370
    %v679 = vunpack.c.h.b16 %v370
    %v680 = vunpack.c.l.b16 %v371
    %v681 = vunpack.c.h.b16 %v371
    %v682 = vunpack.c.l.b16 %v372
    %v683 = vunpack.c.h.b16 %v372
    %v684 = vunpack.c.l.b16 %v373
    %v685 = vunpack.c.h.b16 %v373
    %v686 = vunpack.c.l.b16 %v374
    %v687 = vunpack.c.h.b16 %v374
    %v688 = vunpack.c.l.b16 %v375
    %v689 = vunpack.c.h.b16 %v375
    %v690 = vunpack.c.l.b16 %v376
    %v691 = vunpack.c.h.b16 %v376
    %v692 = vunpack.c.l.b16 %v377
    %v693 = vunpack.c.h.b16 %v377
    %v694 = vunpack.c.l.b16 %v378
    %v695 = vunpack.c.h.b16 %v378
    %v696 = vunpack.c.l.b16 %v379
    %v697 = vunpack.c.h.b16 %v379
    %v698 = vunpack.c.l.b16 %v380
    %v699 = vunpack.c.h.b16 %v380
    %v700 = vunpack.c.l.b16 %v381
    %v701 = vunpack.c.h.b16 %v381
    %v702 = vunpack.c.l.b16 %v382
    %v703 = vunpack.c.h.b16 %v382
    %v704 = vunpack.c.l.b16 %v383
    %v705 = vunpack.c.h.b16 %v383
    %v706 = vunpack.c.l.b16 %v384
    %v707 = vunpack.c.h.b16 %v384
    %v708 = vunpack.c.l.b16 %v385
    %v709 = vunpack.c.h.b16 %v385
    %v710 = vunpack.c.l.b16 %v386
    %v711 = vunpack.c.h.b16 %v386
    %v712 = vunpack.c.l.b16 %v387
    %v713 = vunpack.c.h.b16 %v387
    %v714 = vunpack.c.l.b16 %v388
    %v715 = vunpack.c.h.b16 %v388
    %v716 = vunpack.c.l.b16 %v389
    %v717 = vunpack.c.h.b16 %v389
    %v718 = vunpack.c.l.b16 %v390
    %v719 = vunpack.c.h.b16 %v390
    %v720 = vunpack.c.l.b16 %v391
    %v721 = vunpack.c.h.b16 %v391
    %v722 = vunpack.c.l.b16 %v392
    %v723 = vunpack.c.h.b16 %v392
    %v724 = vunpack.c.l.b16 %v393
    %v725 = vunpack.c.h.b16 %v393
    %v726 = vunpack.c.l.b16 %v394
    %v727 = vunpack.c.h.b16 %v394
    %v728 = vunpack.c.l.b16 %v395
    %v729 = vunpack.c.h.b16 %v395
    %v730 = vunpack.c.l.b16 %v396
    %v731 = vunpack.c.h.b16 %v396
    %v732 = vunpack.c.l.b16 %v397
    %v733 = vunpack.c.h.b16 %v397
    %v734 = vunpack.c.l.b16 %v398
    %v735 = vunpack.c.h.b16 %v398
    %v736 = vunpack.c.l.b16 %v399
    %v737 = vunpack.c.h.b16 %v399
    %v738 = vunpack.c.l.b16 %v400
    %v739 = vunpack.c.h.b16 %v400
    %v740 = vunpack.c.l.b16 %v401
    %v741 = vunpack.c.h.b16 %v401
    %v742 = vunpack.c.l.b16 %v402
    %v743 = vunpack.c.h.b16 %v402
    %v744 = vunpack.c.l.b16 %v403
    %v745 = vunpack.c.h.b16 %v403
    %v746 = vunpack.c.l.b16 %v404
    %v747 = vunpack.c.h.b16 %v404
    %v748 = vunpack.c.l.b16 %v405
    %v749 = vunpack.c.h.b16 %v405
    %v750 = vunpack.c.l.b16 %v406
    %v751 = vunpack.c.h.b16 %v406
    %v752 = vunpack.c.l.b16 %v407
    %v753 = vunpack.c.h.b16 %v407
    %v754 = vunpack.c.l.b16 %v408
    %v755 = vunpack.c.h.b16 %v408
    %v756 = vunpack.c.l.b16 %v409
    %v757 = vunpack.c.h.b16 %v409
    %v758 = vunpack.c.l.b16 %v410
    %v759 = vunpack.c.h.b16 %v410
    %v760 = vunpack.c.l.b16 %v411
    %v761 = vunpack.c.h.b16 %v411
    %v762 = vunpack.c.l.b16 %v412
    %v763 = vunpack.c.h.b16 %v412
    %v764 = vunpack.c.l.b16 %v413
    %v765 = vunpack.c.h.b16 %v413
    %v766 = vunpack.c.l.b16 %v414
    %v767 = vunpack.c.h.b16 %v414
    %v768 = vunpack.c.l.b16 %v415
    %v769 = vunpack.c.h.b16 %v415
    %v770 = vunpack.c.l.b16 %v416
    %v771 = vunpack.c.h.b16 %v416
    %v772 = vunpack.c.l.b16 %v417
    %v773 = vunpack.c.h.b16 %v417
    %v774 = vunpack.c.l.b16 %v418
    %v775 = vunpack.c.h.b16 %v418
    %v776 = vunpack.c.l.b16 %v419
    %v777 = vunpack.c.h.b16 %v419
    %v778 = vunpack.c.l.b16 %v420
    %v779 = vunpack.c.h.b16 %v420
    %v780 = vunpack.c.l.b16 %v421
    %v781 = vunpack.c.h.b16 %v421
    %v782 = vunpack.c.l.b16 %v422
    %v783 = vunpack.c.h.b16 %v422
    %v784 = vunpack.c.l.b16 %v423
    %v785 = vunpack.c.h.b16 %v423
    %v786 = vunpack.c.l.b16 %v424
    %v787 = vunpack.c.h.b16 %v424
    %v788 = vunpack.c.l.b16 %v425
    %v789 = vunpack.c.h.b16 %v425
    %v790 = vunpack.c.l.b16 %v426
    %v791 = vunpack.c.h.b16 %v426
    %v792 = vunpack.c.l.b16 %v427
    %v793 = vunpack.c.h.b16 %v427
    %v794 = vunpack.c.l.b16 %v428
    %v795 = vunpack.c.h.b16 %v428
    %v796 = vunpack.c.l.b16 %v429
    %v797 = vunpack.c.h.b16 %v429
    %v798 = vunpack.c.l.b16 %v430
    %v799 = vunpack.c.h.b16 %v430
    %v800 = vunpack.c.l.b16 %v431
    %v801 = vunpack.c.h.b16 %v431
    %v802 = vunpack.c.l.b16 %v432
    %v803 = vunpack.c.h.b16 %v432
    %v804 = vunpack.c.l.b16 %v433
    %v805 = vunpack.c.h.b16 %v433
    %v806 = vunpack.c.l.b16 %v434
    %v807 = vunpack.c.h.b16 %v434
    %v808 = vunpack.c.l.b16 %v435
    %v809 = vunpack.c.h.b16 %v435
    %v810 = vunpack.c.l.b16 %v436
    %v811 = vunpack.c.h.b16 %v436
    %v812 = vunpack.c.l.b16 %v437
    %v813 = vunpack.c.h.b16 %v437
    %v814 = vunpack.c.l.b16 %v438
    %v815 = vunpack.c.h.b16 %v438
    %v816 = vunpack.c.l.b16 %v439
    %v817 = vunpack.c.h.b16 %v439
    %v818 = vunpack.c.l.b16 %v440
    %v819 = vunpack.c.h.b16 %v440
    %v820 = vunpack.c.l.b16 %v441
    %v821 = vunpack.c.h.b16 %v441
    %v822 = vunpack.c.l.b16 %v442
    %v823 = vunpack.c.h.b16 %v442
    %v824 = vunpack.c.l.b16 %v443
    %v825 = vunpack.c.h.b16 %v443
    %v826 = vunpack.c.l.b16 %v444
    %v827 = vunpack.c.h.b16 %v444
    %v828 = vunpack.c.l.b16 %v445
    %v829 = vunpack.c.h.b16 %v445
    %v830 = vunpack.c.l.b16 %v446
    %v831 = vunpack.c.h.b16 %v446
    %v832 = vunpack.c.l.b16 %v447
    %v833 = vunpack.c.h.b16 %v447
    %v834 = vunpack.c.l.b16 %v448
    %v835 = vunpack.c.h.b16 %v448
    %v836 = vunpack.c.l.b16 %v449
    %v837 = vunpack.c.h.b16 %v449
    %v838 = vunpack.c.l.b16 %v450
    %v839 = vunpack.c.h.b16 %v450
    %v840 = vunpack.c.l.b16 %v451
    %v841 = vunpack.c.h.b16 %v451
    %v842 = vunpack.c.l.b16 %v452
    %v843 = vunpack.c.h.b16 %v452
    %v844 = vunpack.c.l.b16 %v453
    %v845 = vunpack.c.h.b16 %v453
    %v846 = vunpack.c.l.b16 %v454
    %v847 = vunpack.c.h.b16 %v454
    %v848 = vunpack.c.l.b16 %v455
    %v849 = vunpack.c.h.b16 %v455
    %v850 = vunpack.c.l.b16 %v456
    %v851 = vunpack.c.h.b16 %v456
    %v852 = vunpack.c.l.b16 %v457
    %v853 = vunpack.c.h.b16 %v457
    %v854 = vunpack.c.l.b16 %v458
    %v855 = vunpack.c.h.b16 %v458
    %v856 = vunpack.c.l.b16 %v459
    %v857 = vunpack.c.h.b16 %v459
    %v858 = vunpack.c.l.b16 %v460
    %v859 = vunpack.c.h.b16 %v460
    %v860 = vunpack.c.l.b16 %v461
    %v861 = vunpack.c.h.b16 %v461
    %v862 = vunpack.c.l.b16 %v462
    %v863 = vunpack.c.h.b16 %v462
    %v864 = vunpack.c.l.b16 %v463
    %v865 = vunpack.c.h.b16 %v463
    %v866 = vunpack.c.l.b16 %v464
    %v867 = vunpack.c.h.b16 %v464
    %v868 = vunpack.c.l.b16 %v465
    %v869 = vunpack.c.h.b16 %v465
    %v870 = vunpack.c.l.b16 %v466
    %v871 = vunpack.c.h.b16 %v466
    %v872 = vunpack.c.l.b16 %v467
    %v873 = vunpack.c.h.b16 %v467
    %v874 = vpack.c.b16 %v622, %v618
    %v875 = vpack.c.b16 %v623, %v619
    %v876 = vpack.c.b16 %v624, %v620
    %v877 = vpack.c.b16 %v625, %v621
    %v878 = vpack.c.b16 %v630, %v626
    %v879 = vpack.c.b16 %v631, %v627
    %v880 = vpack.c.b16 %v632, %v628
    %v881 = vpack.c.b16 %v633, %v629
    %v882 = vpack.c.b16 %v638, %v634
    %v883 = vpack.c.b16 %v639, %v635
    %v884 = vpack.c.b16 %v640, %v636
    %v885 = vpack.c.b16 %v641, %v637
    %v886 = vpack.c.b16 %v646, %v642
    %v887 = vpack.c.b16 %v647, %v643
    %v888 = vpack.c.b16 %v648, %v644
    %v889 = vpack.c.b16 %v649, %v645
    %v890 = vpack.c.b16 %v654, %v650
    %v891 = vpack.c.b16 %v655, %v651
    %v892 = vpack.c.b16 %v656, %v652
    %v893 = vpack.c.b16 %v657, %v653
    %v894 = vpack.c.b16 %v662, %v658
    %v895 = vpack.c.b16 %v663, %v659
    %v896 = vpack.c.b16 %v664, %v660
    %v897 = vpack.c.b16 %v665, %v661
    %v898 = vpack.c.b16 %v670, %v666
    %v899 = vpack.c.b16 %v671, %v667
    %v900 = vpack.c.b16 %v672, %v668
    %v901 = vpack.c.b16 %v673, %v669
    %v902 = vpack.c.b16 %v678, %v674
    %v903 = vpack.c.b16 %v679, %v675
    %v904 = vpack.c.b16 %v680, %v676
    %v905 = vpack.c.b16 %v681, %v677
    %v906 = vpack.c.b16 %v686, %v682
    %v907 = vpack.c.b16 %v687, %v683
    %v908 = vpack.c.b16 %v688, %v684
    %v909 = vpack.c.b16 %v689, %v685
    %v910 = vpack.c.b16 %v694, %v690
    %v911 = vpack.c.b16 %v695, %v691
    %v912 = vpack.c.b16 %v696, %v692
    %v913 = vpack.c.b16 %v697, %v693
    %v914 = vpack.c.b16 %v702, %v698
    %v915 = vpack.c.b16 %v703, %v699
    %v916 = vpack.c.b16 %v704, %v700
    %v917 = vpack.c.b16 %v705, %v701
    %v918 = vpack.c.b16 %v710, %v706
    %v919 = vpack.c.b16 %v711, %v707
    %v920 = vpack.c.b16 %v712, %v708
    %v921 = vpack.c.b16 %v713, %v709
    %v922 = vpack.c.b16 %v718, %v714
    %v923 = vpack.c.b16 %v719, %v715
    %v924 = vpack.c.b16 %v720, %v716
    %v925 = vpack.c.b16 %v721, %v717
    %v926 = vpack.c.b16 %v726, %v722
    %v927 = vpack.c.b16 %v727, %v723
    %v928 = vpack.c.b16 %v728, %v724
    %v929 = vpack.c.b16 %v729, %v725
    %v930 = vpack.c.b16 %v734, %v730
    %v931 = vpack.c.b16 %v735, %v731
    %v932 = vpack.c.b16 %v736, %v732
    %v933 = vpack.c.b16 %v737, %v733
    %v934 = vpack.c.b16 %v742, %v738
    %v935 = vpack.c.b16 %v743, %v739
    %v936 = vpack.c.b16 %v744, %v740
    %v937 = vpack.c.b16 %v745, %v741
    %v938 = vpack.c.b16 %v750, %v746
    %v939 = vpack.c.b16 %v751, %v747
    %v940 = vpack.c.b16 %v752, %v748
    %v941 = vpack.c.b16 %v753, %v749
    %v942 = vpack.c.b16 %v758, %v754
    %v943 = vpack.c.b16 %v759, %v755
    %v944 = vpack.c.b16 %v760, %v756
    %v945 = vpack.c.b16 %v761, %v757
    %v946 = vpack.c.b16 %v766, %v762
    %v947 = vpack.c.b16 %v767, %v763
    %v948 = vpack.c.b16 %v768, %v764
    %v949 = vpack.c.b16 %v769, %v765
    %v950 = vpack.c.b16 %v774, %v770
    %v951 = vpack.c.b16 %v775, %v771
    %v952 = vpack.c.b16 %v776, %v772
    %v953 = vpack.c.b16 %v777, %v773
    %v954 = vpack.c.b16 %v782, %v778
    %v955 = vpack.c.b16 %v783, %v779
    %v956 = vpack.c.b16 %v784, %v780
    %v957 = vpack.c.b16 %v785, %v781
    %v958 = vpack.c.b16 %v790, %v786
    %v959 = vpack.c.b16 %v791, %v787
    %v960 = vpack.c.b16 %v792, %v788
    %v961 = vpack.c.b16 %v793, %v789
    %v962 = vpack.c.b16 %v798, %v794
    %v963 = vpack.c.b16 %v799, %v795
    %v964 = vpack.c.b16 %v800, %v796
    %v965 = vpack.c.b16 %v801, %v797
    %v966 = vpack.c.b16 %v806, %v802
    %v967 = vpack.c.b16 %v807, %v803
    %v968 = vpack.c.b16 %v808, %v804
    %v969 = vpack.c.b16 %v809, %v805
    %v970 = vpack.c.b16 %v814, %v810
    %v971 = vpack.c.b16 %v815, %v811
    %v972 = vpack.c.b16 %v816, %v812
    %v973 = vpack.c.b16 %v817, %v813
    %v974 = vpack.c.b16 %v822, %v818
    %v975 = vpack.c.b16 %v823, %v819
    %v976 = vpack.c.b16 %v824, %v820
    %v977 = vpack.c.b16 %v825, %v821
    %v978 = vpack.c.b16 %v830, %v826
    %v979 = vpack.c.b16 %v831, %v827
    %v980 = vpack.c.b16 %v832, %v828
    %v981 = vpack.c.b16 %v833, %v829
    %v982 = vpack.c.b16 %v838, %v834
    %v983 = vpack.c.b16 %v839, %v835
    %v984 = vpack.c.b16 %v840, %v836
    %v985 = vpack.c.b16 %v841, %v837
    %v986 = vpack.c.b16 %v846, %v842
    %v987 = vpack.c.b16 %v847, %v843
    %v988 = vpack.c.b16 %v848, %v844
    %v989 = vpack.c.b16 %v849, %v845
    %v990 = vpack.c.b16 %v854, %v850
    %v991 = vpack.c.b16 %v855, %v851
    %v992 = vpack.c.b16 %v856, %v852
    %v993 = vpack.c.b16 %v857, %v853
    %v994 = vpack.c.b16 %v862, %v858
    %v995 = vpack.c.b16 %v863, %v859
    %v996 = vpack.c.b16 %v864, %v860
    %v997 = vpack.c.b16 %v865, %v861
    %v998 = vpack.c.b16 %v870, %v866
    %v999 = vpack.c.b16 %v871, %v867
    %v1000 = vpack.c.b16 %v872, %v868
    %v1001 = vpack.c.b16 %v873, %v869
    %1130 = vmatprep.subr.bf16.mxu0 %v903
    %1131 = vmatpush1.bf16.msra.mxu0 %v902
    %1132 = vmatprep.subr.bf16.mxu0 %v899
    %1133 = vmatpush1.bf16.msra.mxu0 %v898
    %1134 = vmatprep.subr.bf16.mxu0 %v895
    %1135 = vmatpush1.bf16.msra.mxu0 %v894
    %1136 = vmatprep.subr.bf16.mxu0 %v891
    %1137 = vmatpush1.bf16.msra.mxu0 %v890
    %1138 = vmatprep.subr.bf16.mxu0 %v887
    %1139 = vmatpush1.bf16.msra.mxu0 %v886
    %1140 = vmatprep.subr.bf16.mxu0 %v883
    %1141 = vmatpush1.bf16.msra.mxu0 %v882
    %1142 = vmatprep.subr.bf16.mxu0 %v879
    %1143 = vmatpush1.bf16.msra.mxu0 %v878
    %1144 = vmatprep.subr.bf16.mxu0 %v875
    %1145 = vmatpush1.bf16.msra.mxu0 %v874
    %1146 = vmatprep.subr.bf16.mxu0 %v935
    %1147 = vmatpush2.bf16.msra.mxu0 %v934
    %1148 = vmatprep.subr.bf16.mxu0 %v931
    %1149 = vmatpush2.bf16.msra.mxu0 %v930
    %1150 = vmatprep.subr.bf16.mxu0 %v927
    %1151 = vmatpush2.bf16.msra.mxu0 %v926
    %1152 = vmatprep.subr.bf16.mxu0 %v923
    %1153 = vmatpush2.bf16.msra.mxu0 %v922
    %1154 = vmatprep.subr.bf16.mxu0 %v919
    %1155 = vmatpush2.bf16.msra.mxu0 %v918
    %1156 = vmatprep.subr.bf16.mxu0 %v915
    %1157 = vmatpush2.bf16.msra.mxu0 %v914
    %1158 = vmatprep.subr.bf16.mxu0 %v911
    %1159 = vmatpush2.bf16.msra.mxu0 %v910
    %1160 = vmatprep.subr.bf16.mxu0 %v907
    %1161 = vmatpush2.bf16.msra.mxu0 %v906
    %1162 = vmatprep.mubr.bf16.mxu0 %v337
    %1163 = vmatmul.mubr.bf16.gmra.mxu0 %v336
    %v1164 = vpop.f32.mrf.mxu0
    %v1165 = vadd.f32 %v473, %v1164
    %v1166 = vpop.f32.mrf.mxu0
    %v1167 = vadd.f32 %v477, %v1166
    %v1168 = vpop.f32.mrf.mxu0
    %v1169 = vpop.f32.mrf.mxu0
    %1170 = vdwg.mxu0
    %1171 = vmatprep.subr.bf16.mxu0 %v967
    %1172 = vmatpush1.bf16.msra.mxu0 %v966
    %1173 = vmatprep.subr.bf16.mxu0 %v963
    %1174 = vmatpush1.bf16.msra.mxu0 %v962
    %1175 = vmatprep.subr.bf16.mxu0 %v959
    %1176 = vmatpush1.bf16.msra.mxu0 %v958
    %1177 = vmatprep.subr.bf16.mxu0 %v955
    %1178 = vmatpush1.bf16.msra.mxu0 %v954
    %1179 = vmatprep.subr.bf16.mxu0 %v951
    %1180 = vmatpush1.bf16.msra.mxu0 %v950
    %1181 = vmatprep.subr.bf16.mxu0 %v947
    %1182 = vmatpush1.bf16.msra.mxu0 %v946
    %1183 = vmatprep.subr.bf16.mxu0 %v943
    %1184 = vmatpush1.bf16.msra.mxu0 %v942
    %1185 = vmatprep.subr.bf16.mxu0 %v939
    %1186 = vmatpush1.bf16.msra.mxu0 %v938
    %1187 = vmatprep.subr.bf16.mxu0 %v999
    %1188 = vmatpush2.bf16.msra.mxu0 %v998
    %1189 = vmatprep.subr.bf16.mxu0 %v995
    %1190 = vmatpush2.bf16.msra.mxu0 %v994
    %1191 = vmatprep.subr.bf16.mxu0 %v991
    %1192 = vmatpush2.bf16.msra.mxu0 %v990
    %1193 = vmatprep.subr.bf16.mxu0 %v987
    %1194 = vmatpush2.bf16.msra.mxu0 %v986
    %1195 = vmatprep.subr.bf16.mxu0 %v983
    %1196 = vmatpush2.bf16.msra.mxu0 %v982
    %1197 = vmatprep.subr.bf16.mxu0 %v979
    %1198 = vmatpush2.bf16.msra.mxu0 %v978
    %1199 = vmatprep.subr.bf16.mxu0 %v975
    %1200 = vmatpush2.bf16.msra.mxu0 %v974
    %1201 = vmatprep.subr.bf16.mxu0 %v971
    %1202 = vmatpush2.bf16.msra.mxu0 %v970
    %1203 = vmatprep.mubr.bf16.mxu0 %v339
    %1204 = vmatmul.mubr.bf16.gmra.mxu0 %v338
    %v1205 = vpop.f32.mrf.mxu0
    %v1206 = vadd.f32 %v1165, %v1205
    %v1207 = vpop.f32.mrf.mxu0
    %v1208 = vadd.f32 %v1167, %v1207
    %v1209 = vpop.f32.mrf.mxu0
    %v1210 = vpop.f32.mrf.mxu0
    %1211 = vdwg.mxu0
    %1212 = vmatprep.subr.bf16.mxu0 %v905
    %1213 = vmatpush1.bf16.msra.mxu0 %v904
    %1214 = vmatprep.subr.bf16.mxu0 %v901
    %1215 = vmatpush1.bf16.msra.mxu0 %v900
    %1216 = vmatprep.subr.bf16.mxu0 %v897
    %1217 = vmatpush1.bf16.msra.mxu0 %v896
    %1218 = vmatprep.subr.bf16.mxu0 %v893
    %1219 = vmatpush1.bf16.msra.mxu0 %v892
    %1220 = vmatprep.subr.bf16.mxu0 %v889
    %1221 = vmatpush1.bf16.msra.mxu0 %v888
    %1222 = vmatprep.subr.bf16.mxu0 %v885
    %1223 = vmatpush1.bf16.msra.mxu0 %v884
    %1224 = vmatprep.subr.bf16.mxu0 %v881
    %1225 = vmatpush1.bf16.msra.mxu0 %v880
    %1226 = vmatprep.subr.bf16.mxu0 %v877
    %1227 = vmatpush1.bf16.msra.mxu0 %v876
    %1228 = vmatprep.subr.bf16.mxu0 %v937
    %1229 = vmatpush2.bf16.msra.mxu0 %v936
    %1230 = vmatprep.subr.bf16.mxu0 %v933
    %1231 = vmatpush2.bf16.msra.mxu0 %v932
    %1232 = vmatprep.subr.bf16.mxu0 %v929
    %1233 = vmatpush2.bf16.msra.mxu0 %v928
    %1234 = vmatprep.subr.bf16.mxu0 %v925
    %1235 = vmatpush2.bf16.msra.mxu0 %v924
    %1236 = vmatprep.subr.bf16.mxu0 %v921
    %1237 = vmatpush2.bf16.msra.mxu0 %v920
    %1238 = vmatprep.subr.bf16.mxu0 %v917
    %1239 = vmatpush2.bf16.msra.mxu0 %v916
    %1240 = vmatprep.subr.bf16.mxu0 %v913
    %1241 = vmatpush2.bf16.msra.mxu0 %v912
    %1242 = vmatprep.subr.bf16.mxu0 %v909
    %1243 = vmatpush2.bf16.msra.mxu0 %v908
    %1244 = vmatprep.mubr.bf16.mxu0 %v337
    %1245 = vmatmul.mubr.bf16.gmra.mxu0 %v336
    %v1246 = vpop.f32.mrf.mxu0
    %v1247 = vadd.f32 %v481, %v1246
    %v1248 = vpop.f32.mrf.mxu0
    %v1249 = vadd.f32 %v485, %v1248
    %v1250 = vpop.f32.mrf.mxu0
    %v1251 = vpop.f32.mrf.mxu0
    %1252 = vdwg.mxu0
    %1253 = vmatprep.subr.bf16.mxu0 %v969
    %1254 = vmatpush1.bf16.msra.mxu0 %v968
    %1255 = vmatprep.subr.bf16.mxu0 %v965
    %1256 = vmatpush1.bf16.msra.mxu0 %v964
    %1257 = vmatprep.subr.bf16.mxu0 %v961
    %1258 = vmatpush1.bf16.msra.mxu0 %v960
    %1259 = vmatprep.subr.bf16.mxu0 %v957
    %1260 = vmatpush1.bf16.msra.mxu0 %v956
    %1261 = vmatprep.subr.bf16.mxu0 %v953
    %1262 = vmatpush1.bf16.msra.mxu0 %v952
    %1263 = vmatprep.subr.bf16.mxu0 %v949
    %1264 = vmatpush1.bf16.msra.mxu0 %v948
    %1265 = vmatprep.subr.bf16.mxu0 %v945
    %1266 = vmatpush1.bf16.msra.mxu0 %v944
    %1267 = vmatprep.subr.bf16.mxu0 %v941
    %1268 = vmatpush1.bf16.msra.mxu0 %v940
    %1269 = vmatprep.subr.bf16.mxu0 %v1001
    %1270 = vmatpush2.bf16.msra.mxu0 %v1000
    %1271 = vmatprep.subr.bf16.mxu0 %v997
    %1272 = vmatpush2.bf16.msra.mxu0 %v996
    %1273 = vmatprep.subr.bf16.mxu0 %v993
    %1274 = vmatpush2.bf16.msra.mxu0 %v992
    %1275 = vmatprep.subr.bf16.mxu0 %v989
    %1276 = vmatpush2.bf16.msra.mxu0 %v988
    %1277 = vmatprep.subr.bf16.mxu0 %v985
    %1278 = vmatpush2.bf16.msra.mxu0 %v984
    %1279 = vmatprep.subr.bf16.mxu0 %v981
    %1280 = vmatpush2.bf16.msra.mxu0 %v980
    %1281 = vmatprep.subr.bf16.mxu0 %v977
    %1282 = vmatpush2.bf16.msra.mxu0 %v976
    %1283 = vmatprep.subr.bf16.mxu0 %v973
    %1284 = vmatpush2.bf16.msra.mxu0 %v972
    %1285 = vmatprep.mubr.bf16.mxu0 %v339
    %1286 = vmatmul.mubr.bf16.gmra.mxu0 %v338
    %v1287 = vpop.f32.mrf.mxu0
    %v1288 = vadd.f32 %v1247, %v1287
    %v1289 = vpop.f32.mrf.mxu0
    %v1290 = vadd.f32 %v1249, %v1289
    %v1291 = vpop.f32.mrf.mxu0
    %v1292 = vpop.f32.mrf.mxu0
    %1293 = vdwg.mxu0
    %v1294 = vmax.f32 %v1206, 0.0
    %v1295 = vmax.f32 %v1208, 0.0
    %v1296 = vmax.f32 %v1288, 0.0
    %v1297 = vmax.f32 %v1290, 0.0
    %v1298 = vpack.c.bf16 %v1294, %v1294
    %v1299 = vpack.c.bf16 %v1295, %v1295
    %v1300 = vpack.c.bf16 %v1296, %v1296
    %v1301 = vpack.c.bf16 %v1297, %v1297
    %v1302 = vld [vmem:[%s5] sm:$0xff]
    %v1303 = vld [vmem:[%s5 + $0x8] sm:$0xff]
    %v1304 = vld [vmem:[%s5 + $0x10] sm:$0xff]
    %v1305 = vld [vmem:[%s5 + $0x18] sm:$0xff]
    %v1306 = vld [vmem:[%s5 + $0x20] sm:$0xff]
    %v1307 = vld [vmem:[%s5 + $0x28] sm:$0xff]
    %v1308 = vld [vmem:[%s5 + $0x30] sm:$0xff]
    %v1309 = vld [vmem:[%s5 + $0x38] sm:$0xff]
    %v1310 = vld [vmem:[%s5 + $0x40] sm:$0xff]
    %v1311 = vld [vmem:[%s5 + $0x48] sm:$0xff]
    %v1312 = vld [vmem:[%s5 + $0x50] sm:$0xff]
    %v1313 = vld [vmem:[%s5 + $0x58] sm:$0xff]
    %v1314 = vld [vmem:[%s5 + $0x60] sm:$0xff]
    %v1315 = vld [vmem:[%s5 + $0x68] sm:$0xff]
    %v1316 = vld [vmem:[%s5 + $0x70] sm:$0xff]
    %v1317 = vld [vmem:[%s5 + $0x78] sm:$0xff]
    %v1318 = vld [vmem:[%s5 + $0x80] sm:$0xff]
    %v1319 = vld [vmem:[%s5 + $0x88] sm:$0xff]
    %v1320 = vld [vmem:[%s5 + $0x90] sm:$0xff]
    %v1321 = vld [vmem:[%s5 + $0x98] sm:$0xff]
    %v1322 = vld [vmem:[%s5 + $0xa0] sm:$0xff]
    %v1323 = vld [vmem:[%s5 + $0xa8] sm:$0xff]
    %v1324 = vld [vmem:[%s5 + $0xb0] sm:$0xff]
    %v1325 = vld [vmem:[%s5 + $0xb8] sm:$0xff]
    %v1326 = vld [vmem:[%s5 + $0xc0] sm:$0xff]
    %v1327 = vld [vmem:[%s5 + $0xc8] sm:$0xff]
    %v1328 = vld [vmem:[%s5 + $0xd0] sm:$0xff]
    %v1329 = vld [vmem:[%s5 + $0xd8] sm:$0xff]
    %v1330 = vld [vmem:[%s5 + $0xe0] sm:$0xff]
    %v1331 = vld [vmem:[%s5 + $0xe8] sm:$0xff]
    %v1332 = vld [vmem:[%s5 + $0xf0] sm:$0xff]
    %v1333 = vld [vmem:[%s5 + $0xf8] sm:$0xff]
    %v1334 = vld [vmem:[%s5 + $0x100] sm:$0xff]
    %v1335 = vld [vmem:[%s5 + $0x108] sm:$0xff]
    %v1336 = vld [vmem:[%s5 + $0x110] sm:$0xff]
    %v1337 = vld [vmem:[%s5 + $0x118] sm:$0xff]
    %v1338 = vld [vmem:[%s5 + $0x120] sm:$0xff]
    %v1339 = vld [vmem:[%s5 + $0x128] sm:$0xff]
    %v1340 = vld [vmem:[%s5 + $0x130] sm:$0xff]
    %v1341 = vld [vmem:[%s5 + $0x138] sm:$0xff]
    %v1342 = vld [vmem:[%s5 + $0x140] sm:$0xff]
    %v1343 = vld [vmem:[%s5 + $0x148] sm:$0xff]
    %v1344 = vld [vmem:[%s5 + $0x150] sm:$0xff]
    %v1345 = vld [vmem:[%s5 + $0x158] sm:$0xff]
    %v1346 = vld [vmem:[%s5 + $0x160] sm:$0xff]
    %v1347 = vld [vmem:[%s5 + $0x168] sm:$0xff]
    %v1348 = vld [vmem:[%s5 + $0x170] sm:$0xff]
    %v1349 = vld [vmem:[%s5 + $0x178] sm:$0xff]
    %v1350 = vld [vmem:[%s5 + $0x180] sm:$0xff]
    %v1351 = vld [vmem:[%s5 + $0x188] sm:$0xff]
    %v1352 = vld [vmem:[%s5 + $0x190] sm:$0xff]
    %v1353 = vld [vmem:[%s5 + $0x198] sm:$0xff]
    %v1354 = vld [vmem:[%s5 + $0x1a0] sm:$0xff]
    %v1355 = vld [vmem:[%s5 + $0x1a8] sm:$0xff]
    %v1356 = vld [vmem:[%s5 + $0x1b0] sm:$0xff]
    %v1357 = vld [vmem:[%s5 + $0x1b8] sm:$0xff]
    %v1358 = vld [vmem:[%s5 + $0x1c0] sm:$0xff]
    %v1359 = vld [vmem:[%s5 + $0x1c8] sm:$0xff]
    %v1360 = vld [vmem:[%s5 + $0x1d0] sm:$0xff]
    %v1361 = vld [vmem:[%s5 + $0x1d8] sm:$0xff]
    %v1362 = vld [vmem:[%s5 + $0x1e0] sm:$0xff]
    %v1363 = vld [vmem:[%s5 + $0x1e8] sm:$0xff]
    %v1364 = vld [vmem:[%s5 + $0x1f0] sm:$0xff]
    %v1365 = vld [vmem:[%s5 + $0x1f8] sm:$0xff]
    %v1366 = vld [vmem:[%s5 + $0x200] sm:$0xff]
    %v1367 = vld [vmem:[%s5 + $0x208] sm:$0xff]
    %v1368 = vld [vmem:[%s5 + $0x210] sm:$0xff]
    %v1369 = vld [vmem:[%s5 + $0x218] sm:$0xff]
    %v1370 = vld [vmem:[%s5 + $0x220] sm:$0xff]
    %v1371 = vld [vmem:[%s5 + $0x228] sm:$0xff]
    %v1372 = vld [vmem:[%s5 + $0x230] sm:$0xff]
    %v1373 = vld [vmem:[%s5 + $0x238] sm:$0xff]
    %v1374 = vld [vmem:[%s5 + $0x240] sm:$0xff]
    %v1375 = vld [vmem:[%s5 + $0x248] sm:$0xff]
    %v1376 = vld [vmem:[%s5 + $0x250] sm:$0xff]
    %v1377 = vld [vmem:[%s5 + $0x258] sm:$0xff]
    %v1378 = vld [vmem:[%s5 + $0x260] sm:$0xff]
    %v1379 = vld [vmem:[%s5 + $0x268] sm:$0xff]
    %v1380 = vld [vmem:[%s5 + $0x270] sm:$0xff]
    %v1381 = vld [vmem:[%s5 + $0x278] sm:$0xff]
    %v1382 = vld [vmem:[%s5 + $0x280] sm:$0xff]
    %v1383 = vld [vmem:[%s5 + $0x288] sm:$0xff]
    %v1384 = vld [vmem:[%s5 + $0x290] sm:$0xff]
    %v1385 = vld [vmem:[%s5 + $0x298] sm:$0xff]
    %v1386 = vld [vmem:[%s5 + $0x2a0] sm:$0xff]
    %v1387 = vld [vmem:[%s5 + $0x2a8] sm:$0xff]
    %v1388 = vld [vmem:[%s5 + $0x2b0] sm:$0xff]
    %v1389 = vld [vmem:[%s5 + $0x2b8] sm:$0xff]
    %v1390 = vld [vmem:[%s5 + $0x2c0] sm:$0xff]
    %v1391 = vld [vmem:[%s5 + $0x2c8] sm:$0xff]
    %v1392 = vld [vmem:[%s5 + $0x2d0] sm:$0xff]
    %v1393 = vld [vmem:[%s5 + $0x2d8] sm:$0xff]
    %v1394 = vld [vmem:[%s5 + $0x2e0] sm:$0xff]
    %v1395 = vld [vmem:[%s5 + $0x2e8] sm:$0xff]
    %v1396 = vld [vmem:[%s5 + $0x2f0] sm:$0xff]
    %v1397 = vld [vmem:[%s5 + $0x2f8] sm:$0xff]
    %v1398 = vld [vmem:[%s5 + $0x300] sm:$0xff]
    %v1399 = vld [vmem:[%s5 + $0x308] sm:$0xff]
    %v1400 = vld [vmem:[%s5 + $0x310] sm:$0xff]
    %v1401 = vld [vmem:[%s5 + $0x318] sm:$0xff]
    %v1402 = vld [vmem:[%s5 + $0x320] sm:$0xff]
    %v1403 = vld [vmem:[%s5 + $0x328] sm:$0xff]
    %v1404 = vld [vmem:[%s5 + $0x330] sm:$0xff]
    %v1405 = vld [vmem:[%s5 + $0x338] sm:$0xff]
    %v1406 = vld [vmem:[%s5 + $0x340] sm:$0xff]
    %v1407 = vld [vmem:[%s5 + $0x348] sm:$0xff]
    %v1408 = vld [vmem:[%s5 + $0x350] sm:$0xff]
    %v1409 = vld [vmem:[%s5 + $0x358] sm:$0xff]
    %v1410 = vld [vmem:[%s5 + $0x360] sm:$0xff]
    %v1411 = vld [vmem:[%s5 + $0x368] sm:$0xff]
    %v1412 = vld [vmem:[%s5 + $0x370] sm:$0xff]
    %v1413 = vld [vmem:[%s5 + $0x378] sm:$0xff]
    %v1414 = vld [vmem:[%s5 + $0x380] sm:$0xff]
    %v1415 = vld [vmem:[%s5 + $0x388] sm:$0xff]
    %v1416 = vld [vmem:[%s5 + $0x390] sm:$0xff]
    %v1417 = vld [vmem:[%s5 + $0x398] sm:$0xff]
    %v1418 = vld [vmem:[%s5 + $0x3a0] sm:$0xff]
    %v1419 = vld [vmem:[%s5 + $0x3a8] sm:$0xff]
    %v1420 = vld [vmem:[%s5 + $0x3b0] sm:$0xff]
    %v1421 = vld [vmem:[%s5 + $0x3b8] sm:$0xff]
    %v1422 = vld [vmem:[%s5 + $0x3c0] sm:$0xff]
    %v1423 = vld [vmem:[%s5 + $0x3c8] sm:$0xff]
    %v1424 = vld [vmem:[%s5 + $0x3d0] sm:$0xff]
    %v1425 = vld [vmem:[%s5 + $0x3d8] sm:$0xff]
    %v1426 = vld [vmem:[%s5 + $0x3e0] sm:$0xff]
    %v1427 = vld [vmem:[%s5 + $0x3e8] sm:$0xff]
    %v1428 = vld [vmem:[%s5 + $0x3f0] sm:$0xff]
    %v1429 = vld [vmem:[%s5 + $0x3f8] sm:$0xff]
    %v1430 = vld [vmem:[%s6] sm:$0xf]
    %v1432 = vlaneseq
    %v1433 = vshrl.u32 %v1432, 7
    %v1434 = vsub.s32 0, %v1433
    %v1435 = vrot.slane %v1430, %v1434
    %v1436 = vlaneseq
    %v1437 = vshrl.u32 %v1436, 7
    %v1438 = vsub.s32 1, %v1437
    %v1439 = vrot.slane %v1430, %v1438
    %v1440 = vlaneseq
    %v1441 = vshrl.u32 %v1440, 7
    %v1442 = vsub.s32 2, %v1441
    %v1443 = vrot.slane %v1430, %v1442
    %v1444 = vlaneseq
    %v1445 = vshrl.u32 %v1444, 7
    %v1446 = vsub.s32 3, %v1445
    %v1447 = vrot.slane %v1430, %v1446
    %v1580 = vunpack.c.l.b16 %v1302
    %v1581 = vunpack.c.h.b16 %v1302
    %v1582 = vunpack.c.l.b16 %v1303
    %v1583 = vunpack.c.h.b16 %v1303
    %v1584 = vunpack.c.l.b16 %v1304
    %v1585 = vunpack.c.h.b16 %v1304
    %v1586 = vunpack.c.l.b16 %v1305
    %v1587 = vunpack.c.h.b16 %v1305
    %v1588 = vunpack.c.l.b16 %v1306
    %v1589 = vunpack.c.h.b16 %v1306
    %v1590 = vunpack.c.l.b16 %v1307
    %v1591 = vunpack.c.h.b16 %v1307
    %v1592 = vunpack.c.l.b16 %v1308
    %v1593 = vunpack.c.h.b16 %v1308
    %v1594 = vunpack.c.l.b16 %v1309
    %v1595 = vunpack.c.h.b16 %v1309
    %v1596 = vunpack.c.l.b16 %v1310
    %v1597 = vunpack.c.h.b16 %v1310
    %v1598 = vunpack.c.l.b16 %v1311
    %v1599 = vunpack.c.h.b16 %v1311
    %v1600 = vunpack.c.l.b16 %v1312
    %v1601 = vunpack.c.h.b16 %v1312
    %v1602 = vunpack.c.l.b16 %v1313
    %v1603 = vunpack.c.h.b16 %v1313
    %v1604 = vunpack.c.l.b16 %v1314
    %v1605 = vunpack.c.h.b16 %v1314
    %v1606 = vunpack.c.l.b16 %v1315
    %v1607 = vunpack.c.h.b16 %v1315
    %v1608 = vunpack.c.l.b16 %v1316
    %v1609 = vunpack.c.h.b16 %v1316
    %v1610 = vunpack.c.l.b16 %v1317
    %v1611 = vunpack.c.h.b16 %v1317
    %v1612 = vunpack.c.l.b16 %v1318
    %v1613 = vunpack.c.h.b16 %v1318
    %v1614 = vunpack.c.l.b16 %v1319
    %v1615 = vunpack.c.h.b16 %v1319
    %v1616 = vunpack.c.l.b16 %v1320
    %v1617 = vunpack.c.h.b16 %v1320
    %v1618 = vunpack.c.l.b16 %v1321
    %v1619 = vunpack.c.h.b16 %v1321
    %v1620 = vunpack.c.l.b16 %v1322
    %v1621 = vunpack.c.h.b16 %v1322
    %v1622 = vunpack.c.l.b16 %v1323
    %v1623 = vunpack.c.h.b16 %v1323
    %v1624 = vunpack.c.l.b16 %v1324
    %v1625 = vunpack.c.h.b16 %v1324
    %v1626 = vunpack.c.l.b16 %v1325
    %v1627 = vunpack.c.h.b16 %v1325
    %v1628 = vunpack.c.l.b16 %v1326
    %v1629 = vunpack.c.h.b16 %v1326
    %v1630 = vunpack.c.l.b16 %v1327
    %v1631 = vunpack.c.h.b16 %v1327
    %v1632 = vunpack.c.l.b16 %v1328
    %v1633 = vunpack.c.h.b16 %v1328
    %v1634 = vunpack.c.l.b16 %v1329
    %v1635 = vunpack.c.h.b16 %v1329
    %v1636 = vunpack.c.l.b16 %v1330
    %v1637 = vunpack.c.h.b16 %v1330
    %v1638 = vunpack.c.l.b16 %v1331
    %v1639 = vunpack.c.h.b16 %v1331
    %v1640 = vunpack.c.l.b16 %v1332
    %v1641 = vunpack.c.h.b16 %v1332
    %v1642 = vunpack.c.l.b16 %v1333
    %v1643 = vunpack.c.h.b16 %v1333
    %v1644 = vunpack.c.l.b16 %v1334
    %v1645 = vunpack.c.h.b16 %v1334
    %v1646 = vunpack.c.l.b16 %v1335
    %v1647 = vunpack.c.h.b16 %v1335
    %v1648 = vunpack.c.l.b16 %v1336
    %v1649 = vunpack.c.h.b16 %v1336
    %v1650 = vunpack.c.l.b16 %v1337
    %v1651 = vunpack.c.h.b16 %v1337
    %v1652 = vunpack.c.l.b16 %v1338
    %v1653 = vunpack.c.h.b16 %v1338
    %v1654 = vunpack.c.l.b16 %v1339
    %v1655 = vunpack.c.h.b16 %v1339
    %v1656 = vunpack.c.l.b16 %v1340
    %v1657 = vunpack.c.h.b16 %v1340
    %v1658 = vunpack.c.l.b16 %v1341
    %v1659 = vunpack.c.h.b16 %v1341
    %v1660 = vunpack.c.l.b16 %v1342
    %v1661 = vunpack.c.h.b16 %v1342
    %v1662 = vunpack.c.l.b16 %v1343
    %v1663 = vunpack.c.h.b16 %v1343
    %v1664 = vunpack.c.l.b16 %v1344
    %v1665 = vunpack.c.h.b16 %v1344
    %v1666 = vunpack.c.l.b16 %v1345
    %v1667 = vunpack.c.h.b16 %v1345
    %v1668 = vunpack.c.l.b16 %v1346
    %v1669 = vunpack.c.h.b16 %v1346
    %v1670 = vunpack.c.l.b16 %v1347
    %v1671 = vunpack.c.h.b16 %v1347
    %v1672 = vunpack.c.l.b16 %v1348
    %v1673 = vunpack.c.h.b16 %v1348
    %v1674 = vunpack.c.l.b16 %v1349
    %v1675 = vunpack.c.h.b16 %v1349
    %v1676 = vunpack.c.l.b16 %v1350
    %v1677 = vunpack.c.h.b16 %v1350
    %v1678 = vunpack.c.l.b16 %v1351
    %v1679 = vunpack.c.h.b16 %v1351
    %v1680 = vunpack.c.l.b16 %v1352
    %v1681 = vunpack.c.h.b16 %v1352
    %v1682 = vunpack.c.l.b16 %v1353
    %v1683 = vunpack.c.h.b16 %v1353
    %v1684 = vunpack.c.l.b16 %v1354
    %v1685 = vunpack.c.h.b16 %v1354
    %v1686 = vunpack.c.l.b16 %v1355
    %v1687 = vunpack.c.h.b16 %v1355
    %v1688 = vunpack.c.l.b16 %v1356
    %v1689 = vunpack.c.h.b16 %v1356
    %v1690 = vunpack.c.l.b16 %v1357
    %v1691 = vunpack.c.h.b16 %v1357
    %v1692 = vunpack.c.l.b16 %v1358
    %v1693 = vunpack.c.h.b16 %v1358
    %v1694 = vunpack.c.l.b16 %v1359
    %v1695 = vunpack.c.h.b16 %v1359
    %v1696 = vunpack.c.l.b16 %v1360
    %v1697 = vunpack.c.h.b16 %v1360
    %v1698 = vunpack.c.l.b16 %v1361
    %v1699 = vunpack.c.h.b16 %v1361
    %v1700 = vunpack.c.l.b16 %v1362
    %v1701 = vunpack.c.h.b16 %v1362
    %v1702 = vunpack.c.l.b16 %v1363
    %v1703 = vunpack.c.h.b16 %v1363
    %v1704 = vunpack.c.l.b16 %v1364
    %v1705 = vunpack.c.h.b16 %v1364
    %v1706 = vunpack.c.l.b16 %v1365
    %v1707 = vunpack.c.h.b16 %v1365
    %v1708 = vunpack.c.l.b16 %v1366
    %v1709 = vunpack.c.h.b16 %v1366
    %v1710 = vunpack.c.l.b16 %v1367
    %v1711 = vunpack.c.h.b16 %v1367
    %v1712 = vunpack.c.l.b16 %v1368
    %v1713 = vunpack.c.h.b16 %v1368
    %v1714 = vunpack.c.l.b16 %v1369
    %v1715 = vunpack.c.h.b16 %v1369
    %v1716 = vunpack.c.l.b16 %v1370
    %v1717 = vunpack.c.h.b16 %v1370
    %v1718 = vunpack.c.l.b16 %v1371
    %v1719 = vunpack.c.h.b16 %v1371
    %v1720 = vunpack.c.l.b16 %v1372
    %v1721 = vunpack.c.h.b16 %v1372
    %v1722 = vunpack.c.l.b16 %v1373
    %v1723 = vunpack.c.h.b16 %v1373
    %v1724 = vunpack.c.l.b16 %v1374
    %v1725 = vunpack.c.h.b16 %v1374
    %v1726 = vunpack.c.l.b16 %v1375
    %v1727 = vunpack.c.h.b16 %v1375
    %v1728 = vunpack.c.l.b16 %v1376
    %v1729 = vunpack.c.h.b16 %v1376
    %v1730 = vunpack.c.l.b16 %v1377
    %v1731 = vunpack.c.h.b16 %v1377
    %v1732 = vunpack.c.l.b16 %v1378
    %v1733 = vunpack.c.h.b16 %v1378
    %v1734 = vunpack.c.l.b16 %v1379
    %v1735 = vunpack.c.h.b16 %v1379
    %v1736 = vunpack.c.l.b16 %v1380
    %v1737 = vunpack.c.h.b16 %v1380
    %v1738 = vunpack.c.l.b16 %v1381
    %v1739 = vunpack.c.h.b16 %v1381
    %v1740 = vunpack.c.l.b16 %v1382
    %v1741 = vunpack.c.h.b16 %v1382
    %v1742 = vunpack.c.l.b16 %v1383
    %v1743 = vunpack.c.h.b16 %v1383
    %v1744 = vunpack.c.l.b16 %v1384
    %v1745 = vunpack.c.h.b16 %v1384
    %v1746 = vunpack.c.l.b16 %v1385
    %v1747 = vunpack.c.h.b16 %v1385
    %v1748 = vunpack.c.l.b16 %v1386
    %v1749 = vunpack.c.h.b16 %v1386
    %v1750 = vunpack.c.l.b16 %v1387
    %v1751 = vunpack.c.h.b16 %v1387
    %v1752 = vunpack.c.l.b16 %v1388
    %v1753 = vunpack.c.h.b16 %v1388
    %v1754 = vunpack.c.l.b16 %v1389
    %v1755 = vunpack.c.h.b16 %v1389
    %v1756 = vunpack.c.l.b16 %v1390
    %v1757 = vunpack.c.h.b16 %v1390
    %v1758 = vunpack.c.l.b16 %v1391
    %v1759 = vunpack.c.h.b16 %v1391
    %v1760 = vunpack.c.l.b16 %v1392
    %v1761 = vunpack.c.h.b16 %v1392
    %v1762 = vunpack.c.l.b16 %v1393
    %v1763 = vunpack.c.h.b16 %v1393
    %v1764 = vunpack.c.l.b16 %v1394
    %v1765 = vunpack.c.h.b16 %v1394
    %v1766 = vunpack.c.l.b16 %v1395
    %v1767 = vunpack.c.h.b16 %v1395
    %v1768 = vunpack.c.l.b16 %v1396
    %v1769 = vunpack.c.h.b16 %v1396
    %v1770 = vunpack.c.l.b16 %v1397
    %v1771 = vunpack.c.h.b16 %v1397
    %v1772 = vunpack.c.l.b16 %v1398
    %v1773 = vunpack.c.h.b16 %v1398
    %v1774 = vunpack.c.l.b16 %v1399
    %v1775 = vunpack.c.h.b16 %v1399
    %v1776 = vunpack.c.l.b16 %v1400
    %v1777 = vunpack.c.h.b16 %v1400
    %v1778 = vunpack.c.l.b16 %v1401
    %v1779 = vunpack.c.h.b16 %v1401
    %v1780 = vunpack.c.l.b16 %v1402
    %v1781 = vunpack.c.h.b16 %v1402
    %v1782 = vunpack.c.l.b16 %v1403
    %v1783 = vunpack.c.h.b16 %v1403
    %v1784 = vunpack.c.l.b16 %v1404
    %v1785 = vunpack.c.h.b16 %v1404
    %v1786 = vunpack.c.l.b16 %v1405
    %v1787 = vunpack.c.h.b16 %v1405
    %v1788 = vunpack.c.l.b16 %v1406
    %v1789 = vunpack.c.h.b16 %v1406
    %v1790 = vunpack.c.l.b16 %v1407
    %v1791 = vunpack.c.h.b16 %v1407
    %v1792 = vunpack.c.l.b16 %v1408
    %v1793 = vunpack.c.h.b16 %v1408
    %v1794 = vunpack.c.l.b16 %v1409
    %v1795 = vunpack.c.h.b16 %v1409
    %v1796 = vunpack.c.l.b16 %v1410
    %v1797 = vunpack.c.h.b16 %v1410
    %v1798 = vunpack.c.l.b16 %v1411
    %v1799 = vunpack.c.h.b16 %v1411
    %v1800 = vunpack.c.l.b16 %v1412
    %v1801 = vunpack.c.h.b16 %v1412
    %v1802 = vunpack.c.l.b16 %v1413
    %v1803 = vunpack.c.h.b16 %v1413
    %v1804 = vunpack.c.l.b16 %v1414
    %v1805 = vunpack.c.h.b16 %v1414
    %v1806 = vunpack.c.l.b16 %v1415
    %v1807 = vunpack.c.h.b16 %v1415
    %v1808 = vunpack.c.l.b16 %v1416
    %v1809 = vunpack.c.h.b16 %v1416
    %v1810 = vunpack.c.l.b16 %v1417
    %v1811 = vunpack.c.h.b16 %v1417
    %v1812 = vunpack.c.l.b16 %v1418
    %v1813 = vunpack.c.h.b16 %v1418
    %v1814 = vunpack.c.l.b16 %v1419
    %v1815 = vunpack.c.h.b16 %v1419
    %v1816 = vunpack.c.l.b16 %v1420
    %v1817 = vunpack.c.h.b16 %v1420
    %v1818 = vunpack.c.l.b16 %v1421
    %v1819 = vunpack.c.h.b16 %v1421
    %v1820 = vunpack.c.l.b16 %v1422
    %v1821 = vunpack.c.h.b16 %v1422
    %v1822 = vunpack.c.l.b16 %v1423
    %v1823 = vunpack.c.h.b16 %v1423
    %v1824 = vunpack.c.l.b16 %v1424
    %v1825 = vunpack.c.h.b16 %v1424
    %v1826 = vunpack.c.l.b16 %v1425
    %v1827 = vunpack.c.h.b16 %v1425
    %v1828 = vunpack.c.l.b16 %v1426
    %v1829 = vunpack.c.h.b16 %v1426
    %v1830 = vunpack.c.l.b16 %v1427
    %v1831 = vunpack.c.h.b16 %v1427
    %v1832 = vunpack.c.l.b16 %v1428
    %v1833 = vunpack.c.h.b16 %v1428
    %v1834 = vunpack.c.l.b16 %v1429
    %v1835 = vunpack.c.h.b16 %v1429
    %v1836 = vpack.c.b16 %v1584, %v1580
    %v1837 = vpack.c.b16 %v1585, %v1581
    %v1838 = vpack.c.b16 %v1586, %v1582
    %v1839 = vpack.c.b16 %v1587, %v1583
    %v1840 = vpack.c.b16 %v1592, %v1588
    %v1841 = vpack.c.b16 %v1593, %v1589
    %v1842 = vpack.c.b16 %v1594, %v1590
    %v1843 = vpack.c.b16 %v1595, %v1591
    %v1844 = vpack.c.b16 %v1600, %v1596
    %v1845 = vpack.c.b16 %v1601, %v1597
    %v1846 = vpack.c.b16 %v1602, %v1598
    %v1847 = vpack.c.b16 %v1603, %v1599
    %v1848 = vpack.c.b16 %v1608, %v1604
    %v1849 = vpack.c.b16 %v1609, %v1605
    %v1850 = vpack.c.b16 %v1610, %v1606
    %v1851 = vpack.c.b16 %v1611, %v1607
    %v1852 = vpack.c.b16 %v1616, %v1612
    %v1853 = vpack.c.b16 %v1617, %v1613
    %v1854 = vpack.c.b16 %v1618, %v1614
    %v1855 = vpack.c.b16 %v1619, %v1615
    %v1856 = vpack.c.b16 %v1624, %v1620
    %v1857 = vpack.c.b16 %v1625, %v1621
    %v1858 = vpack.c.b16 %v1626, %v1622
    %v1859 = vpack.c.b16 %v1627, %v1623
    %v1860 = vpack.c.b16 %v1632, %v1628
    %v1861 = vpack.c.b16 %v1633, %v1629
    %v1862 = vpack.c.b16 %v1634, %v1630
    %v1863 = vpack.c.b16 %v1635, %v1631
    %v1864 = vpack.c.b16 %v1640, %v1636
    %v1865 = vpack.c.b16 %v1641, %v1637
    %v1866 = vpack.c.b16 %v1642, %v1638
    %v1867 = vpack.c.b16 %v1643, %v1639
    %v1868 = vpack.c.b16 %v1648, %v1644
    %v1869 = vpack.c.b16 %v1649, %v1645
    %v1870 = vpack.c.b16 %v1650, %v1646
    %v1871 = vpack.c.b16 %v1651, %v1647
    %v1872 = vpack.c.b16 %v1656, %v1652
    %v1873 = vpack.c.b16 %v1657, %v1653
    %v1874 = vpack.c.b16 %v1658, %v1654
    %v1875 = vpack.c.b16 %v1659, %v1655
    %v1876 = vpack.c.b16 %v1664, %v1660
    %v1877 = vpack.c.b16 %v1665, %v1661
    %v1878 = vpack.c.b16 %v1666, %v1662
    %v1879 = vpack.c.b16 %v1667, %v1663
    %v1880 = vpack.c.b16 %v1672, %v1668
    %v1881 = vpack.c.b16 %v1673, %v1669
    %v1882 = vpack.c.b16 %v1674, %v1670
    %v1883 = vpack.c.b16 %v1675, %v1671
    %v1884 = vpack.c.b16 %v1680, %v1676
    %v1885 = vpack.c.b16 %v1681, %v1677
    %v1886 = vpack.c.b16 %v1682, %v1678
    %v1887 = vpack.c.b16 %v1683, %v1679
    %v1888 = vpack.c.b16 %v1688, %v1684
    %v1889 = vpack.c.b16 %v1689, %v1685
    %v1890 = vpack.c.b16 %v1690, %v1686
    %v1891 = vpack.c.b16 %v1691, %v1687
    %v1892 = vpack.c.b16 %v1696, %v1692
    %v1893 = vpack.c.b16 %v1697, %v1693
    %v1894 = vpack.c.b16 %v1698, %v1694
    %v1895 = vpack.c.b16 %v1699, %v1695
    %v1896 = vpack.c.b16 %v1704, %v1700
    %v1897 = vpack.c.b16 %v1705, %v1701
    %v1898 = vpack.c.b16 %v1706, %v1702
    %v1899 = vpack.c.b16 %v1707, %v1703
    %v1900 = vpack.c.b16 %v1712, %v1708
    %v1901 = vpack.c.b16 %v1713, %v1709
    %v1902 = vpack.c.b16 %v1714, %v1710
    %v1903 = vpack.c.b16 %v1715, %v1711
    %v1904 = vpack.c.b16 %v1720, %v1716
    %v1905 = vpack.c.b16 %v1721, %v1717
    %v1906 = vpack.c.b16 %v1722, %v1718
    %v1907 = vpack.c.b16 %v1723, %v1719
    %v1908 = vpack.c.b16 %v1728, %v1724
    %v1909 = vpack.c.b16 %v1729, %v1725
    %v1910 = vpack.c.b16 %v1730, %v1726
    %v1911 = vpack.c.b16 %v1731, %v1727
    %v1912 = vpack.c.b16 %v1736, %v1732
    %v1913 = vpack.c.b16 %v1737, %v1733
    %v1914 = vpack.c.b16 %v1738, %v1734
    %v1915 = vpack.c.b16 %v1739, %v1735
    %v1916 = vpack.c.b16 %v1744, %v1740
    %v1917 = vpack.c.b16 %v1745, %v1741
    %v1918 = vpack.c.b16 %v1746, %v1742
    %v1919 = vpack.c.b16 %v1747, %v1743
    %v1920 = vpack.c.b16 %v1752, %v1748
    %v1921 = vpack.c.b16 %v1753, %v1749
    %v1922 = vpack.c.b16 %v1754, %v1750
    %v1923 = vpack.c.b16 %v1755, %v1751
    %v1924 = vpack.c.b16 %v1760, %v1756
    %v1925 = vpack.c.b16 %v1761, %v1757
    %v1926 = vpack.c.b16 %v1762, %v1758
    %v1927 = vpack.c.b16 %v1763, %v1759
    %v1928 = vpack.c.b16 %v1768, %v1764
    %v1929 = vpack.c.b16 %v1769, %v1765
    %v1930 = vpack.c.b16 %v1770, %v1766
    %v1931 = vpack.c.b16 %v1771, %v1767
    %v1932 = vpack.c.b16 %v1776, %v1772
    %v1933 = vpack.c.b16 %v1777, %v1773
    %v1934 = vpack.c.b16 %v1778, %v1774
    %v1935 = vpack.c.b16 %v1779, %v1775
    %v1936 = vpack.c.b16 %v1784, %v1780
    %v1937 = vpack.c.b16 %v1785, %v1781
    %v1938 = vpack.c.b16 %v1786, %v1782
    %v1939 = vpack.c.b16 %v1787, %v1783
    %v1940 = vpack.c.b16 %v1792, %v1788
    %v1941 = vpack.c.b16 %v1793, %v1789
    %v1942 = vpack.c.b16 %v1794, %v1790
    %v1943 = vpack.c.b16 %v1795, %v1791
    %v1944 = vpack.c.b16 %v1800, %v1796
    %v1945 = vpack.c.b16 %v1801, %v1797
    %v1946 = vpack.c.b16 %v1802, %v1798
    %v1947 = vpack.c.b16 %v1803, %v1799
    %v1948 = vpack.c.b16 %v1808, %v1804
    %v1949 = vpack.c.b16 %v1809, %v1805
    %v1950 = vpack.c.b16 %v1810, %v1806
    %v1951 = vpack.c.b16 %v1811, %v1807
    %v1952 = vpack.c.b16 %v1816, %v1812
    %v1953 = vpack.c.b16 %v1817, %v1813
    %v1954 = vpack.c.b16 %v1818, %v1814
    %v1955 = vpack.c.b16 %v1819, %v1815
    %v1956 = vpack.c.b16 %v1824, %v1820
    %v1957 = vpack.c.b16 %v1825, %v1821
    %v1958 = vpack.c.b16 %v1826, %v1822
    %v1959 = vpack.c.b16 %v1827, %v1823
    %v1960 = vpack.c.b16 %v1832, %v1828
    %v1961 = vpack.c.b16 %v1833, %v1829
    %v1962 = vpack.c.b16 %v1834, %v1830
    %v1963 = vpack.c.b16 %v1835, %v1831
    %2092 = vmatprep.subr.bf16.mxu0 %v1865
    %2093 = vmatpush1.bf16.msra.mxu0 %v1864
    %2094 = vmatprep.subr.bf16.mxu0 %v1861
    %2095 = vmatpush1.bf16.msra.mxu0 %v1860
    %2096 = vmatprep.subr.bf16.mxu0 %v1857
    %2097 = vmatpush1.bf16.msra.mxu0 %v1856
    %2098 = vmatprep.subr.bf16.mxu0 %v1853
    %2099 = vmatpush1.bf16.msra.mxu0 %v1852
    %2100 = vmatprep.subr.bf16.mxu0 %v1849
    %2101 = vmatpush1.bf16.msra.mxu0 %v1848
    %2102 = vmatprep.subr.bf16.mxu0 %v1845
    %2103 = vmatpush1.bf16.msra.mxu0 %v1844
    %2104 = vmatprep.subr.bf16.mxu0 %v1841
    %2105 = vmatpush1.bf16.msra.mxu0 %v1840
    %2106 = vmatprep.subr.bf16.mxu0 %v1837
    %2107 = vmatpush1.bf16.msra.mxu0 %v1836
    %2108 = vmatprep.subr.bf16.mxu0 %v1897
    %2109 = vmatpush2.bf16.msra.mxu0 %v1896
    %2110 = vmatprep.subr.bf16.mxu0 %v1893
    %2111 = vmatpush2.bf16.msra.mxu0 %v1892
    %2112 = vmatprep.subr.bf16.mxu0 %v1889
    %2113 = vmatpush2.bf16.msra.mxu0 %v1888
    %2114 = vmatprep.subr.bf16.mxu0 %v1885
    %2115 = vmatpush2.bf16.msra.mxu0 %v1884
    %2116 = vmatprep.subr.bf16.mxu0 %v1881
    %2117 = vmatpush2.bf16.msra.mxu0 %v1880
    %2118 = vmatprep.subr.bf16.mxu0 %v1877
    %2119 = vmatpush2.bf16.msra.mxu0 %v1876
    %2120 = vmatprep.subr.bf16.mxu0 %v1873
    %2121 = vmatpush2.bf16.msra.mxu0 %v1872
    %2122 = vmatprep.subr.bf16.mxu0 %v1869
    %2123 = vmatpush2.bf16.msra.mxu0 %v1868
    %2124 = vmatprep.mubr.bf16.mxu0 %v1299
    %2125 = vmatmul.mubr.bf16.gmra.mxu0 %v1298
    %v2126 = vpop.f32.mrf.mxu0
    %v2127 = vadd.f32 %v1435, %v2126
    %v2128 = vpop.f32.mrf.mxu0
    %v2129 = vadd.f32 %v1439, %v2128
    %v2130 = vpop.f32.mrf.mxu0
    %v2131 = vpop.f32.mrf.mxu0
    %2132 = vdwg.mxu0
    %2133 = vmatprep.subr.bf16.mxu0 %v1929
    %2134 = vmatpush1.bf16.msra.mxu0 %v1928
    %2135 = vmatprep.subr.bf16.mxu0 %v1925
    %2136 = vmatpush1.bf16.msra.mxu0 %v1924
    %2137 = vmatprep.subr.bf16.mxu0 %v1921
    %2138 = vmatpush1.bf16.msra.mxu0 %v1920
    %2139 = vmatprep.subr.bf16.mxu0 %v1917
    %2140 = vmatpush1.bf16.msra.mxu0 %v1916
    %2141 = vmatprep.subr.bf16.mxu0 %v1913
    %2142 = vmatpush1.bf16.msra.mxu0 %v1912
    %2143 = vmatprep.subr.bf16.mxu0 %v1909
    %2144 = vmatpush1.bf16.msra.mxu0 %v1908
    %2145 = vmatprep.subr.bf16.mxu0 %v1905
    %2146 = vmatpush1.bf16.msra.mxu0 %v1904
    %2147 = vmatprep.subr.bf16.mxu0 %v1901
    %2148 = vmatpush1.bf16.msra.mxu0 %v1900
    %2149 = vmatprep.subr.bf16.mxu0 %v1961
    %2150 = vmatpush2.bf16.msra.mxu0 %v1960
    %2151 = vmatprep.subr.bf16.mxu0 %v1957
    %2152 = vmatpush2.bf16.msra.mxu0 %v1956
    %2153 = vmatprep.subr.bf16.mxu0 %v1953
    %2154 = vmatpush2.bf16.msra.mxu0 %v1952
    %2155 = vmatprep.subr.bf16.mxu0 %v1949
    %2156 = vmatpush2.bf16.msra.mxu0 %v1948
    %2157 = vmatprep.subr.bf16.mxu0 %v1945
    %2158 = vmatpush2.bf16.msra.mxu0 %v1944
    %2159 = vmatprep.subr.bf16.mxu0 %v1941
    %2160 = vmatpush2.bf16.msra.mxu0 %v1940
    %2161 = vmatprep.subr.bf16.mxu0 %v1937
    %2162 = vmatpush2.bf16.msra.mxu0 %v1936
    %2163 = vmatprep.subr.bf16.mxu0 %v1933
    %2164 = vmatpush2.bf16.msra.mxu0 %v1932
    %2165 = vmatprep.mubr.bf16.mxu0 %v1301
    %2166 = vmatmul.mubr.bf16.gmra.mxu0 %v1300
    %v2167 = vpop.f32.mrf.mxu0
    %v2168 = vadd.f32 %v2127, %v2167
    %v2169 = vpop.f32.mrf.mxu0
    %v2170 = vadd.f32 %v2129, %v2169
    %v2171 = vpop.f32.mrf.mxu0
    %v2172 = vpop.f32.mrf.mxu0
    %2173 = vdwg.mxu0
    %2174 = vmatprep.subr.bf16.mxu0 %v1867
    %2175 = vmatpush1.bf16.msra.mxu0 %v1866
    %2176 = vmatprep.subr.bf16.mxu0 %v1863
    %2177 = vmatpush1.bf16.msra.mxu0 %v1862
    %2178 = vmatprep.subr.bf16.mxu0 %v1859
    %2179 = vmatpush1.bf16.msra.mxu0 %v1858
    %2180 = vmatprep.subr.bf16.mxu0 %v1855
    %2181 = vmatpush1.bf16.msra.mxu0 %v1854
    %2182 = vmatprep.subr.bf16.mxu0 %v1851
    %2183 = vmatpush1.bf16.msra.mxu0 %v1850
    %2184 = vmatprep.subr.bf16.mxu0 %v1847
    %2185 = vmatpush1.bf16.msra.mxu0 %v1846
    %2186 = vmatprep.subr.bf16.mxu0 %v1843
    %2187 = vmatpush1.bf16.msra.mxu0 %v1842
    %2188 = vmatprep.subr.bf16.mxu0 %v1839
    %2189 = vmatpush1.bf16.msra.mxu0 %v1838
    %2190 = vmatprep.subr.bf16.mxu0 %v1899
    %2191 = vmatpush2.bf16.msra.mxu0 %v1898
    %2192 = vmatprep.subr.bf16.mxu0 %v1895
    %2193 = vmatpush2.bf16.msra.mxu0 %v1894
    %2194 = vmatprep.subr.bf16.mxu0 %v1891
    %2195 = vmatpush2.bf16.msra.mxu0 %v1890
    %2196 = vmatprep.subr.bf16.mxu0 %v1887
    %2197 = vmatpush2.bf16.msra.mxu0 %v1886
    %2198 = vmatprep.subr.bf16.mxu0 %v1883
    %2199 = vmatpush2.bf16.msra.mxu0 %v1882
    %2200 = vmatprep.subr.bf16.mxu0 %v1879
    %2201 = vmatpush2.bf16.msra.mxu0 %v1878
    %2202 = vmatprep.subr.bf16.mxu0 %v1875
    %2203 = vmatpush2.bf16.msra.mxu0 %v1874
    %2204 = vmatprep.subr.bf16.mxu0 %v1871
    %2205 = vmatpush2.bf16.msra.mxu0 %v1870
    %2206 = vmatprep.mubr.bf16.mxu0 %v1299
    %2207 = vmatmul.mubr.bf16.gmra.mxu0 %v1298
    %v2208 = vpop.f32.mrf.mxu0
    %v2209 = vadd.f32 %v1443, %v2208
    %v2210 = vpop.f32.mrf.mxu0
    %v2211 = vadd.f32 %v1447, %v2210
    %v2212 = vpop.f32.mrf.mxu0
    %v2213 = vpop.f32.mrf.mxu0
    %2214 = vdwg.mxu0
    %2215 = vmatprep.subr.bf16.mxu0 %v1931
    %2216 = vmatpush1.bf16.msra.mxu0 %v1930
    %2217 = vmatprep.subr.bf16.mxu0 %v1927
    %2218 = vmatpush1.bf16.msra.mxu0 %v1926
    %2219 = vmatprep.subr.bf16.mxu0 %v1923
    %2220 = vmatpush1.bf16.msra.mxu0 %v1922
    %2221 = vmatprep.subr.bf16.mxu0 %v1919
    %2222 = vmatpush1.bf16.msra.mxu0 %v1918
    %2223 = vmatprep.subr.bf16.mxu0 %v1915
    %2224 = vmatpush1.bf16.msra.mxu0 %v1914
    %2225 = vmatprep.subr.bf16.mxu0 %v1911
    %2226 = vmatpush1.bf16.msra.mxu0 %v1910
    %2227 = vmatprep.subr.bf16.mxu0 %v1907
    %2228 = vmatpush1.bf16.msra.mxu0 %v1906
    %2229 = vmatprep.subr.bf16.mxu0 %v1903
    %2230 = vmatpush1.bf16.msra.mxu0 %v1902
    %2231 = vmatprep.subr.bf16.mxu0 %v1963
    %2232 = vmatpush2.bf16.msra.mxu0 %v1962
    %2233 = vmatprep.subr.bf16.mxu0 %v1959
    %2234 = vmatpush2.bf16.msra.mxu0 %v1958
    %2235 = vmatprep.subr.bf16.mxu0 %v1955
    %2236 = vmatpush2.bf16.msra.mxu0 %v1954
    %2237 = vmatprep.subr.bf16.mxu0 %v1951
    %2238 = vmatpush2.bf16.msra.mxu0 %v1950
    %2239 = vmatprep.subr.bf16.mxu0 %v1947
    %2240 = vmatpush2.bf16.msra.mxu0 %v1946
    %2241 = vmatprep.subr.bf16.mxu0 %v1943
    %2242 = vmatpush2.bf16.msra.mxu0 %v1942
    %2243 = vmatprep.subr.bf16.mxu0 %v1939
    %2244 = vmatpush2.bf16.msra.mxu0 %v1938
    %2245 = vmatprep.subr.bf16.mxu0 %v1935
    %2246 = vmatpush2.bf16.msra.mxu0 %v1934
    %2247 = vmatprep.mubr.bf16.mxu0 %v1301
    %2248 = vmatmul.mubr.bf16.gmra.mxu0 %v1300
    %v2249 = vpop.f32.mrf.mxu0
    %v2250 = vadd.f32 %v2209, %v2249
    %v2251 = vpop.f32.mrf.mxu0
    %v2252 = vadd.f32 %v2211, %v2251
    %v2253 = vpop.f32.mrf.mxu0
    %v2254 = vpop.f32.mrf.mxu0
    %2255 = vdwg.mxu0
    %v2256 = vmax.f32 %v2168, 0.0
    %v2257 = vmax.f32 %v2170, 0.0
    %v2258 = vmax.f32 %v2250, 0.0
    %v2259 = vmax.f32 %v2252, 0.0
    %v2260 = vpack.c.bf16 %v2256, %v2256
    %v2261 = vpack.c.bf16 %v2257, %v2257
    %v2262 = vpack.c.bf16 %v2258, %v2258
    %v2263 = vpack.c.bf16 %v2259, %v2259
    %v2264 = vld [vmem:[%s7] sm:$0xf]
    %v2265 = vld [vmem:[%s7 + $0x4] sm:$0xf]
    %v2266 = vld [vmem:[%s7 + $0x8] sm:$0xf]
    %v2267 = vld [vmem:[%s7 + $0xc] sm:$0xf]
    %v2268 = vld [vmem:[%s7 + $0x10] sm:$0xf]
    %v2269 = vld [vmem:[%s7 + $0x14] sm:$0xf]
    %v2270 = vld [vmem:[%s7 + $0x18] sm:$0xf]
    %v2271 = vld [vmem:[%s7 + $0x1c] sm:$0xf]
    %v2272 = vld [vmem:[%s7 + $0x20] sm:$0xf]
    %v2273 = vld [vmem:[%s7 + $0x24] sm:$0xf]
    %v2274 = vld [vmem:[%s7 + $0x28] sm:$0xf]
    %v2275 = vld [vmem:[%s7 + $0x2c] sm:$0xf]
    %v2276 = vld [vmem:[%s7 + $0x30] sm:$0xf]
    %v2277 = vld [vmem:[%s7 + $0x34] sm:$0xf]
    %v2278 = vld [vmem:[%s7 + $0x38] sm:$0xf]
    %v2279 = vld [vmem:[%s7 + $0x3c] sm:$0xf]
    %v2280 = vld [vmem:[%s7 + $0x40] sm:$0xf]
    %v2281 = vld [vmem:[%s7 + $0x44] sm:$0xf]
    %v2282 = vld [vmem:[%s7 + $0x48] sm:$0xf]
    %v2283 = vld [vmem:[%s7 + $0x4c] sm:$0xf]
    %v2284 = vld [vmem:[%s7 + $0x50] sm:$0xf]
    %v2285 = vld [vmem:[%s7 + $0x54] sm:$0xf]
    %v2286 = vld [vmem:[%s7 + $0x58] sm:$0xf]
    %v2287 = vld [vmem:[%s7 + $0x5c] sm:$0xf]
    %v2288 = vld [vmem:[%s7 + $0x60] sm:$0xf]
    %v2289 = vld [vmem:[%s7 + $0x64] sm:$0xf]
    %v2290 = vld [vmem:[%s7 + $0x68] sm:$0xf]
    %v2291 = vld [vmem:[%s7 + $0x6c] sm:$0xf]
    %v2292 = vld [vmem:[%s7 + $0x70] sm:$0xf]
    %v2293 = vld [vmem:[%s7 + $0x74] sm:$0xf]
    %v2294 = vld [vmem:[%s7 + $0x78] sm:$0xf]
    %v2295 = vld [vmem:[%s7 + $0x7c] sm:$0xf]
    %v2296 = vld [vmem:[%s7 + $0x80] sm:$0xf]
    %v2297 = vld [vmem:[%s7 + $0x84] sm:$0xf]
    %v2298 = vld [vmem:[%s7 + $0x88] sm:$0xf]
    %v2299 = vld [vmem:[%s7 + $0x8c] sm:$0xf]
    %v2300 = vld [vmem:[%s7 + $0x90] sm:$0xf]
    %v2301 = vld [vmem:[%s7 + $0x94] sm:$0xf]
    %v2302 = vld [vmem:[%s7 + $0x98] sm:$0xf]
    %v2303 = vld [vmem:[%s7 + $0x9c] sm:$0xf]
    %v2304 = vld [vmem:[%s7 + $0xa0] sm:$0xf]
    %v2305 = vld [vmem:[%s7 + $0xa4] sm:$0xf]
    %v2306 = vld [vmem:[%s7 + $0xa8] sm:$0xf]
    %v2307 = vld [vmem:[%s7 + $0xac] sm:$0xf]
    %v2308 = vld [vmem:[%s7 + $0xb0] sm:$0xf]
    %v2309 = vld [vmem:[%s7 + $0xb4] sm:$0xf]
    %v2310 = vld [vmem:[%s7 + $0xb8] sm:$0xf]
    %v2311 = vld [vmem:[%s7 + $0xbc] sm:$0xf]
    %v2312 = vld [vmem:[%s7 + $0xc0] sm:$0xf]
    %v2313 = vld [vmem:[%s7 + $0xc4] sm:$0xf]
    %v2314 = vld [vmem:[%s7 + $0xc8] sm:$0xf]
    %v2315 = vld [vmem:[%s7 + $0xcc] sm:$0xf]
    %v2316 = vld [vmem:[%s7 + $0xd0] sm:$0xf]
    %v2317 = vld [vmem:[%s7 + $0xd4] sm:$0xf]
    %v2318 = vld [vmem:[%s7 + $0xd8] sm:$0xf]
    %v2319 = vld [vmem:[%s7 + $0xdc] sm:$0xf]
    %v2320 = vld [vmem:[%s7 + $0xe0] sm:$0xf]
    %v2321 = vld [vmem:[%s7 + $0xe4] sm:$0xf]
    %v2322 = vld [vmem:[%s7 + $0xe8] sm:$0xf]
    %v2323 = vld [vmem:[%s7 + $0xec] sm:$0xf]
    %v2324 = vld [vmem:[%s7 + $0xf0] sm:$0xf]
    %v2325 = vld [vmem:[%s7 + $0xf4] sm:$0xf]
    %v2326 = vld [vmem:[%s7 + $0xf8] sm:$0xf]
    %v2327 = vld [vmem:[%s7 + $0xfc] sm:$0xf]
    %v2328 = vld [vmem:[%s8] sm:$0x1]
    %v2330 = vlaneseq
    %v2331 = vshrl.u32 %v2330, 7
    %v2332 = vsub.s32 0, %v2331
    %v2333 = vrot.slane %v2328, %v2332
    %v2399 = vunpack.c.l.b16 %v2264
    %v2400 = vunpack.c.l.b16 %v2265
    %v2401 = vunpack.c.l.b16 %v2266
    %v2402 = vunpack.c.l.b16 %v2267
    %v2403 = vunpack.c.l.b16 %v2268
    %v2404 = vunpack.c.l.b16 %v2269
    %v2405 = vunpack.c.l.b16 %v2270
    %v2406 = vunpack.c.l.b16 %v2271
    %v2407 = vunpack.c.l.b16 %v2272
    %v2408 = vunpack.c.l.b16 %v2273
    %v2409 = vunpack.c.l.b16 %v2274
    %v2410 = vunpack.c.l.b16 %v2275
    %v2411 = vunpack.c.l.b16 %v2276
    %v2412 = vunpack.c.l.b16 %v2277
    %v2413 = vunpack.c.l.b16 %v2278
    %v2414 = vunpack.c.l.b16 %v2279
    %v2415 = vunpack.c.l.b16 %v2280
    %v2416 = vunpack.c.l.b16 %v2281
    %v2417 = vunpack.c.l.b16 %v2282
    %v2418 = vunpack.c.l.b16 %v2283
    %v2419 = vunpack.c.l.b16 %v2284
    %v2420 = vunpack.c.l.b16 %v2285
    %v2421 = vunpack.c.l.b16 %v2286
    %v2422 = vunpack.c.l.b16 %v2287
    %v2423 = vunpack.c.l.b16 %v2288
    %v2424 = vunpack.c.l.b16 %v2289
    %v2425 = vunpack.c.l.b16 %v2290
    %v2426 = vunpack.c.l.b16 %v2291
    %v2427 = vunpack.c.l.b16 %v2292
    %v2428 = vunpack.c.l.b16 %v2293
    %v2429 = vunpack.c.l.b16 %v2294
    %v2430 = vunpack.c.l.b16 %v2295
    %v2431 = vunpack.c.l.b16 %v2296
    %v2432 = vunpack.c.l.b16 %v2297
    %v2433 = vunpack.c.l.b16 %v2298
    %v2434 = vunpack.c.l.b16 %v2299
    %v2435 = vunpack.c.l.b16 %v2300
    %v2436 = vunpack.c.l.b16 %v2301
    %v2437 = vunpack.c.l.b16 %v2302
    %v2438 = vunpack.c.l.b16 %v2303
    %v2439 = vunpack.c.l.b16 %v2304
    %v2440 = vunpack.c.l.b16 %v2305
    %v2441 = vunpack.c.l.b16 %v2306
    %v2442 = vunpack.c.l.b16 %v2307
    %v2443 = vunpack.c.l.b16 %v2308
    %v2444 = vunpack.c.l.b16 %v2309
    %v2445 = vunpack.c.l.b16 %v2310
    %v2446 = vunpack.c.l.b16 %v2311
    %v2447 = vunpack.c.l.b16 %v2312
    %v2448 = vunpack.c.l.b16 %v2313
    %v2449 = vunpack.c.l.b16 %v2314
    %v2450 = vunpack.c.l.b16 %v2315
    %v2451 = vunpack.c.l.b16 %v2316
    %v2452 = vunpack.c.l.b16 %v2317
    %v2453 = vunpack.c.l.b16 %v2318
    %v2454 = vunpack.c.l.b16 %v2319
    %v2455 = vunpack.c.l.b16 %v2320
    %v2456 = vunpack.c.l.b16 %v2321
    %v2457 = vunpack.c.l.b16 %v2322
    %v2458 = vunpack.c.l.b16 %v2323
    %v2459 = vunpack.c.l.b16 %v2324
    %v2460 = vunpack.c.l.b16 %v2325
    %v2461 = vunpack.c.l.b16 %v2326
    %v2462 = vunpack.c.l.b16 %v2327
    %v2463 = vpack.c.b16 %v2400, %v2399
    %v2464 = vpack.c.b16 %v2402, %v2401
    %v2465 = vpack.c.b16 %v2404, %v2403
    %v2466 = vpack.c.b16 %v2406, %v2405
    %v2467 = vpack.c.b16 %v2408, %v2407
    %v2468 = vpack.c.b16 %v2410, %v2409
    %v2469 = vpack.c.b16 %v2412, %v2411
    %v2470 = vpack.c.b16 %v2414, %v2413
    %v2471 = vpack.c.b16 %v2416, %v2415
    %v2472 = vpack.c.b16 %v2418, %v2417
    %v2473 = vpack.c.b16 %v2420, %v2419
    %v2474 = vpack.c.b16 %v2422, %v2421
    %v2475 = vpack.c.b16 %v2424, %v2423
    %v2476 = vpack.c.b16 %v2426, %v2425
    %v2477 = vpack.c.b16 %v2428, %v2427
    %v2478 = vpack.c.b16 %v2430, %v2429
    %v2479 = vpack.c.b16 %v2432, %v2431
    %v2480 = vpack.c.b16 %v2434, %v2433
    %v2481 = vpack.c.b16 %v2436, %v2435
    %v2482 = vpack.c.b16 %v2438, %v2437
    %v2483 = vpack.c.b16 %v2440, %v2439
    %v2484 = vpack.c.b16 %v2442, %v2441
    %v2485 = vpack.c.b16 %v2444, %v2443
    %v2486 = vpack.c.b16 %v2446, %v2445
    %v2487 = vpack.c.b16 %v2448, %v2447
    %v2488 = vpack.c.b16 %v2450, %v2449
    %v2489 = vpack.c.b16 %v2452, %v2451
    %v2490 = vpack.c.b16 %v2454, %v2453
    %v2491 = vpack.c.b16 %v2456, %v2455
    %v2492 = vpack.c.b16 %v2458, %v2457
    %v2493 = vpack.c.b16 %v2460, %v2459
    %v2494 = vpack.c.b16 %v2462, %v2461
    %2527 = vmatprep.subr.bf16.mxu0 0
    %2528 = vmatpush1.bf16.msra.mxu0 %v2470
    %2529 = vmatprep.subr.bf16.mxu0 0
    %2530 = vmatpush1.bf16.msra.mxu0 %v2469
    %2531 = vmatprep.subr.bf16.mxu0 0
    %2532 = vmatpush1.bf16.msra.mxu0 %v2468
    %2533 = vmatprep.subr.bf16.mxu0 0
    %2534 = vmatpush1.bf16.msra.mxu0 %v2467
    %2535 = vmatprep.subr.bf16.mxu0 0
    %2536 = vmatpush1.bf16.msra.mxu0 %v2466
    %2537 = vmatprep.subr.bf16.mxu0 0
    %2538 = vmatpush1.bf16.msra.mxu0 %v2465
    %2539 = vmatprep.subr.bf16.mxu0 0
    %2540 = vmatpush1.bf16.msra.mxu0 %v2464
    %2541 = vmatprep.subr.bf16.mxu0 0
    %2542 = vmatpush1.bf16.msra.mxu0 %v2463
    %2543 = vmatprep.subr.bf16.mxu0 0
    %2544 = vmatpush2.bf16.msra.mxu0 %v2478
    %2545 = vmatprep.subr.bf16.mxu0 0
    %2546 = vmatpush2.bf16.msra.mxu0 %v2477
    %2547 = vmatprep.subr.bf16.mxu0 0
    %2548 = vmatpush2.bf16.msra.mxu0 %v2476
    %2549 = vmatprep.subr.bf16.mxu0 0
    %2550 = vmatpush2.bf16.msra.mxu0 %v2475
    %2551 = vmatprep.subr.bf16.mxu0 0
    %2552 = vmatpush2.bf16.msra.mxu0 %v2474
    %2553 = vmatprep.subr.bf16.mxu0 0
    %2554 = vmatpush2.bf16.msra.mxu0 %v2473
    %2555 = vmatprep.subr.bf16.mxu0 0
    %2556 = vmatpush2.bf16.msra.mxu0 %v2472
    %2557 = vmatprep.subr.bf16.mxu0 0
    %2558 = vmatpush2.bf16.msra.mxu0 %v2471
    %2559 = vmatprep.mubr.bf16.mxu0 %v2261
    %2560 = vmatmul.mubr.bf16.gmra.mxu0 %v2260
    %v2561 = vpop.f32.mrf.mxu0
    %v2562 = vadd.f32 %v2333, %v2561
    %v2563 = vpop.f32.mrf.mxu0
    %v2564 = vpop.f32.mrf.mxu0
    %v2565 = vpop.f32.mrf.mxu0
    %2566 = vdwg.mxu0
    %2567 = vmatprep.subr.bf16.mxu0 0
    %2568 = vmatpush1.bf16.msra.mxu0 %v2486
    %2569 = vmatprep.subr.bf16.mxu0 0
    %2570 = vmatpush1.bf16.msra.mxu0 %v2485
    %2571 = vmatprep.subr.bf16.mxu0 0
    %2572 = vmatpush1.bf16.msra.mxu0 %v2484
    %2573 = vmatprep.subr.bf16.mxu0 0
    %2574 = vmatpush1.bf16.msra.mxu0 %v2483
    %2575 = vmatprep.subr.bf16.mxu0 0
    %2576 = vmatpush1.bf16.msra.mxu0 %v2482
    %2577 = vmatprep.subr.bf16.mxu0 0
    %2578 = vmatpush1.bf16.msra.mxu0 %v2481
    %2579 = vmatprep.subr.bf16.mxu0 0
    %2580 = vmatpush1.bf16.msra.mxu0 %v2480
    %2581 = vmatprep.subr.bf16.mxu0 0
    %2582 = vmatpush1.bf16.msra.mxu0 %v2479
    %2583 = vmatprep.subr.bf16.mxu0 0
    %2584 = vmatpush2.bf16.msra.mxu0 %v2494
    %2585 = vmatprep.subr.bf16.mxu0 0
    %2586 = vmatpush2.bf16.msra.mxu0 %v2493
    %2587 = vmatprep.subr.bf16.mxu0 0
    %2588 = vmatpush2.bf16.msra.mxu0 %v2492
    %2589 = vmatprep.subr.bf16.mxu0 0
    %2590 = vmatpush2.bf16.msra.mxu0 %v2491
    %2591 = vmatprep.subr.bf16.mxu0 0
    %2592 = vmatpush2.bf16.msra.mxu0 %v2490
    %2593 = vmatprep.subr.bf16.mxu0 0
    %2594 = vmatpush2.bf16.msra.mxu0 %v2489
    %2595 = vmatprep.subr.bf16.mxu0 0
    %2596 = vmatpush2.bf16.msra.mxu0 %v2488
    %2597 = vmatprep.subr.bf16.mxu0 0
    %2598 = vmatpush2.bf16.msra.mxu0 %v2487
    %2599 = vmatprep.mubr.bf16.mxu0 %v2263
    %2600 = vmatmul.mubr.bf16.gmra.mxu0 %v2262
    %v2601 = vpop.f32.mrf.mxu0
    %v2602 = vadd.f32 %v2562, %v2601
    %v2603 = vpop.f32.mrf.mxu0
    %v2604 = vpop.f32.mrf.mxu0
    %v2605 = vpop.f32.mrf.mxu0
    %2606 = vdwg.mxu0
    %2607 = vst [vmem:[#allocation2] sm:$0xff] %v2602
    // Predicated region
    $region38: #{_generator_forward_impl.1} parent=1 // pred_check
      _
    $region39: #{_generator_forward_impl.1} parent=1 // pred_check_branch
      %2609 = sbr.rel (0) target = $region41
    $region40: #{_generator_forward_impl.1} parent=1 // pred_region
      %s2611 = ssub.s32 128, 128
      %2612 = vsyncadd [#allocation3], %s2611
      %s2614 = sshll.u32 [#allocation2], 4
      %s2615 = int_to_ptr.vmem [resolvable:$true] %s2614
      %2617 = dma.vmem_to_hbm [thread:$0]  %s2615, 128, %s9, [#allocation3]
    $region41: #{_generator_forward_impl.1} parent=1 // pred_fallthru
      _
    // Predicated region
    $region42: #{_generator_forward_impl.1} parent=1 // pred_check
      _
    $region43: #{_generator_forward_impl.1} parent=1 // pred_check_branch
      %2619 = sbr.rel (0) target = $region45
    $region44: #{_generator_forward_impl.1} parent=1 // pred_region
      %2620 = dma.done [#allocation3], 128
    $region45: #{_generator_forward_impl.1} parent=1 // pred_fallthru
      _
    %2621 = vsyncpa [#allocation3], 1

// kernel: _generator_forward_impl.1
$region0: #{_generator_forward_impl.1}
  #allocation0 [shape = 'u32[]', space=smem, size = 0x4, offset = 0x4, fixed_abs, tag = 'smem constant byte address 0x4 - core index']
  #allocation1 [shape = 'u32[144,128]{1,0:T(1,128)}', space=vmem, size = 0x12000, scoped, tag = 'internal scratch']
  %s0 = inlined_call_operand.vmem [shape: f32[8,128], index: 0, kind: input, shape index: {}]
  %s1 = inlined_call_operand.vmem [shape: bf16[128,512], index: 1, kind: input, shape index: {}]
  %s2 = inlined_call_operand.vmem [shape: f32[1,512], index: 2, kind: input, shape index: {}]
  %s3 = inlined_call_operand.vmem [shape: bf16[512,512], index: 3, kind: input, shape index: {}]
  %s4 = inlined_call_operand.vmem [shape: f32[1,512], index: 4, kind: input, shape index: {}]
  %s5 = inlined_call_operand.vmem [shape: bf16[512,512], index: 5, kind: input, shape index: {}]
  %s6 = inlined_call_operand.vmem [shape: f32[1,512], index: 6, kind: input, shape index: {}]
  %s7 = inlined_call_operand.vmem [shape: bf16[512,128], index: 7, kind: input, shape index: {}]
  %s8 = inlined_call_operand.vmem [shape: f32[1,128], index: 8, kind: input, shape index: {}]
  %s9 = inlined_call_operand.hbm [shape: f32[8,128], index: 9, kind: output, shape index: {}]
  %s10 = sld [smem:[#allocation0]]
  $region46: #{_generator_forward_impl.1} parent=0
    _
  %s12 = ssub.s32 1, %s10
  %s13 = scalar_select 0, %s12, %s10
  $region1: #{_generator_forward_impl.1} parent=0
    #allocation2 [shape = 'u8[4096]{0}', space=vmem, size = 0x1000, scoped, tag = 'output window, operand 0, single buffered']
    #allocation3 [shape = 's32[1]{0}', space=sflag, size = 0x4, scoped, tag = 'scoped memory for _generator_forward_impl.1']
    %14 = vsyncpa [#allocation3], 0
    // Predicated region
    $region2: #{_generator_forward_impl.1} parent=1 // pred_check
      _
    $region3: #{_generator_forward_impl.1} parent=1 // pred_check_branch
      %16 = sbr.rel (0) target = $region5
    $region4: #{_generator_forward_impl.1} parent=1 // pred_region
      _
    $region5: #{_generator_forward_impl.1} parent=1 // pred_fallthru
      _
    // Predicated region
    $region6: #{_generator_forward_impl.1} parent=1 // pred_check
      _
    $region7: #{_generator_forward_impl.1} parent=1 // pred_check_branch
      %18 = sbr.rel (0) target = $region9
    $region8: #{_generator_forward_impl.1} parent=1 // pred_region
      _
    $region9: #{_generator_forward_impl.1} parent=1 // pred_fallthru
      _
    // Predicated region
    $region10: #{_generator_forward_impl.1} parent=1 // pred_check
      _
    $region11: #{_generator_forward_impl.1} parent=1 // pred_check_branch
      %20 = sbr.rel (0) target = $region13
    $region12: #{_generator_forward_impl.1} parent=1 // pred_region
      _
    $region13: #{_generator_forward_impl.1} parent=1 // pred_fallthru
      _
    // Predicated region
    $region14: #{_generator_forward_impl.1} parent=1 // pred_check
      _
    $region15: #{_generator_forward_impl.1} parent=1 // pred_check_branch
      %22 = sbr.rel (0) target = $region17
    $region16: #{_generator_forward_impl.1} parent=1 // pred_region
      _
    $region17: #{_generator_forward_impl.1} parent=1 // pred_fallthru
      _
    // Predicated region
    $region18: #{_generator_forward_impl.1} parent=1 // pred_check
      _
    $region19: #{_generator_forward_impl.1} parent=1 // pred_check_branch
      %24 = sbr.rel (0) target = $region21
    $region20: #{_generator_forward_impl.1} parent=1 // pred_region
      _
    $region21: #{_generator_forward_impl.1} parent=1 // pred_fallthru
      _
    // Predicated region
    $region22: #{_generator_forward_impl.1} parent=1 // pred_check
      _
    $region23: #{_generator_forward_impl.1} parent=1 // pred_check_branch
      %26 = sbr.rel (0) target = $region25
    $region24: #{_generator_forward_impl.1} parent=1 // pred_region
      _
    $region25: #{_generator_forward_impl.1} parent=1 // pred_fallthru
      _
    // Predicated region
    $region26: #{_generator_forward_impl.1} parent=1 // pred_check
      _
    $region27: #{_generator_forward_impl.1} parent=1 // pred_check_branch
      %28 = sbr.rel (0) target = $region29
    $region28: #{_generator_forward_impl.1} parent=1 // pred_region
      _
    $region29: #{_generator_forward_impl.1} parent=1 // pred_fallthru
      _
    // Predicated region
    $region30: #{_generator_forward_impl.1} parent=1 // pred_check
      _
    $region31: #{_generator_forward_impl.1} parent=1 // pred_check_branch
      %30 = sbr.rel (0) target = $region33
    $region32: #{_generator_forward_impl.1} parent=1 // pred_region
      _
    $region33: #{_generator_forward_impl.1} parent=1 // pred_fallthru
      _
    // Predicated region
    $region34: #{_generator_forward_impl.1} parent=1 // pred_check
      _
    $region35: #{_generator_forward_impl.1} parent=1 // pred_check_branch
      %32 = sbr.rel (0) target = $region37
    $region36: #{_generator_forward_impl.1} parent=1 // pred_region
      _
    $region37: #{_generator_forward_impl.1} parent=1 // pred_fallthru
      _
    %v34 = vld [vmem:[%s0] sm:$0xff]
    %v35 = vpack.c.bf16 %v34, %v34
    %v36 = vld [vmem:[%s1] sm:$0xff]
    %v37 = vld [vmem:[%s1 + $0x8] sm:$0xff]
    %v38 = vld [vmem:[%s1 + $0x10] sm:$0xff]
    %v39 = vld [vmem:[%s1 + $0x18] sm:$0xff]
    %v40 = vld [vmem:[%s1 + $0x20] sm:$0xff]
    %v41 = vld [vmem:[%s1 + $0x28] sm:$0xff]
    %v42 = vld [vmem:[%s1 + $0x30] sm:$0xff]
    %v43 = vld [vmem:[%s1 + $0x38] sm:$0xff]
    %v44 = vld [vmem:[%s1 + $0x40] sm:$0xff]
    %v45 = vld [vmem:[%s1 + $0x48] sm:$0xff]
    %v46 = vld [vmem:[%s1 + $0x50] sm:$0xff]
    %v47 = vld [vmem:[%s1 + $0x58] sm:$0xff]
    %v48 = vld [vmem:[%s1 + $0x60] sm:$0xff]
    %v49 = vld [vmem:[%s1 + $0x68] sm:$0xff]
    %v50 = vld [vmem:[%s1 + $0x70] sm:$0xff]
    %v51 = vld [vmem:[%s1 + $0x78] sm:$0xff]
    %v52 = vld [vmem:[%s1 + $0x80] sm:$0xff]
    %v53 = vld [vmem:[%s1 + $0x88] sm:$0xff]
    %v54 = vld [vmem:[%s1 + $0x90] sm:$0xff]
    %v55 = vld [vmem:[%s1 + $0x98] sm:$0xff]
    %v56 = vld [vmem:[%s1 + $0xa0] sm:$0xff]
    %v57 = vld [vmem:[%s1 + $0xa8] sm:$0xff]
    %v58 = vld [vmem:[%s1 + $0xb0] sm:$0xff]
    %v59 = vld [vmem:[%s1 + $0xb8] sm:$0xff]
    %v60 = vld [vmem:[%s1 + $0xc0] sm:$0xff]
    %v61 = vld [vmem:[%s1 + $0xc8] sm:$0xff]
    %v62 = vld [vmem:[%s1 + $0xd0] sm:$0xff]
    %v63 = vld [vmem:[%s1 + $0xd8] sm:$0xff]
    %v64 = vld [vmem:[%s1 + $0xe0] sm:$0xff]
    %v65 = vld [vmem:[%s1 + $0xe8] sm:$0xff]
    %v66 = vld [vmem:[%s1 + $0xf0] sm:$0xff]
    %v67 = vld [vmem:[%s1 + $0xf8] sm:$0xff]
    %v68 = vld [vmem:[%s2] sm:$0xf]
    %v70 = vlaneseq
    %v71 = vshrl.u32 %v70, 7
    %v72 = vsub.s32 0, %v71
    %v73 = vrot.slane %v68, %v72
    %v74 = vlaneseq
    %v75 = vshrl.u32 %v74, 7
    %v76 = vsub.s32 1, %v75
    %v77 = vrot.slane %v68, %v76
    %v78 = vlaneseq
    %v79 = vshrl.u32 %v78, 7
    %v80 = vsub.s32 2, %v79
    %v81 = vrot.slane %v68, %v80
    %v82 = vlaneseq
    %v83 = vshrl.u32 %v82, 7
    %v84 = vsub.s32 3, %v83
    %v85 = vrot.slane %v68, %v84
    %v122 = vunpack.c.l.b16 %v36
    %v123 = vunpack.c.h.b16 %v36
    %v124 = vunpack.c.l.b16 %v37
    %v125 = vunpack.c.h.b16 %v37
    %v126 = vunpack.c.l.b16 %v38
    %v127 = vunpack.c.h.b16 %v38
    %v128 = vunpack.c.l.b16 %v39
    %v129 = vunpack.c.h.b16 %v39
    %v130 = vunpack.c.l.b16 %v40
    %v131 = vunpack.c.h.b16 %v40
    %v132 = vunpack.c.l.b16 %v41
    %v133 = vunpack.c.h.b16 %v41
    %v134 = vunpack.c.l.b16 %v42
    %v135 = vunpack.c.h.b16 %v42
    %v136 = vunpack.c.l.b16 %v43
    %v137 = vunpack.c.h.b16 %v43
    %v138 = vunpack.c.l.b16 %v44
    %v139 = vunpack.c.h.b16 %v44
    %v140 = vunpack.c.l.b16 %v45
    %v141 = vunpack.c.h.b16 %v45
    %v142 = vunpack.c.l.b16 %v46
    %v143 = vunpack.c.h.b16 %v46
    %v144 = vunpack.c.l.b16 %v47
    %v145 = vunpack.c.h.b16 %v47
    %v146 = vunpack.c.l.b16 %v48
    %v147 = vunpack.c.h.b16 %v48
    %v148 = vunpack.c.l.b16 %v49
    %v149 = vunpack.c.h.b16 %v49
    %v150 = vunpack.c.l.b16 %v50
    %v151 = vunpack.c.h.b16 %v50
    %v152 = vunpack.c.l.b16 %v51
    %v153 = vunpack.c.h.b16 %v51
    %v154 = vunpack.c.l.b16 %v52
    %v155 = vunpack.c.h.b16 %v52
    %v156 = vunpack.c.l.b16 %v53
    %v157 = vunpack.c.h.b16 %v53
    %v158 = vunpack.c.l.b16 %v54
    %v159 = vunpack.c.h.b16 %v54
    %v160 = vunpack.c.l.b16 %v55
    %v161 = vunpack.c.h.b16 %v55
    %v162 = vunpack.c.l.b16 %v56
    %v163 = vunpack.c.h.b16 %v56
    %v164 = vunpack.c.l.b16 %v57
    %v165 = vunpack.c.h.b16 %v57
    %v166 = vunpack.c.l.b16 %v58
    %v167 = vunpack.c.h.b16 %v58
    %v168 = vunpack.c.l.b16 %v59
    %v169 = vunpack.c.h.b16 %v59
    %v170 = vunpack.c.l.b16 %v60
    %v171 = vunpack.c.h.b16 %v60
    %v172 = vunpack.c.l.b16 %v61
    %v173 = vunpack.c.h.b16 %v61
    %v174 = vunpack.c.l.b16 %v62
    %v175 = vunpack.c.h.b16 %v62
    %v176 = vunpack.c.l.b16 %v63
    %v177 = vunpack.c.h.b16 %v63
    %v178 = vunpack.c.l.b16 %v64
    %v179 = vunpack.c.h.b16 %v64
    %v180 = vunpack.c.l.b16 %v65
    %v181 = vunpack.c.h.b16 %v65
    %v182 = vunpack.c.l.b16 %v66
    %v183 = vunpack.c.h.b16 %v66
    %v184 = vunpack.c.l.b16 %v67
    %v185 = vunpack.c.h.b16 %v67
    %v186 = vpack.c.b16 %v126, %v122
    %v187 = vpack.c.b16 %v127, %v123
    %v188 = vpack.c.b16 %v128, %v124
    %v189 = vpack.c.b16 %v129, %v125
    %v190 = vpack.c.b16 %v134, %v130
    %v191 = vpack.c.b16 %v135, %v131
    %v192 = vpack.c.b16 %v136, %v132
    %v193 = vpack.c.b16 %v137, %v133
    %v194 = vpack.c.b16 %v142, %v138
    %v195 = vpack.c.b16 %v143, %v139
    %v196 = vpack.c.b16 %v144, %v140
    %v197 = vpack.c.b16 %v145, %v141
    %v198 = vpack.c.b16 %v150, %v146
    %v199 = vpack.c.b16 %v151, %v147
    %v200 = vpack.c.b16 %v152, %v148
    %v201 = vpack.c.b16 %v153, %v149
    %v202 = vpack.c.b16 %v158, %v154
    %v203 = vpack.c.b16 %v159, %v155
    %v204 = vpack.c.b16 %v160, %v156
    %v205 = vpack.c.b16 %v161, %v157
    %v206 = vpack.c.b16 %v166, %v162
    %v207 = vpack.c.b16 %v167, %v163
    %v208 = vpack.c.b16 %v168, %v164
    %v209 = vpack.c.b16 %v169, %v165
    %v210 = vpack.c.b16 %v174, %v170
    %v211 = vpack.c.b16 %v175, %v171
    %v212 = vpack.c.b16 %v176, %v172
    %v213 = vpack.c.b16 %v177, %v173
    %v214 = vpack.c.b16 %v182, %v178
    %v215 = vpack.c.b16 %v183, %v179
    %v216 = vpack.c.b16 %v184, %v180
    %v217 = vpack.c.b16 %v185, %v181
    %250 = vmatprep.subr.bf16.mxu0 %v215
    %251 = vmatpush1.bf16.msra.mxu0 %v214
    %252 = vmatprep.subr.bf16.mxu0 %v211
    %253 = vmatpush1.bf16.msra.mxu0 %v210
    %254 = vmatprep.subr.bf16.mxu0 %v207
    %255 = vmatpush1.bf16.msra.mxu0 %v206
    %256 = vmatprep.subr.bf16.mxu0 %v203
    %257 = vmatpush1.bf16.msra.mxu0 %v202
    %258 = vmatprep.subr.bf16.mxu0 %v199
    %259 = vmatpush1.bf16.msra.mxu0 %v198
    %260 = vmatprep.subr.bf16.mxu0 %v195
    %261 = vmatpush1.bf16.msra.mxu0 %v194
    %262 = vmatprep.subr.bf16.mxu0 %v191
    %263 = vmatpush1.bf16.msra.mxu0 %v190
    %264 = vmatprep.subr.bf16.mxu0 %v187
    %265 = vmatpush1.bf16.msra.mxu0 %v186
    %266 = vmatprep.subr.bf16.mxu0 0
    %267 = vmatpush2.bf16.msra.mxu0 0
    %268 = vmatprep.subr.bf16.mxu0 0
    %269 = vmatpush2.bf16.msra.mxu0 0
    %270 = vmatprep.subr.bf16.mxu0 0
    %271 = vmatpush2.bf16.msra.mxu0 0
    %272 = vmatprep.subr.bf16.mxu0 0
    %273 = vmatpush2.bf16.msra.mxu0 0
    %274 = vmatprep.subr.bf16.mxu0 0
    %275 = vmatpush2.bf16.msra.mxu0 0
    %276 = vmatprep.subr.bf16.mxu0 0
    %277 = vmatpush2.bf16.msra.mxu0 0
    %278 = vmatprep.subr.bf16.mxu0 0
    %279 = vmatpush2.bf16.msra.mxu0 0
    %280 = vmatprep.subr.bf16.mxu0 0
    %281 = vmatpush2.bf16.msra.mxu0 0
    %282 = vmatprep.mubr.bf16.mxu0 0
    %283 = vmatmul.mubr.bf16.gmra.mxu0 %v35
    %v284 = vpop.f32.mrf.mxu0
    %v285 = vadd.f32 %v73, %v284
    %v286 = vpop.f32.mrf.mxu0
    %v287 = vadd.f32 %v77, %v286
    %v288 = vpop.f32.mrf.mxu0
    %v289 = vpop.f32.mrf.mxu0
    %290 = vdwg.mxu0
    %291 = vmatprep.subr.bf16.mxu0 %v217
    %292 = vmatpush1.bf16.msra.mxu0 %v216
    %293 = vmatprep.subr.bf16.mxu0 %v213
    %294 = vmatpush1.bf16.msra.mxu0 %v212
    %295 = vmatprep.subr.bf16.mxu0 %v209
    %296 = vmatpush1.bf16.msra.mxu0 %v208
    %297 = vmatprep.subr.bf16.mxu0 %v205
    %298 = vmatpush1.bf16.msra.mxu0 %v204
    %299 = vmatprep.subr.bf16.mxu0 %v201
    %300 = vmatpush1.bf16.msra.mxu0 %v200
    %301 = vmatprep.subr.bf16.mxu0 %v197
    %302 = vmatpush1.bf16.msra.mxu0 %v196
    %303 = vmatprep.subr.bf16.mxu0 %v193
    %304 = vmatpush1.bf16.msra.mxu0 %v192
    %305 = vmatprep.subr.bf16.mxu0 %v189
    %306 = vmatpush1.bf16.msra.mxu0 %v188
    %307 = vmatprep.subr.bf16.mxu0 0
    %308 = vmatpush2.bf16.msra.mxu0 0
    %309 = vmatprep.subr.bf16.mxu0 0
    %310 = vmatpush2.bf16.msra.mxu0 0
    %311 = vmatprep.subr.bf16.mxu0 0
    %312 = vmatpush2.bf16.msra.mxu0 0
    %313 = vmatprep.subr.bf16.mxu0 0
    %314 = vmatpush2.bf16.msra.mxu0 0
    %315 = vmatprep.subr.bf16.mxu0 0
    %316 = vmatpush2.bf16.msra.mxu0 0
    %317 = vmatprep.subr.bf16.mxu0 0
    %318 = vmatpush2.bf16.msra.mxu0 0
    %319 = vmatprep.subr.bf16.mxu0 0
    %320 = vmatpush2.bf16.msra.mxu0 0
    %321 = vmatprep.subr.bf16.mxu0 0
    %322 = vmatpush2.bf16.msra.mxu0 0
    %323 = vmatprep.mubr.bf16.mxu0 0
    %324 = vmatmul.mubr.bf16.gmra.mxu0 %v35
    %v325 = vpop.f32.mrf.mxu0
    %v326 = vadd.f32 %v81, %v325
    %v327 = vpop.f32.mrf.mxu0
    %v328 = vadd.f32 %v85, %v327
    %v329 = vpop.f32.mrf.mxu0
    %v330 = vpop.f32.mrf.mxu0
    %331 = vdwg.mxu0
    %v332 = vmax.f32 %v285, 0.0
    %v333 = vmax.f32 %v287, 0.0
    %v334 = vmax.f32 %v326, 0.0
    %v335 = vmax.f32 %v328, 0.0
    %v336 = vpack.c.bf16 %v332, %v332
    %v337 = vpack.c.bf16 %v333, %v333
    %v338 = vpack.c.bf16 %v334, %v334
    %v339 = vpack.c.bf16 %v335, %v335
    %v340 = vld [vmem:[%s3] sm:$0xff]
    %v341 = vld [vmem:[%s3 + $0x8] sm:$0xff]
    %v342 = vld [vmem:[%s3 + $0x10] sm:$0xff]
    %v343 = vld [vmem:[%s3 + $0x18] sm:$0xff]
    %v344 = vld [vmem:[%s3 + $0x20] sm:$0xff]
    %v345 = vld [vmem:[%s3 + $0x28] sm:$0xff]
    %v346 = vld [vmem:[%s3 + $0x30] sm:$0xff]
    %v347 = vld [vmem:[%s3 + $0x38] sm:$0xff]
    %v348 = vld [vmem:[%s3 + $0x40] sm:$0xff]
    %v349 = vld [vmem:[%s3 + $0x48] sm:$0xff]
    %v350 = vld [vmem:[%s3 + $0x50] sm:$0xff]
    %v351 = vld [vmem:[%s3 + $0x58] sm:$0xff]
    %v352 = vld [vmem:[%s3 + $0x60] sm:$0xff]
    %v353 = vld [vmem:[%s3 + $0x68] sm:$0xff]
    %v354 = vld [vmem:[%s3 + $0x70] sm:$0xff]
    %v355 = vld [vmem:[%s3 + $0x78] sm:$0xff]
    %v356 = vld [vmem:[%s3 + $0x80] sm:$0xff]
    %v357 = vld [vmem:[%s3 + $0x88] sm:$0xff]
    %v358 = vld [vmem:[%s3 + $0x90] sm:$0xff]
    %v359 = vld [vmem:[%s3 + $0x98] sm:$0xff]
    %v360 = vld [vmem:[%s3 + $0xa0] sm:$0xff]
    %v361 = vld [vmem:[%s3 + $0xa8] sm:$0xff]
    %v362 = vld [vmem:[%s3 + $0xb0] sm:$0xff]
    %v363 = vld [vmem:[%s3 + $0xb8] sm:$0xff]
    %v364 = vld [vmem:[%s3 + $0xc0] sm:$0xff]
    %v365 = vld [vmem:[%s3 + $0xc8] sm:$0xff]
    %v366 = vld [vmem:[%s3 + $0xd0] sm:$0xff]
    %v367 = vld [vmem:[%s3 + $0xd8] sm:$0xff]
    %v368 = vld [vmem:[%s3 + $0xe0] sm:$0xff]
    %v369 = vld [vmem:[%s3 + $0xe8] sm:$0xff]
    %v370 = vld [vmem:[%s3 + $0xf0] sm:$0xff]
    %v371 = vld [vmem:[%s3 + $0xf8] sm:$0xff]
    %v372 = vld [vmem:[%s3 + $0x100] sm:$0xff]
    %v373 = vld [vmem:[%s3 + $0x108] sm:$0xff]
    %v374 = vld [vmem:[%s3 + $0x110] sm:$0xff]
    %v375 = vld [vmem:[%s3 + $0x118] sm:$0xff]
    %v376 = vld [vmem:[%s3 + $0x120] sm:$0xff]
    %v377 = vld [vmem:[%s3 + $0x128] sm:$0xff]
    %v378 = vld [vmem:[%s3 + $0x130] sm:$0xff]
    %v379 = vld [vmem:[%s3 + $0x138] sm:$0xff]
    %v380 = vld [vmem:[%s3 + $0x140] sm:$0xff]
    %v381 = vld [vmem:[%s3 + $0x148] sm:$0xff]
    %v382 = vld [vmem:[%s3 + $0x150] sm:$0xff]
    %v383 = vld [vmem:[%s3 + $0x158] sm:$0xff]
    %v384 = vld [vmem:[%s3 + $0x160] sm:$0xff]
    %v385 = vld [vmem:[%s3 + $0x168] sm:$0xff]
    %v386 = vld [vmem:[%s3 + $0x170] sm:$0xff]
    %v387 = vld [vmem:[%s3 + $0x178] sm:$0xff]
    %v388 = vld [vmem:[%s3 + $0x180] sm:$0xff]
    %v389 = vld [vmem:[%s3 + $0x188] sm:$0xff]
    %v390 = vld [vmem:[%s3 + $0x190] sm:$0xff]
    %v391 = vld [vmem:[%s3 + $0x198] sm:$0xff]
    %v392 = vld [vmem:[%s3 + $0x1a0] sm:$0xff]
    %v393 = vld [vmem:[%s3 + $0x1a8] sm:$0xff]
    %v394 = vld [vmem:[%s3 + $0x1b0] sm:$0xff]
    %v395 = vld [vmem:[%s3 + $0x1b8] sm:$0xff]
    %v396 = vld [vmem:[%s3 + $0x1c0] sm:$0xff]
    %v397 = vld [vmem:[%s3 + $0x1c8] sm:$0xff]
    %v398 = vld [vmem:[%s3 + $0x1d0] sm:$0xff]
    %v399 = vld [vmem:[%s3 + $0x1d8] sm:$0xff]
    %v400 = vld [vmem:[%s3 + $0x1e0] sm:$0xff]
    %v401 = vld [vmem:[%s3 + $0x1e8] sm:$0xff]
    %v402 = vld [vmem:[%s3 + $0x1f0] sm:$0xff]
    %v403 = vld [vmem:[%s3 + $0x1f8] sm:$0xff]
    %v404 = vld [vmem:[%s3 + $0x200] sm:$0xff]
    %v405 = vld [vmem:[%s3 + $0x208] sm:$0xff]
    %v406 = vld [vmem:[%s3 + $0x210] sm:$0xff]
    %v407 = vld [vmem:[%s3 + $0x218] sm:$0xff]
    %v408 = vld [vmem:[%s3 + $0x220] sm:$0xff]
    %v409 = vld [vmem:[%s3 + $0x228] sm:$0xff]
    %v410 = vld [vmem:[%s3 + $0x230] sm:$0xff]
    %v411 = vld [vmem:[%s3 + $0x238] sm:$0xff]
    %v412 = vld [vmem:[%s3 + $0x240] sm:$0xff]
    %v413 = vld [vmem:[%s3 + $0x248] sm:$0xff]
    %v414 = vld [vmem:[%s3 + $0x250] sm:$0xff]
    %v415 = vld [vmem:[%s3 + $0x258] sm:$0xff]
    %v416 = vld [vmem:[%s3 + $0x260] sm:$0xff]
    %v417 = vld [vmem:[%s3 + $0x268] sm:$0xff]
    %v418 = vld [vmem:[%s3 + $0x270] sm:$0xff]
    %v419 = vld [vmem:[%s3 + $0x278] sm:$0xff]
    %v420 = vld [vmem:[%s3 + $0x280] sm:$0xff]
    %v421 = vld [vmem:[%s3 + $0x288] sm:$0xff]
    %v422 = vld [vmem:[%s3 + $0x290] sm:$0xff]
    %v423 = vld [vmem:[%s3 + $0x298] sm:$0xff]
    %v424 = vld [vmem:[%s3 + $0x2a0] sm:$0xff]
    %v425 = vld [vmem:[%s3 + $0x2a8] sm:$0xff]
    %v426 = vld [vmem:[%s3 + $0x2b0] sm:$0xff]
    %v427 = vld [vmem:[%s3 + $0x2b8] sm:$0xff]
    %v428 = vld [vmem:[%s3 + $0x2c0] sm:$0xff]
    %v429 = vld [vmem:[%s3 + $0x2c8] sm:$0xff]
    %v430 = vld [vmem:[%s3 + $0x2d0] sm:$0xff]
    %v431 = vld [vmem:[%s3 + $0x2d8] sm:$0xff]
    %v432 = vld [vmem:[%s3 + $0x2e0] sm:$0xff]
    %v433 = vld [vmem:[%s3 + $0x2e8] sm:$0xff]
    %v434 = vld [vmem:[%s3 + $0x2f0] sm:$0xff]
    %v435 = vld [vmem:[%s3 + $0x2f8] sm:$0xff]
    %v436 = vld [vmem:[%s3 + $0x300] sm:$0xff]
    %v437 = vld [vmem:[%s3 + $0x308] sm:$0xff]
    %v438 = vld [vmem:[%s3 + $0x310] sm:$0xff]
    %v439 = vld [vmem:[%s3 + $0x318] sm:$0xff]
    %v440 = vld [vmem:[%s3 + $0x320] sm:$0xff]
    %v441 = vld [vmem:[%s3 + $0x328] sm:$0xff]
    %v442 = vld [vmem:[%s3 + $0x330] sm:$0xff]
    %v443 = vld [vmem:[%s3 + $0x338] sm:$0xff]
    %v444 = vld [vmem:[%s3 + $0x340] sm:$0xff]
    %v445 = vld [vmem:[%s3 + $0x348] sm:$0xff]
    %v446 = vld [vmem:[%s3 + $0x350] sm:$0xff]
    %v447 = vld [vmem:[%s3 + $0x358] sm:$0xff]
    %v448 = vld [vmem:[%s3 + $0x360] sm:$0xff]
    %v449 = vld [vmem:[%s3 + $0x368] sm:$0xff]
    %v450 = vld [vmem:[%s3 + $0x370] sm:$0xff]
    %v451 = vld [vmem:[%s3 + $0x378] sm:$0xff]
    %v452 = vld [vmem:[%s3 + $0x380] sm:$0xff]
    %v453 = vld [vmem:[%s3 + $0x388] sm:$0xff]
    %v454 = vld [vmem:[%s3 + $0x390] sm:$0xff]
    %v455 = vld [vmem:[%s3 + $0x398] sm:$0xff]
    %v456 = vld [vmem:[%s3 + $0x3a0] sm:$0xff]
    %v457 = vld [vmem:[%s3 + $0x3a8] sm:$0xff]
    %v458 = vld [vmem:[%s3 + $0x3b0] sm:$0xff]
    %v459 = vld [vmem:[%s3 + $0x3b8] sm:$0xff]
    %v460 = vld [vmem:[%s3 + $0x3c0] sm:$0xff]
    %v461 = vld [vmem:[%s3 + $0x3c8] sm:$0xff]
    %v462 = vld [vmem:[%s3 + $0x3d0] sm:$0xff]
    %v463 = vld [vmem:[%s3 + $0x3d8] sm:$0xff]
    %v464 = vld [vmem:[%s3 + $0x3e0] sm:$0xff]
    %v465 = vld [vmem:[%s3 + $0x3e8] sm:$0xff]
    %v466 = vld [vmem:[%s3 + $0x3f0] sm:$0xff]
    %v467 = vld [vmem:[%s3 + $0x3f8] sm:$0xff]
    %v468 = vld [vmem:[%s4] sm:$0xf]
    %v470 = vlaneseq
    %v471 = vshrl.u32 %v470, 7
    %v472 = vsub.s32 0, %v471
    %v473 = vrot.slane %v468, %v472
    %v474 = vlaneseq
    %v475 = vshrl.u32 %v474, 7
    %v476 = vsub.s32 1, %v475
    %v477 = vrot.slane %v468, %v476
    %v478 = vlaneseq
    %v479 = vshrl.u32 %v478, 7
    %v480 = vsub.s32 2, %v479
    %v481 = vrot.slane %v468, %v480
    %v482 = vlaneseq
    %v483 = vshrl.u32 %v482, 7
    %v484 = vsub.s32 3, %v483
    %v485 = vrot.slane %v468, %v484
    %v618 = vunpack.c.l.b16 %v340
    %v619 = vunpack.c.h.b16 %v340
    %v620 = vunpack.c.l.b16 %v341
    %v621 = vunpack.c.h.b16 %v341
    %v622 = vunpack.c.l.b16 %v342
    %v623 = vunpack.c.h.b16 %v342
    %v624 = vunpack.c.l.b16 %v343
    %v625 = vunpack.c.h.b16 %v343
    %v626 = vunpack.c.l.b16 %v344
    %v627 = vunpack.c.h.b16 %v344
    %v628 = vunpack.c.l.b16 %v345
    %v629 = vunpack.c.h.b16 %v345
    %v630 = vunpack.c.l.b16 %v346
    %v631 = vunpack.c.h.b16 %v346
    %v632 = vunpack.c.l.b16 %v347
    %v633 = vunpack.c.h.b16 %v347
    %v634 = vunpack.c.l.b16 %v348
    %v635 = vunpack.c.h.b16 %v348
    %v636 = vunpack.c.l.b16 %v349
    %v637 = vunpack.c.h.b16 %v349
    %v638 = vunpack.c.l.b16 %v350
    %v639 = vunpack.c.h.b16 %v350
    %v640 = vunpack.c.l.b16 %v351
    %v641 = vunpack.c.h.b16 %v351
    %v642 = vunpack.c.l.b16 %v352
    %v643 = vunpack.c.h.b16 %v352
    %v644 = vunpack.c.l.b16 %v353
    %v645 = vunpack.c.h.b16 %v353
    %v646 = vunpack.c.l.b16 %v354
    %v647 = vunpack.c.h.b16 %v354
    %v648 = vunpack.c.l.b16 %v355
    %v649 = vunpack.c.h.b16 %v355
    %v650 = vunpack.c.l.b16 %v356
    %v651 = vunpack.c.h.b16 %v356
    %v652 = vunpack.c.l.b16 %v357
    %v653 = vunpack.c.h.b16 %v357
    %v654 = vunpack.c.l.b16 %v358
    %v655 = vunpack.c.h.b16 %v358
    %v656 = vunpack.c.l.b16 %v359
    %v657 = vunpack.c.h.b16 %v359
    %v658 = vunpack.c.l.b16 %v360
    %v659 = vunpack.c.h.b16 %v360
    %v660 = vunpack.c.l.b16 %v361
    %v661 = vunpack.c.h.b16 %v361
    %v662 = vunpack.c.l.b16 %v362
    %v663 = vunpack.c.h.b16 %v362
    %v664 = vunpack.c.l.b16 %v363
    %v665 = vunpack.c.h.b16 %v363
    %v666 = vunpack.c.l.b16 %v364
    %v667 = vunpack.c.h.b16 %v364
    %v668 = vunpack.c.l.b16 %v365
    %v669 = vunpack.c.h.b16 %v365
    %v670 = vunpack.c.l.b16 %v366
    %v671 = vunpack.c.h.b16 %v366
    %v672 = vunpack.c.l.b16 %v367
    %v673 = vunpack.c.h.b16 %v367
    %v674 = vunpack.c.l.b16 %v368
    %v675 = vunpack.c.h.b16 %v368
    %v676 = vunpack.c.l.b16 %v369
    %v677 = vunpack.c.h.b16 %v369
    %v678 = vunpack.c.l.b16 %v370
    %v679 = vunpack.c.h.b16 %v370
    %v680 = vunpack.c.l.b16 %v371
    %v681 = vunpack.c.h.b16 %v371
    %v682 = vunpack.c.l.b16 %v372
    %v683 = vunpack.c.h.b16 %v372
    %v684 = vunpack.c.l.b16 %v373
    %v685 = vunpack.c.h.b16 %v373
    %v686 = vunpack.c.l.b16 %v374
    %v687 = vunpack.c.h.b16 %v374
    %v688 = vunpack.c.l.b16 %v375
    %v689 = vunpack.c.h.b16 %v375
    %v690 = vunpack.c.l.b16 %v376
    %v691 = vunpack.c.h.b16 %v376
    %v692 = vunpack.c.l.b16 %v377
    %v693 = vunpack.c.h.b16 %v377
    %v694 = vunpack.c.l.b16 %v378
    %v695 = vunpack.c.h.b16 %v378
    %v696 = vunpack.c.l.b16 %v379
    %v697 = vunpack.c.h.b16 %v379
    %v698 = vunpack.c.l.b16 %v380
    %v699 = vunpack.c.h.b16 %v380
    %v700 = vunpack.c.l.b16 %v381
    %v701 = vunpack.c.h.b16 %v381
    %v702 = vunpack.c.l.b16 %v382
    %v703 = vunpack.c.h.b16 %v382
    %v704 = vunpack.c.l.b16 %v383
    %v705 = vunpack.c.h.b16 %v383
    %v706 = vunpack.c.l.b16 %v384
    %v707 = vunpack.c.h.b16 %v384
    %v708 = vunpack.c.l.b16 %v385
    %v709 = vunpack.c.h.b16 %v385
    %v710 = vunpack.c.l.b16 %v386
    %v711 = vunpack.c.h.b16 %v386
    %v712 = vunpack.c.l.b16 %v387
    %v713 = vunpack.c.h.b16 %v387
    %v714 = vunpack.c.l.b16 %v388
    %v715 = vunpack.c.h.b16 %v388
    %v716 = vunpack.c.l.b16 %v389
    %v717 = vunpack.c.h.b16 %v389
    %v718 = vunpack.c.l.b16 %v390
    %v719 = vunpack.c.h.b16 %v390
    %v720 = vunpack.c.l.b16 %v391
    %v721 = vunpack.c.h.b16 %v391
    %v722 = vunpack.c.l.b16 %v392
    %v723 = vunpack.c.h.b16 %v392
    %v724 = vunpack.c.l.b16 %v393
    %v725 = vunpack.c.h.b16 %v393
    %v726 = vunpack.c.l.b16 %v394
    %v727 = vunpack.c.h.b16 %v394
    %v728 = vunpack.c.l.b16 %v395
    %v729 = vunpack.c.h.b16 %v395
    %v730 = vunpack.c.l.b16 %v396
    %v731 = vunpack.c.h.b16 %v396
    %v732 = vunpack.c.l.b16 %v397
    %v733 = vunpack.c.h.b16 %v397
    %v734 = vunpack.c.l.b16 %v398
    %v735 = vunpack.c.h.b16 %v398
    %v736 = vunpack.c.l.b16 %v399
    %v737 = vunpack.c.h.b16 %v399
    %v738 = vunpack.c.l.b16 %v400
    %v739 = vunpack.c.h.b16 %v400
    %v740 = vunpack.c.l.b16 %v401
    %v741 = vunpack.c.h.b16 %v401
    %v742 = vunpack.c.l.b16 %v402
    %v743 = vunpack.c.h.b16 %v402
    %v744 = vunpack.c.l.b16 %v403
    %v745 = vunpack.c.h.b16 %v403
    %v746 = vunpack.c.l.b16 %v404
    %v747 = vunpack.c.h.b16 %v404
    %v748 = vunpack.c.l.b16 %v405
    %v749 = vunpack.c.h.b16 %v405
    %v750 = vunpack.c.l.b16 %v406
    %v751 = vunpack.c.h.b16 %v406
    %v752 = vunpack.c.l.b16 %v407
    %v753 = vunpack.c.h.b16 %v407
    %v754 = vunpack.c.l.b16 %v408
    %v755 = vunpack.c.h.b16 %v408
    %v756 = vunpack.c.l.b16 %v409
    %v757 = vunpack.c.h.b16 %v409
    %v758 = vunpack.c.l.b16 %v410
    %v759 = vunpack.c.h.b16 %v410
    %v760 = vunpack.c.l.b16 %v411
    %v761 = vunpack.c.h.b16 %v411
    %v762 = vunpack.c.l.b16 %v412
    %v763 = vunpack.c.h.b16 %v412
    %v764 = vunpack.c.l.b16 %v413
    %v765 = vunpack.c.h.b16 %v413
    %v766 = vunpack.c.l.b16 %v414
    %v767 = vunpack.c.h.b16 %v414
    %v768 = vunpack.c.l.b16 %v415
    %v769 = vunpack.c.h.b16 %v415
    %v770 = vunpack.c.l.b16 %v416
    %v771 = vunpack.c.h.b16 %v416
    %v772 = vunpack.c.l.b16 %v417
    %v773 = vunpack.c.h.b16 %v417
    %v774 = vunpack.c.l.b16 %v418
    %v775 = vunpack.c.h.b16 %v418
    %v776 = vunpack.c.l.b16 %v419
    %v777 = vunpack.c.h.b16 %v419
    %v778 = vunpack.c.l.b16 %v420
    %v779 = vunpack.c.h.b16 %v420
    %v780 = vunpack.c.l.b16 %v421
    %v781 = vunpack.c.h.b16 %v421
    %v782 = vunpack.c.l.b16 %v422
    %v783 = vunpack.c.h.b16 %v422
    %v784 = vunpack.c.l.b16 %v423
    %v785 = vunpack.c.h.b16 %v423
    %v786 = vunpack.c.l.b16 %v424
    %v787 = vunpack.c.h.b16 %v424
    %v788 = vunpack.c.l.b16 %v425
    %v789 = vunpack.c.h.b16 %v425
    %v790 = vunpack.c.l.b16 %v426
    %v791 = vunpack.c.h.b16 %v426
    %v792 = vunpack.c.l.b16 %v427
    %v793 = vunpack.c.h.b16 %v427
    %v794 = vunpack.c.l.b16 %v428
    %v795 = vunpack.c.h.b16 %v428
    %v796 = vunpack.c.l.b16 %v429
    %v797 = vunpack.c.h.b16 %v429
    %v798 = vunpack.c.l.b16 %v430
    %v799 = vunpack.c.h.b16 %v430
    %v800 = vunpack.c.l.b16 %v431
    %v801 = vunpack.c.h.b16 %v431
    %v802 = vunpack.c.l.b16 %v432
    %v803 = vunpack.c.h.b16 %v432
    %v804 = vunpack.c.l.b16 %v433
    %v805 = vunpack.c.h.b16 %v433
    %v806 = vunpack.c.l.b16 %v434
    %v807 = vunpack.c.h.b16 %v434
    %v808 = vunpack.c.l.b16 %v435
    %v809 = vunpack.c.h.b16 %v435
    %v810 = vunpack.c.l.b16 %v436
    %v811 = vunpack.c.h.b16 %v436
    %v812 = vunpack.c.l.b16 %v437
    %v813 = vunpack.c.h.b16 %v437
    %v814 = vunpack.c.l.b16 %v438
    %v815 = vunpack.c.h.b16 %v438
    %v816 = vunpack.c.l.b16 %v439
    %v817 = vunpack.c.h.b16 %v439
    %v818 = vunpack.c.l.b16 %v440
    %v819 = vunpack.c.h.b16 %v440
    %v820 = vunpack.c.l.b16 %v441
    %v821 = vunpack.c.h.b16 %v441
    %v822 = vunpack.c.l.b16 %v442
    %v823 = vunpack.c.h.b16 %v442
    %v824 = vunpack.c.l.b16 %v443
    %v825 = vunpack.c.h.b16 %v443
    %v826 = vunpack.c.l.b16 %v444
    %v827 = vunpack.c.h.b16 %v444
    %v828 = vunpack.c.l.b16 %v445
    %v829 = vunpack.c.h.b16 %v445
    %v830 = vunpack.c.l.b16 %v446
    %v831 = vunpack.c.h.b16 %v446
    %v832 = vunpack.c.l.b16 %v447
    %v833 = vunpack.c.h.b16 %v447
    %v834 = vunpack.c.l.b16 %v448
    %v835 = vunpack.c.h.b16 %v448
    %v836 = vunpack.c.l.b16 %v449
    %v837 = vunpack.c.h.b16 %v449
    %v838 = vunpack.c.l.b16 %v450
    %v839 = vunpack.c.h.b16 %v450
    %v840 = vunpack.c.l.b16 %v451
    %v841 = vunpack.c.h.b16 %v451
    %v842 = vunpack.c.l.b16 %v452
    %v843 = vunpack.c.h.b16 %v452
    %v844 = vunpack.c.l.b16 %v453
    %v845 = vunpack.c.h.b16 %v453
    %v846 = vunpack.c.l.b16 %v454
    %v847 = vunpack.c.h.b16 %v454
    %v848 = vunpack.c.l.b16 %v455
    %v849 = vunpack.c.h.b16 %v455
    %v850 = vunpack.c.l.b16 %v456
    %v851 = vunpack.c.h.b16 %v456
    %v852 = vunpack.c.l.b16 %v457
    %v853 = vunpack.c.h.b16 %v457
    %v854 = vunpack.c.l.b16 %v458
    %v855 = vunpack.c.h.b16 %v458
    %v856 = vunpack.c.l.b16 %v459
    %v857 = vunpack.c.h.b16 %v459
    %v858 = vunpack.c.l.b16 %v460
    %v859 = vunpack.c.h.b16 %v460
    %v860 = vunpack.c.l.b16 %v461
    %v861 = vunpack.c.h.b16 %v461
    %v862 = vunpack.c.l.b16 %v462
    %v863 = vunpack.c.h.b16 %v462
    %v864 = vunpack.c.l.b16 %v463
    %v865 = vunpack.c.h.b16 %v463
    %v866 = vunpack.c.l.b16 %v464
    %v867 = vunpack.c.h.b16 %v464
    %v868 = vunpack.c.l.b16 %v465
    %v869 = vunpack.c.h.b16 %v465
    %v870 = vunpack.c.l.b16 %v466
    %v871 = vunpack.c.h.b16 %v466
    %v872 = vunpack.c.l.b16 %v467
    %v873 = vunpack.c.h.b16 %v467
    %v874 = vpack.c.b16 %v622, %v618
    %v875 = vpack.c.b16 %v623, %v619
    %v876 = vpack.c.b16 %v624, %v620
    %v877 = vpack.c.b16 %v625, %v621
    %v878 = vpack.c.b16 %v630, %v626
    %v879 = vpack.c.b16 %v631, %v627
    %v880 = vpack.c.b16 %v632, %v628
    %v881 = vpack.c.b16 %v633, %v629
    %v882 = vpack.c.b16 %v638, %v634
    %v883 = vpack.c.b16 %v639, %v635
    %v884 = vpack.c.b16 %v640, %v636
    %v885 = vpack.c.b16 %v641, %v637
    %v886 = vpack.c.b16 %v646, %v642
    %v887 = vpack.c.b16 %v647, %v643
    %v888 = vpack.c.b16 %v648, %v644
    %v889 = vpack.c.b16 %v649, %v645
    %v890 = vpack.c.b16 %v654, %v650
    %v891 = vpack.c.b16 %v655, %v651
    %v892 = vpack.c.b16 %v656, %v652
    %v893 = vpack.c.b16 %v657, %v653
    %v894 = vpack.c.b16 %v662, %v658
    %v895 = vpack.c.b16 %v663, %v659
    %v896 = vpack.c.b16 %v664, %v660
    %v897 = vpack.c.b16 %v665, %v661
    %v898 = vpack.c.b16 %v670, %v666
    %v899 = vpack.c.b16 %v671, %v667
    %v900 = vpack.c.b16 %v672, %v668
    %v901 = vpack.c.b16 %v673, %v669
    %v902 = vpack.c.b16 %v678, %v674
    %v903 = vpack.c.b16 %v679, %v675
    %v904 = vpack.c.b16 %v680, %v676
    %v905 = vpack.c.b16 %v681, %v677
    %v906 = vpack.c.b16 %v686, %v682
    %v907 = vpack.c.b16 %v687, %v683
    %v908 = vpack.c.b16 %v688, %v684
    %v909 = vpack.c.b16 %v689, %v685
    %v910 = vpack.c.b16 %v694, %v690
    %v911 = vpack.c.b16 %v695, %v691
    %v912 = vpack.c.b16 %v696, %v692
    %v913 = vpack.c.b16 %v697, %v693
    %v914 = vpack.c.b16 %v702, %v698
    %v915 = vpack.c.b16 %v703, %v699
    %v916 = vpack.c.b16 %v704, %v700
    %v917 = vpack.c.b16 %v705, %v701
    %v918 = vpack.c.b16 %v710, %v706
    %v919 = vpack.c.b16 %v711, %v707
    %v920 = vpack.c.b16 %v712, %v708
    %v921 = vpack.c.b16 %v713, %v709
    %v922 = vpack.c.b16 %v718, %v714
    %v923 = vpack.c.b16 %v719, %v715
    %v924 = vpack.c.b16 %v720, %v716
    %v925 = vpack.c.b16 %v721, %v717
    %v926 = vpack.c.b16 %v726, %v722
    %v927 = vpack.c.b16 %v727, %v723
    %v928 = vpack.c.b16 %v728, %v724
    %v929 = vpack.c.b16 %v729, %v725
    %v930 = vpack.c.b16 %v734, %v730
    %v931 = vpack.c.b16 %v735, %v731
    %v932 = vpack.c.b16 %v736, %v732
    %v933 = vpack.c.b16 %v737, %v733
    %v934 = vpack.c.b16 %v742, %v738
    %v935 = vpack.c.b16 %v743, %v739
    %v936 = vpack.c.b16 %v744, %v740
    %v937 = vpack.c.b16 %v745, %v741
    %v938 = vpack.c.b16 %v750, %v746
    %v939 = vpack.c.b16 %v751, %v747
    %v940 = vpack.c.b16 %v752, %v748
    %v941 = vpack.c.b16 %v753, %v749
    %v942 = vpack.c.b16 %v758, %v754
    %v943 = vpack.c.b16 %v759, %v755
    %v944 = vpack.c.b16 %v760, %v756
    %v945 = vpack.c.b16 %v761, %v757
    %v946 = vpack.c.b16 %v766, %v762
    %v947 = vpack.c.b16 %v767, %v763
    %v948 = vpack.c.b16 %v768, %v764
    %v949 = vpack.c.b16 %v769, %v765
    %v950 = vpack.c.b16 %v774, %v770
    %v951 = vpack.c.b16 %v775, %v771
    %v952 = vpack.c.b16 %v776, %v772
    %v953 = vpack.c.b16 %v777, %v773
    %v954 = vpack.c.b16 %v782, %v778
    %v955 = vpack.c.b16 %v783, %v779
    %v956 = vpack.c.b16 %v784, %v780
    %v957 = vpack.c.b16 %v785, %v781
    %v958 = vpack.c.b16 %v790, %v786
    %v959 = vpack.c.b16 %v791, %v787
    %v960 = vpack.c.b16 %v792, %v788
    %v961 = vpack.c.b16 %v793, %v789
    %v962 = vpack.c.b16 %v798, %v794
    %v963 = vpack.c.b16 %v799, %v795
    %v964 = vpack.c.b16 %v800, %v796
    %v965 = vpack.c.b16 %v801, %v797
    %v966 = vpack.c.b16 %v806, %v802
    %v967 = vpack.c.b16 %v807, %v803
    %v968 = vpack.c.b16 %v808, %v804
    %v969 = vpack.c.b16 %v809, %v805
    %v970 = vpack.c.b16 %v814, %v810
    %v971 = vpack.c.b16 %v815, %v811
    %v972 = vpack.c.b16 %v816, %v812
    %v973 = vpack.c.b16 %v817, %v813
    %v974 = vpack.c.b16 %v822, %v818
    %v975 = vpack.c.b16 %v823, %v819
    %v976 = vpack.c.b16 %v824, %v820
    %v977 = vpack.c.b16 %v825, %v821
    %v978 = vpack.c.b16 %v830, %v826
    %v979 = vpack.c.b16 %v831, %v827
    %v980 = vpack.c.b16 %v832, %v828
    %v981 = vpack.c.b16 %v833, %v829
    %v982 = vpack.c.b16 %v838, %v834
    %v983 = vpack.c.b16 %v839, %v835
    %v984 = vpack.c.b16 %v840, %v836
    %v985 = vpack.c.b16 %v841, %v837
    %v986 = vpack.c.b16 %v846, %v842
    %v987 = vpack.c.b16 %v847, %v843
    %v988 = vpack.c.b16 %v848, %v844
    %v989 = vpack.c.b16 %v849, %v845
    %v990 = vpack.c.b16 %v854, %v850
    %v991 = vpack.c.b16 %v855, %v851
    %v992 = vpack.c.b16 %v856, %v852
    %v993 = vpack.c.b16 %v857, %v853
    %v994 = vpack.c.b16 %v862, %v858
    %v995 = vpack.c.b16 %v863, %v859
    %v996 = vpack.c.b16 %v864, %v860
    %v997 = vpack.c.b16 %v865, %v861
    %v998 = vpack.c.b16 %v870, %v866
    %v999 = vpack.c.b16 %v871, %v867
    %v1000 = vpack.c.b16 %v872, %v868
    %v1001 = vpack.c.b16 %v873, %v869
    %1130 = vmatprep.subr.bf16.mxu0 %v903
    %1131 = vmatpush1.bf16.msra.mxu0 %v902
    %1132 = vmatprep.subr.bf16.mxu0 %v899
    %1133 = vmatpush1.bf16.msra.mxu0 %v898
    %1134 = vmatprep.subr.bf16.mxu0 %v895
    %1135 = vmatpush1.bf16.msra.mxu0 %v894
    %1136 = vmatprep.subr.bf16.mxu0 %v891
    %1137 = vmatpush1.bf16.msra.mxu0 %v890
    %1138 = vmatprep.subr.bf16.mxu0 %v887
    %1139 = vmatpush1.bf16.msra.mxu0 %v886
    %1140 = vmatprep.subr.bf16.mxu0 %v883
    %1141 = vmatpush1.bf16.msra.mxu0 %v882
    %1142 = vmatprep.subr.bf16.mxu0 %v879
    %1143 = vmatpush1.bf16.msra.mxu0 %v878
    %1144 = vmatprep.subr.bf16.mxu0 %v875
    %1145 = vmatpush1.bf16.msra.mxu0 %v874
    %1146 = vmatprep.subr.bf16.mxu0 %v935
    %1147 = vmatpush2.bf16.msra.mxu0 %v934
    %1148 = vmatprep.subr.bf16.mxu0 %v931
    %1149 = vmatpush2.bf16.msra.mxu0 %v930
    %1150 = vmatprep.subr.bf16.mxu0 %v927
    %1151 = vmatpush2.bf16.msra.mxu0 %v926
    %1152 = vmatprep.subr.bf16.mxu0 %v923
    %1153 = vmatpush2.bf16.msra.mxu0 %v922
    %1154 = vmatprep.subr.bf16.mxu0 %v919
    %1155 = vmatpush2.bf16.msra.mxu0 %v918
    %1156 = vmatprep.subr.bf16.mxu0 %v915
    %1157 = vmatpush2.bf16.msra.mxu0 %v914
    %1158 = vmatprep.subr.bf16.mxu0 %v911
    %1159 = vmatpush2.bf16.msra.mxu0 %v910
    %1160 = vmatprep.subr.bf16.mxu0 %v907
    %1161 = vmatpush2.bf16.msra.mxu0 %v906
    %1162 = vmatprep.mubr.bf16.mxu0 %v337
    %1163 = vmatmul.mubr.bf16.gmra.mxu0 %v336
    %v1164 = vpop.f32.mrf.mxu0
    %v1165 = vadd.f32 %v473, %v1164
    %v1166 = vpop.f32.mrf.mxu0
    %v1167 = vadd.f32 %v477, %v1166
    %v1168 = vpop.f32.mrf.mxu0
    %v1169 = vpop.f32.mrf.mxu0
    %1170 = vdwg.mxu0
    %1171 = vmatprep.subr.bf16.mxu0 %v967
    %1172 = vmatpush1.bf16.msra.mxu0 %v966
    %1173 = vmatprep.subr.bf16.mxu0 %v963
    %1174 = vmatpush1.bf16.msra.mxu0 %v962
    %1175 = vmatprep.subr.bf16.mxu0 %v959
    %1176 = vmatpush1.bf16.msra.mxu0 %v958
    %1177 = vmatprep.subr.bf16.mxu0 %v955
    %1178 = vmatpush1.bf16.msra.mxu0 %v954
    %1179 = vmatprep.subr.bf16.mxu0 %v951
    %1180 = vmatpush1.bf16.msra.mxu0 %v950
    %1181 = vmatprep.subr.bf16.mxu0 %v947
    %1182 = vmatpush1.bf16.msra.mxu0 %v946
    %1183 = vmatprep.subr.bf16.mxu0 %v943
    %1184 = vmatpush1.bf16.msra.mxu0 %v942
    %1185 = vmatprep.subr.bf16.mxu0 %v939
    %1186 = vmatpush1.bf16.msra.mxu0 %v938
    %1187 = vmatprep.subr.bf16.mxu0 %v999
    %1188 = vmatpush2.bf16.msra.mxu0 %v998
    %1189 = vmatprep.subr.bf16.mxu0 %v995
    %1190 = vmatpush2.bf16.msra.mxu0 %v994
    %1191 = vmatprep.subr.bf16.mxu0 %v991
    %1192 = vmatpush2.bf16.msra.mxu0 %v990
    %1193 = vmatprep.subr.bf16.mxu0 %v987
    %1194 = vmatpush2.bf16.msra.mxu0 %v986
    %1195 = vmatprep.subr.bf16.mxu0 %v983
    %1196 = vmatpush2.bf16.msra.mxu0 %v982
    %1197 = vmatprep.subr.bf16.mxu0 %v979
    %1198 = vmatpush2.bf16.msra.mxu0 %v978
    %1199 = vmatprep.subr.bf16.mxu0 %v975
    %1200 = vmatpush2.bf16.msra.mxu0 %v974
    %1201 = vmatprep.subr.bf16.mxu0 %v971
    %1202 = vmatpush2.bf16.msra.mxu0 %v970
    %1203 = vmatprep.mubr.bf16.mxu0 %v339
    %1204 = vmatmul.mubr.bf16.gmra.mxu0 %v338
    %v1205 = vpop.f32.mrf.mxu0
    %v1206 = vadd.f32 %v1165, %v1205
    %v1207 = vpop.f32.mrf.mxu0
    %v1208 = vadd.f32 %v1167, %v1207
    %v1209 = vpop.f32.mrf.mxu0
    %v1210 = vpop.f32.mrf.mxu0
    %1211 = vdwg.mxu0
    %1212 = vmatprep.subr.bf16.mxu0 %v905
    %1213 = vmatpush1.bf16.msra.mxu0 %v904
    %1214 = vmatprep.subr.bf16.mxu0 %v901
    %1215 = vmatpush1.bf16.msra.mxu0 %v900
    %1216 = vmatprep.subr.bf16.mxu0 %v897
    %1217 = vmatpush1.bf16.msra.mxu0 %v896
    %1218 = vmatprep.subr.bf16.mxu0 %v893
    %1219 = vmatpush1.bf16.msra.mxu0 %v892
    %1220 = vmatprep.subr.bf16.mxu0 %v889
    %1221 = vmatpush1.bf16.msra.mxu0 %v888
    %1222 = vmatprep.subr.bf16.mxu0 %v885
    %1223 = vmatpush1.bf16.msra.mxu0 %v884
    %1224 = vmatprep.subr.bf16.mxu0 %v881
    %1225 = vmatpush1.bf16.msra.mxu0 %v880
    %1226 = vmatprep.subr.bf16.mxu0 %v877
    %1227 = vmatpush1.bf16.msra.mxu0 %v876
    %1228 = vmatprep.subr.bf16.mxu0 %v937
    %1229 = vmatpush2.bf16.msra.mxu0 %v936
    %1230 = vmatprep.subr.bf16.mxu0 %v933
    %1231 = vmatpush2.bf16.msra.mxu0 %v932
    %1232 = vmatprep.subr.bf16.mxu0 %v929
    %1233 = vmatpush2.bf16.msra.mxu0 %v928
    %1234 = vmatprep.subr.bf16.mxu0 %v925
    %1235 = vmatpush2.bf16.msra.mxu0 %v924
    %1236 = vmatprep.subr.bf16.mxu0 %v921
    %1237 = vmatpush2.bf16.msra.mxu0 %v920
    %1238 = vmatprep.subr.bf16.mxu0 %v917
    %1239 = vmatpush2.bf16.msra.mxu0 %v916
    %1240 = vmatprep.subr.bf16.mxu0 %v913
    %1241 = vmatpush2.bf16.msra.mxu0 %v912
    %1242 = vmatprep.subr.bf16.mxu0 %v909
    %1243 = vmatpush2.bf16.msra.mxu0 %v908
    %1244 = vmatprep.mubr.bf16.mxu0 %v337
    %1245 = vmatmul.mubr.bf16.gmra.mxu0 %v336
    %v1246 = vpop.f32.mrf.mxu0
    %v1247 = vadd.f32 %v481, %v1246
    %v1248 = vpop.f32.mrf.mxu0
    %v1249 = vadd.f32 %v485, %v1248
    %v1250 = vpop.f32.mrf.mxu0
    %v1251 = vpop.f32.mrf.mxu0
    %1252 = vdwg.mxu0
    %1253 = vmatprep.subr.bf16.mxu0 %v969
    %1254 = vmatpush1.bf16.msra.mxu0 %v968
    %1255 = vmatprep.subr.bf16.mxu0 %v965
    %1256 = vmatpush1.bf16.msra.mxu0 %v964
    %1257 = vmatprep.subr.bf16.mxu0 %v961
    %1258 = vmatpush1.bf16.msra.mxu0 %v960
    %1259 = vmatprep.subr.bf16.mxu0 %v957
    %1260 = vmatpush1.bf16.msra.mxu0 %v956
    %1261 = vmatprep.subr.bf16.mxu0 %v953
    %1262 = vmatpush1.bf16.msra.mxu0 %v952
    %1263 = vmatprep.subr.bf16.mxu0 %v949
    %1264 = vmatpush1.bf16.msra.mxu0 %v948
    %1265 = vmatprep.subr.bf16.mxu0 %v945
    %1266 = vmatpush1.bf16.msra.mxu0 %v944
    %1267 = vmatprep.subr.bf16.mxu0 %v941
    %1268 = vmatpush1.bf16.msra.mxu0 %v940
    %1269 = vmatprep.subr.bf16.mxu0 %v1001
    %1270 = vmatpush2.bf16.msra.mxu0 %v1000
    %1271 = vmatprep.subr.bf16.mxu0 %v997
    %1272 = vmatpush2.bf16.msra.mxu0 %v996
    %1273 = vmatprep.subr.bf16.mxu0 %v993
    %1274 = vmatpush2.bf16.msra.mxu0 %v992
    %1275 = vmatprep.subr.bf16.mxu0 %v989
    %1276 = vmatpush2.bf16.msra.mxu0 %v988
    %1277 = vmatprep.subr.bf16.mxu0 %v985
    %1278 = vmatpush2.bf16.msra.mxu0 %v984
    %1279 = vmatprep.subr.bf16.mxu0 %v981
    %1280 = vmatpush2.bf16.msra.mxu0 %v980
    %1281 = vmatprep.subr.bf16.mxu0 %v977
    %1282 = vmatpush2.bf16.msra.mxu0 %v976
    %1283 = vmatprep.subr.bf16.mxu0 %v973
    %1284 = vmatpush2.bf16.msra.mxu0 %v972
    %1285 = vmatprep.mubr.bf16.mxu0 %v339
    %1286 = vmatmul.mubr.bf16.gmra.mxu0 %v338
    %v1287 = vpop.f32.mrf.mxu0
    %v1288 = vadd.f32 %v1247, %v1287
    %v1289 = vpop.f32.mrf.mxu0
    %v1290 = vadd.f32 %v1249, %v1289
    %v1291 = vpop.f32.mrf.mxu0
    %v1292 = vpop.f32.mrf.mxu0
    %1293 = vdwg.mxu0
    %v1294 = vmax.f32 %v1206, 0.0
    %v1295 = vmax.f32 %v1208, 0.0
    %v1296 = vmax.f32 %v1288, 0.0
    %v1297 = vmax.f32 %v1290, 0.0
    %v1298 = vpack.c.bf16 %v1294, %v1294
    %v1299 = vpack.c.bf16 %v1295, %v1295
    %v1300 = vpack.c.bf16 %v1296, %v1296
    %v1301 = vpack.c.bf16 %v1297, %v1297
    %v1302 = vld [vmem:[%s5] sm:$0xff]
    %v1303 = vld [vmem:[%s5 + $0x8] sm:$0xff]
    %v1304 = vld [vmem:[%s5 + $0x10] sm:$0xff]
    %v1305 = vld [vmem:[%s5 + $0x18] sm:$0xff]
    %v1306 = vld [vmem:[%s5 + $0x20] sm:$0xff]
    %v1307 = vld [vmem:[%s5 + $0x28] sm:$0xff]
    %v1308 = vld [vmem:[%s5 + $0x30] sm:$0xff]
    %v1309 = vld [vmem:[%s5 + $0x38] sm:$0xff]
    %v1310 = vld [vmem:[%s5 + $0x40] sm:$0xff]
    %v1311 = vld [vmem:[%s5 + $0x48] sm:$0xff]
    %v1312 = vld [vmem:[%s5 + $0x50] sm:$0xff]
    %v1313 = vld [vmem:[%s5 + $0x58] sm:$0xff]
    %v1314 = vld [vmem:[%s5 + $0x60] sm:$0xff]
    %v1315 = vld [vmem:[%s5 + $0x68] sm:$0xff]
    %v1316 = vld [vmem:[%s5 + $0x70] sm:$0xff]
    %v1317 = vld [vmem:[%s5 + $0x78] sm:$0xff]
    %v1318 = vld [vmem:[%s5 + $0x80] sm:$0xff]
    %v1319 = vld [vmem:[%s5 + $0x88] sm:$0xff]
    %v1320 = vld [vmem:[%s5 + $0x90] sm:$0xff]
    %v1321 = vld [vmem:[%s5 + $0x98] sm:$0xff]
    %v1322 = vld [vmem:[%s5 + $0xa0] sm:$0xff]
    %v1323 = vld [vmem:[%s5 + $0xa8] sm:$0xff]
    %v1324 = vld [vmem:[%s5 + $0xb0] sm:$0xff]
    %v1325 = vld [vmem:[%s5 + $0xb8] sm:$0xff]
    %v1326 = vld [vmem:[%s5 + $0xc0] sm:$0xff]
    %v1327 = vld [vmem:[%s5 + $0xc8] sm:$0xff]
    %v1328 = vld [vmem:[%s5 + $0xd0] sm:$0xff]
    %v1329 = vld [vmem:[%s5 + $0xd8] sm:$0xff]
    %v1330 = vld [vmem:[%s5 + $0xe0] sm:$0xff]
    %v1331 = vld [vmem:[%s5 + $0xe8] sm:$0xff]
    %v1332 = vld [vmem:[%s5 + $0xf0] sm:$0xff]
    %v1333 = vld [vmem:[%s5 + $0xf8] sm:$0xff]
    %v1334 = vld [vmem:[%s5 + $0x100] sm:$0xff]
    %v1335 = vld [vmem:[%s5 + $0x108] sm:$0xff]
    %v1336 = vld [vmem:[%s5 + $0x110] sm:$0xff]
    %v1337 = vld [vmem:[%s5 + $0x118] sm:$0xff]
    %v1338 = vld [vmem:[%s5 + $0x120] sm:$0xff]
    %v1339 = vld [vmem:[%s5 + $0x128] sm:$0xff]
    %v1340 = vld [vmem:[%s5 + $0x130] sm:$0xff]
    %v1341 = vld [vmem:[%s5 + $0x138] sm:$0xff]
    %v1342 = vld [vmem:[%s5 + $0x140] sm:$0xff]
    %v1343 = vld [vmem:[%s5 + $0x148] sm:$0xff]
    %v1344 = vld [vmem:[%s5 + $0x150] sm:$0xff]
    %v1345 = vld [vmem:[%s5 + $0x158] sm:$0xff]
    %v1346 = vld [vmem:[%s5 + $0x160] sm:$0xff]
    %v1347 = vld [vmem:[%s5 + $0x168] sm:$0xff]
    %v1348 = vld [vmem:[%s5 + $0x170] sm:$0xff]
    %v1349 = vld [vmem:[%s5 + $0x178] sm:$0xff]
    %v1350 = vld [vmem:[%s5 + $0x180] sm:$0xff]
    %v1351 = vld [vmem:[%s5 + $0x188] sm:$0xff]
    %v1352 = vld [vmem:[%s5 + $0x190] sm:$0xff]
    %v1353 = vld [vmem:[%s5 + $0x198] sm:$0xff]
    %v1354 = vld [vmem:[%s5 + $0x1a0] sm:$0xff]
    %v1355 = vld [vmem:[%s5 + $0x1a8] sm:$0xff]
    %v1356 = vld [vmem:[%s5 + $0x1b0] sm:$0xff]
    %v1357 = vld [vmem:[%s5 + $0x1b8] sm:$0xff]
    %v1358 = vld [vmem:[%s5 + $0x1c0] sm:$0xff]
    %v1359 = vld [vmem:[%s5 + $0x1c8] sm:$0xff]
    %v1360 = vld [vmem:[%s5 + $0x1d0] sm:$0xff]
    %v1361 = vld [vmem:[%s5 + $0x1d8] sm:$0xff]
    %v1362 = vld [vmem:[%s5 + $0x1e0] sm:$0xff]
    %v1363 = vld [vmem:[%s5 + $0x1e8] sm:$0xff]
    %v1364 = vld [vmem:[%s5 + $0x1f0] sm:$0xff]
    %v1365 = vld [vmem:[%s5 + $0x1f8] sm:$0xff]
    %v1366 = vld [vmem:[%s5 + $0x200] sm:$0xff]
    %v1367 = vld [vmem:[%s5 + $0x208] sm:$0xff]
    %v1368 = vld [vmem:[%s5 + $0x210] sm:$0xff]
    %v1369 = vld [vmem:[%s5 + $0x218] sm:$0xff]
    %v1370 = vld [vmem:[%s5 + $0x220] sm:$0xff]
    %v1371 = vld [vmem:[%s5 + $0x228] sm:$0xff]
    %v1372 = vld [vmem:[%s5 + $0x230] sm:$0xff]
    %v1373 = vld [vmem:[%s5 + $0x238] sm:$0xff]
    %v1374 = vld [vmem:[%s5 + $0x240] sm:$0xff]
    %v1375 = vld [vmem:[%s5 + $0x248] sm:$0xff]
    %v1376 = vld [vmem:[%s5 + $0x250] sm:$0xff]
    %v1377 = vld [vmem:[%s5 + $0x258] sm:$0xff]
    %v1378 = vld [vmem:[%s5 + $0x260] sm:$0xff]
    %v1379 = vld [vmem:[%s5 + $0x268] sm:$0xff]
    %v1380 = vld [vmem:[%s5 + $0x270] sm:$0xff]
    %v1381 = vld [vmem:[%s5 + $0x278] sm:$0xff]
    %v1382 = vld [vmem:[%s5 + $0x280] sm:$0xff]
    %v1383 = vld [vmem:[%s5 + $0x288] sm:$0xff]
    %v1384 = vld [vmem:[%s5 + $0x290] sm:$0xff]
    %v1385 = vld [vmem:[%s5 + $0x298] sm:$0xff]
    %v1386 = vld [vmem:[%s5 + $0x2a0] sm:$0xff]
    %v1387 = vld [vmem:[%s5 + $0x2a8] sm:$0xff]
    %v1388 = vld [vmem:[%s5 + $0x2b0] sm:$0xff]
    %v1389 = vld [vmem:[%s5 + $0x2b8] sm:$0xff]
    %v1390 = vld [vmem:[%s5 + $0x2c0] sm:$0xff]
    %v1391 = vld [vmem:[%s5 + $0x2c8] sm:$0xff]
    %v1392 = vld [vmem:[%s5 + $0x2d0] sm:$0xff]
    %v1393 = vld [vmem:[%s5 + $0x2d8] sm:$0xff]
    %v1394 = vld [vmem:[%s5 + $0x2e0] sm:$0xff]
    %v1395 = vld [vmem:[%s5 + $0x2e8] sm:$0xff]
    %v1396 = vld [vmem:[%s5 + $0x2f0] sm:$0xff]
    %v1397 = vld [vmem:[%s5 + $0x2f8] sm:$0xff]
    %v1398 = vld [vmem:[%s5 + $0x300] sm:$0xff]
    %v1399 = vld [vmem:[%s5 + $0x308] sm:$0xff]
    %v1400 = vld [vmem:[%s5 + $0x310] sm:$0xff]
    %v1401 = vld [vmem:[%s5 + $0x318] sm:$0xff]
    %v1402 = vld [vmem:[%s5 + $0x320] sm:$0xff]
    %v1403 = vld [vmem:[%s5 + $0x328] sm:$0xff]
    %v1404 = vld [vmem:[%s5 + $0x330] sm:$0xff]
    %v1405 = vld [vmem:[%s5 + $0x338] sm:$0xff]
    %v1406 = vld [vmem:[%s5 + $0x340] sm:$0xff]
    %v1407 = vld [vmem:[%s5 + $0x348] sm:$0xff]
    %v1408 = vld [vmem:[%s5 + $0x350] sm:$0xff]
    %v1409 = vld [vmem:[%s5 + $0x358] sm:$0xff]
    %v1410 = vld [vmem:[%s5 + $0x360] sm:$0xff]
    %v1411 = vld [vmem:[%s5 + $0x368] sm:$0xff]
    %v1412 = vld [vmem:[%s5 + $0x370] sm:$0xff]
    %v1413 = vld [vmem:[%s5 + $0x378] sm:$0xff]
    %v1414 = vld [vmem:[%s5 + $0x380] sm:$0xff]
    %v1415 = vld [vmem:[%s5 + $0x388] sm:$0xff]
    %v1416 = vld [vmem:[%s5 + $0x390] sm:$0xff]
    %v1417 = vld [vmem:[%s5 + $0x398] sm:$0xff]
    %v1418 = vld [vmem:[%s5 + $0x3a0] sm:$0xff]
    %v1419 = vld [vmem:[%s5 + $0x3a8] sm:$0xff]
    %v1420 = vld [vmem:[%s5 + $0x3b0] sm:$0xff]
    %v1421 = vld [vmem:[%s5 + $0x3b8] sm:$0xff]
    %v1422 = vld [vmem:[%s5 + $0x3c0] sm:$0xff]
    %v1423 = vld [vmem:[%s5 + $0x3c8] sm:$0xff]
    %v1424 = vld [vmem:[%s5 + $0x3d0] sm:$0xff]
    %v1425 = vld [vmem:[%s5 + $0x3d8] sm:$0xff]
    %v1426 = vld [vmem:[%s5 + $0x3e0] sm:$0xff]
    %v1427 = vld [vmem:[%s5 + $0x3e8] sm:$0xff]
    %v1428 = vld [vmem:[%s5 + $0x3f0] sm:$0xff]
    %v1429 = vld [vmem:[%s5 + $0x3f8] sm:$0xff]
    %v1430 = vld [vmem:[%s6] sm:$0xf]
    %v1432 = vlaneseq
    %v1433 = vshrl.u32 %v1432, 7
    %v1434 = vsub.s32 0, %v1433
    %v1435 = vrot.slane %v1430, %v1434
    %v1436 = vlaneseq
    %v1437 = vshrl.u32 %v1436, 7
    %v1438 = vsub.s32 1, %v1437
    %v1439 = vrot.slane %v1430, %v1438
    %v1440 = vlaneseq
    %v1441 = vshrl.u32 %v1440, 7
    %v1442 = vsub.s32 2, %v1441
    %v1443 = vrot.slane %v1430, %v1442
    %v1444 = vlaneseq
    %v1445 = vshrl.u32 %v1444, 7
    %v1446 = vsub.s32 3, %v1445
    %v1447 = vrot.slane %v1430, %v1446
    %v1580 = vunpack.c.l.b16 %v1302
    %v1581 = vunpack.c.h.b16 %v1302
    %v1582 = vunpack.c.l.b16 %v1303
    %v1583 = vunpack.c.h.b16 %v1303
    %v1584 = vunpack.c.l.b16 %v1304
    %v1585 = vunpack.c.h.b16 %v1304
    %v1586 = vunpack.c.l.b16 %v1305
    %v1587 = vunpack.c.h.b16 %v1305
    %v1588 = vunpack.c.l.b16 %v1306
    %v1589 = vunpack.c.h.b16 %v1306
    %v1590 = vunpack.c.l.b16 %v1307
    %v1591 = vunpack.c.h.b16 %v1307
    %v1592 = vunpack.c.l.b16 %v1308
    %v1593 = vunpack.c.h.b16 %v1308
    %v1594 = vunpack.c.l.b16 %v1309
    %v1595 = vunpack.c.h.b16 %v1309
    %v1596 = vunpack.c.l.b16 %v1310
    %v1597 = vunpack.c.h.b16 %v1310
    %v1598 = vunpack.c.l.b16 %v1311
    %v1599 = vunpack.c.h.b16 %v1311
    %v1600 = vunpack.c.l.b16 %v1312
    %v1601 = vunpack.c.h.b16 %v1312
    %v1602 = vunpack.c.l.b16 %v1313
    %v1603 = vunpack.c.h.b16 %v1313
    %v1604 = vunpack.c.l.b16 %v1314
    %v1605 = vunpack.c.h.b16 %v1314
    %v1606 = vunpack.c.l.b16 %v1315
    %v1607 = vunpack.c.h.b16 %v1315
    %v1608 = vunpack.c.l.b16 %v1316
    %v1609 = vunpack.c.h.b16 %v1316
    %v1610 = vunpack.c.l.b16 %v1317
    %v1611 = vunpack.c.h.b16 %v1317
    %v1612 = vunpack.c.l.b16 %v1318
    %v1613 = vunpack.c.h.b16 %v1318
    %v1614 = vunpack.c.l.b16 %v1319
    %v1615 = vunpack.c.h.b16 %v1319
    %v1616 = vunpack.c.l.b16 %v1320
    %v1617 = vunpack.c.h.b16 %v1320
    %v1618 = vunpack.c.l.b16 %v1321
    %v1619 = vunpack.c.h.b16 %v1321
    %v1620 = vunpack.c.l.b16 %v1322
    %v1621 = vunpack.c.h.b16 %v1322
    %v1622 = vunpack.c.l.b16 %v1323
    %v1623 = vunpack.c.h.b16 %v1323
    %v1624 = vunpack.c.l.b16 %v1324
    %v1625 = vunpack.c.h.b16 %v1324
    %v1626 = vunpack.c.l.b16 %v1325
    %v1627 = vunpack.c.h.b16 %v1325
    %v1628 = vunpack.c.l.b16 %v1326
    %v1629 = vunpack.c.h.b16 %v1326
    %v1630 = vunpack.c.l.b16 %v1327
    %v1631 = vunpack.c.h.b16 %v1327
    %v1632 = vunpack.c.l.b16 %v1328
    %v1633 = vunpack.c.h.b16 %v1328
    %v1634 = vunpack.c.l.b16 %v1329
    %v1635 = vunpack.c.h.b16 %v1329
    %v1636 = vunpack.c.l.b16 %v1330
    %v1637 = vunpack.c.h.b16 %v1330
    %v1638 = vunpack.c.l.b16 %v1331
    %v1639 = vunpack.c.h.b16 %v1331
    %v1640 = vunpack.c.l.b16 %v1332
    %v1641 = vunpack.c.h.b16 %v1332
    %v1642 = vunpack.c.l.b16 %v1333
    %v1643 = vunpack.c.h.b16 %v1333
    %v1644 = vunpack.c.l.b16 %v1334
    %v1645 = vunpack.c.h.b16 %v1334
    %v1646 = vunpack.c.l.b16 %v1335
    %v1647 = vunpack.c.h.b16 %v1335
    %v1648 = vunpack.c.l.b16 %v1336
    %v1649 = vunpack.c.h.b16 %v1336
    %v1650 = vunpack.c.l.b16 %v1337
    %v1651 = vunpack.c.h.b16 %v1337
    %v1652 = vunpack.c.l.b16 %v1338
    %v1653 = vunpack.c.h.b16 %v1338
    %v1654 = vunpack.c.l.b16 %v1339
    %v1655 = vunpack.c.h.b16 %v1339
    %v1656 = vunpack.c.l.b16 %v1340
    %v1657 = vunpack.c.h.b16 %v1340
    %v1658 = vunpack.c.l.b16 %v1341
    %v1659 = vunpack.c.h.b16 %v1341
    %v1660 = vunpack.c.l.b16 %v1342
    %v1661 = vunpack.c.h.b16 %v1342
    %v1662 = vunpack.c.l.b16 %v1343
    %v1663 = vunpack.c.h.b16 %v1343
    %v1664 = vunpack.c.l.b16 %v1344
    %v1665 = vunpack.c.h.b16 %v1344
    %v1666 = vunpack.c.l.b16 %v1345
    %v1667 = vunpack.c.h.b16 %v1345
    %v1668 = vunpack.c.l.b16 %v1346
    %v1669 = vunpack.c.h.b16 %v1346
    %v1670 = vunpack.c.l.b16 %v1347
    %v1671 = vunpack.c.h.b16 %v1347
    %v1672 = vunpack.c.l.b16 %v1348
    %v1673 = vunpack.c.h.b16 %v1348
    %v1674 = vunpack.c.l.b16 %v1349
    %v1675 = vunpack.c.h.b16 %v1349
    %v1676 = vunpack.c.l.b16 %v1350
    %v1677 = vunpack.c.h.b16 %v1350
    %v1678 = vunpack.c.l.b16 %v1351
    %v1679 = vunpack.c.h.b16 %v1351
    %v1680 = vunpack.c.l.b16 %v1352
    %v1681 = vunpack.c.h.b16 %v1352
    %v1682 = vunpack.c.l.b16 %v1353
    %v1683 = vunpack.c.h.b16 %v1353
    %v1684 = vunpack.c.l.b16 %v1354
    %v1685 = vunpack.c.h.b16 %v1354
    %v1686 = vunpack.c.l.b16 %v1355
    %v1687 = vunpack.c.h.b16 %v1355
    %v1688 = vunpack.c.l.b16 %v1356
    %v1689 = vunpack.c.h.b16 %v1356
    %v1690 = vunpack.c.l.b16 %v1357
    %v1691 = vunpack.c.h.b16 %v1357
    %v1692 = vunpack.c.l.b16 %v1358
    %v1693 = vunpack.c.h.b16 %v1358
    %v1694 = vunpack.c.l.b16 %v1359
    %v1695 = vunpack.c.h.b16 %v1359
    %v1696 = vunpack.c.l.b16 %v1360
    %v1697 = vunpack.c.h.b16 %v1360
    %v1698 = vunpack.c.l.b16 %v1361
    %v1699 = vunpack.c.h.b16 %v1361
    %v1700 = vunpack.c.l.b16 %v1362
    %v1701 = vunpack.c.h.b16 %v1362
    %v1702 = vunpack.c.l.b16 %v1363
    %v1703 = vunpack.c.h.b16 %v1363
    %v1704 = vunpack.c.l.b16 %v1364
    %v1705 = vunpack.c.h.b16 %v1364
    %v1706 = vunpack.c.l.b16 %v1365
    %v1707 = vunpack.c.h.b16 %v1365
    %v1708 = vunpack.c.l.b16 %v1366
    %v1709 = vunpack.c.h.b16 %v1366
    %v1710 = vunpack.c.l.b16 %v1367
    %v1711 = vunpack.c.h.b16 %v1367
    %v1712 = vunpack.c.l.b16 %v1368
    %v1713 = vunpack.c.h.b16 %v1368
    %v1714 = vunpack.c.l.b16 %v1369
    %v1715 = vunpack.c.h.b16 %v1369
    %v1716 = vunpack.c.l.b16 %v1370
    %v1717 = vunpack.c.h.b16 %v1370
    %v1718 = vunpack.c.l.b16 %v1371
    %v1719 = vunpack.c.h.b16 %v1371
    %v1720 = vunpack.c.l.b16 %v1372
    %v1721 = vunpack.c.h.b16 %v1372
    %v1722 = vunpack.c.l.b16 %v1373
    %v1723 = vunpack.c.h.b16 %v1373
    %v1724 = vunpack.c.l.b16 %v1374
    %v1725 = vunpack.c.h.b16 %v1374
    %v1726 = vunpack.c.l.b16 %v1375
    %v1727 = vunpack.c.h.b16 %v1375
    %v1728 = vunpack.c.l.b16 %v1376
    %v1729 = vunpack.c.h.b16 %v1376
    %v1730 = vunpack.c.l.b16 %v1377
    %v1731 = vunpack.c.h.b16 %v1377
    %v1732 = vunpack.c.l.b16 %v1378
    %v1733 = vunpack.c.h.b16 %v1378
    %v1734 = vunpack.c.l.b16 %v1379
    %v1735 = vunpack.c.h.b16 %v1379
    %v1736 = vunpack.c.l.b16 %v1380
    %v1737 = vunpack.c.h.b16 %v1380
    %v1738 = vunpack.c.l.b16 %v1381
    %v1739 = vunpack.c.h.b16 %v1381
    %v1740 = vunpack.c.l.b16 %v1382
    %v1741 = vunpack.c.h.b16 %v1382
    %v1742 = vunpack.c.l.b16 %v1383
    %v1743 = vunpack.c.h.b16 %v1383
    %v1744 = vunpack.c.l.b16 %v1384
    %v1745 = vunpack.c.h.b16 %v1384
    %v1746 = vunpack.c.l.b16 %v1385
    %v1747 = vunpack.c.h.b16 %v1385
    %v1748 = vunpack.c.l.b16 %v1386
    %v1749 = vunpack.c.h.b16 %v1386
    %v1750 = vunpack.c.l.b16 %v1387
    %v1751 = vunpack.c.h.b16 %v1387
    %v1752 = vunpack.c.l.b16 %v1388
    %v1753 = vunpack.c.h.b16 %v1388
    %v1754 = vunpack.c.l.b16 %v1389
    %v1755 = vunpack.c.h.b16 %v1389
    %v1756 = vunpack.c.l.b16 %v1390
    %v1757 = vunpack.c.h.b16 %v1390
    %v1758 = vunpack.c.l.b16 %v1391
    %v1759 = vunpack.c.h.b16 %v1391
    %v1760 = vunpack.c.l.b16 %v1392
    %v1761 = vunpack.c.h.b16 %v1392
    %v1762 = vunpack.c.l.b16 %v1393
    %v1763 = vunpack.c.h.b16 %v1393
    %v1764 = vunpack.c.l.b16 %v1394
    %v1765 = vunpack.c.h.b16 %v1394
    %v1766 = vunpack.c.l.b16 %v1395
    %v1767 = vunpack.c.h.b16 %v1395
    %v1768 = vunpack.c.l.b16 %v1396
    %v1769 = vunpack.c.h.b16 %v1396
    %v1770 = vunpack.c.l.b16 %v1397
    %v1771 = vunpack.c.h.b16 %v1397
    %v1772 = vunpack.c.l.b16 %v1398
    %v1773 = vunpack.c.h.b16 %v1398
    %v1774 = vunpack.c.l.b16 %v1399
    %v1775 = vunpack.c.h.b16 %v1399
    %v1776 = vunpack.c.l.b16 %v1400
    %v1777 = vunpack.c.h.b16 %v1400
    %v1778 = vunpack.c.l.b16 %v1401
    %v1779 = vunpack.c.h.b16 %v1401
    %v1780 = vunpack.c.l.b16 %v1402
    %v1781 = vunpack.c.h.b16 %v1402
    %v1782 = vunpack.c.l.b16 %v1403
    %v1783 = vunpack.c.h.b16 %v1403
    %v1784 = vunpack.c.l.b16 %v1404
    %v1785 = vunpack.c.h.b16 %v1404
    %v1786 = vunpack.c.l.b16 %v1405
    %v1787 = vunpack.c.h.b16 %v1405
    %v1788 = vunpack.c.l.b16 %v1406
    %v1789 = vunpack.c.h.b16 %v1406
    %v1790 = vunpack.c.l.b16 %v1407
    %v1791 = vunpack.c.h.b16 %v1407
    %v1792 = vunpack.c.l.b16 %v1408
    %v1793 = vunpack.c.h.b16 %v1408
    %v1794 = vunpack.c.l.b16 %v1409
    %v1795 = vunpack.c.h.b16 %v1409
    %v1796 = vunpack.c.l.b16 %v1410
    %v1797 = vunpack.c.h.b16 %v1410
    %v1798 = vunpack.c.l.b16 %v1411
    %v1799 = vunpack.c.h.b16 %v1411
    %v1800 = vunpack.c.l.b16 %v1412
    %v1801 = vunpack.c.h.b16 %v1412
    %v1802 = vunpack.c.l.b16 %v1413
    %v1803 = vunpack.c.h.b16 %v1413
    %v1804 = vunpack.c.l.b16 %v1414
    %v1805 = vunpack.c.h.b16 %v1414
    %v1806 = vunpack.c.l.b16 %v1415
    %v1807 = vunpack.c.h.b16 %v1415
    %v1808 = vunpack.c.l.b16 %v1416
    %v1809 = vunpack.c.h.b16 %v1416
    %v1810 = vunpack.c.l.b16 %v1417
    %v1811 = vunpack.c.h.b16 %v1417
    %v1812 = vunpack.c.l.b16 %v1418
    %v1813 = vunpack.c.h.b16 %v1418
    %v1814 = vunpack.c.l.b16 %v1419
    %v1815 = vunpack.c.h.b16 %v1419
    %v1816 = vunpack.c.l.b16 %v1420
    %v1817 = vunpack.c.h.b16 %v1420
    %v1818 = vunpack.c.l.b16 %v1421
    %v1819 = vunpack.c.h.b16 %v1421
    %v1820 = vunpack.c.l.b16 %v1422
    %v1821 = vunpack.c.h.b16 %v1422
    %v1822 = vunpack.c.l.b16 %v1423
    %v1823 = vunpack.c.h.b16 %v1423
    %v1824 = vunpack.c.l.b16 %v1424
    %v1825 = vunpack.c.h.b16 %v1424
    %v1826 = vunpack.c.l.b16 %v1425
    %v1827 = vunpack.c.h.b16 %v1425
    %v1828 = vunpack.c.l.b16 %v1426
    %v1829 = vunpack.c.h.b16 %v1426
    %v1830 = vunpack.c.l.b16 %v1427
    %v1831 = vunpack.c.h.b16 %v1427
    %v1832 = vunpack.c.l.b16 %v1428
    %v1833 = vunpack.c.h.b16 %v1428
    %v1834 = vunpack.c.l.b16 %v1429
    %v1835 = vunpack.c.h.b16 %v1429
    %v1836 = vpack.c.b16 %v1584, %v1580
    %v1837 = vpack.c.b16 %v1585, %v1581
    %v1838 = vpack.c.b16 %v1586, %v1582
    %v1839 = vpack.c.b16 %v1587, %v1583
    %v1840 = vpack.c.b16 %v1592, %v1588
    %v1841 = vpack.c.b16 %v1593, %v1589
    %v1842 = vpack.c.b16 %v1594, %v1590
    %v1843 = vpack.c.b16 %v1595, %v1591
    %v1844 = vpack.c.b16 %v1600, %v1596
    %v1845 = vpack.c.b16 %v1601, %v1597
    %v1846 = vpack.c.b16 %v1602, %v1598
    %v1847 = vpack.c.b16 %v1603, %v1599
    %v1848 = vpack.c.b16 %v1608, %v1604
    %v1849 = vpack.c.b16 %v1609, %v1605
    %v1850 = vpack.c.b16 %v1610, %v1606
    %v1851 = vpack.c.b16 %v1611, %v1607
    %v1852 = vpack.c.b16 %v1616, %v1612
    %v1853 = vpack.c.b16 %v1617, %v1613
    %v1854 = vpack.c.b16 %v1618, %v1614
    %v1855 = vpack.c.b16 %v1619, %v1615
    %v1856 = vpack.c.b16 %v1624, %v1620
    %v1857 = vpack.c.b16 %v1625, %v1621
    %v1858 = vpack.c.b16 %v1626, %v1622
    %v1859 = vpack.c.b16 %v1627, %v1623
    %v1860 = vpack.c.b16 %v1632, %v1628
    %v1861 = vpack.c.b16 %v1633, %v1629
    %v1862 = vpack.c.b16 %v1634, %v1630
    %v1863 = vpack.c.b16 %v1635, %v1631
    %v1864 = vpack.c.b16 %v1640, %v1636
    %v1865 = vpack.c.b16 %v1641, %v1637
    %v1866 = vpack.c.b16 %v1642, %v1638
    %v1867 = vpack.c.b16 %v1643, %v1639
    %v1868 = vpack.c.b16 %v1648, %v1644
    %v1869 = vpack.c.b16 %v1649, %v1645
    %v1870 = vpack.c.b16 %v1650, %v1646
    %v1871 = vpack.c.b16 %v1651, %v1647
    %v1872 = vpack.c.b16 %v1656, %v1652
    %v1873 = vpack.c.b16 %v1657, %v1653
    %v1874 = vpack.c.b16 %v1658, %v1654
    %v1875 = vpack.c.b16 %v1659, %v1655
    %v1876 = vpack.c.b16 %v1664, %v1660
    %v1877 = vpack.c.b16 %v1665, %v1661
    %v1878 = vpack.c.b16 %v1666, %v1662
    %v1879 = vpack.c.b16 %v1667, %v1663
    %v1880 = vpack.c.b16 %v1672, %v1668
    %v1881 = vpack.c.b16 %v1673, %v1669
    %v1882 = vpack.c.b16 %v1674, %v1670
    %v1883 = vpack.c.b16 %v1675, %v1671
    %v1884 = vpack.c.b16 %v1680, %v1676
    %v1885 = vpack.c.b16 %v1681, %v1677
    %v1886 = vpack.c.b16 %v1682, %v1678
    %v1887 = vpack.c.b16 %v1683, %v1679
    %v1888 = vpack.c.b16 %v1688, %v1684
    %v1889 = vpack.c.b16 %v1689, %v1685
    %v1890 = vpack.c.b16 %v1690, %v1686
    %v1891 = vpack.c.b16 %v1691, %v1687
    %v1892 = vpack.c.b16 %v1696, %v1692
    %v1893 = vpack.c.b16 %v1697, %v1693
    %v1894 = vpack.c.b16 %v1698, %v1694
    %v1895 = vpack.c.b16 %v1699, %v1695
    %v1896 = vpack.c.b16 %v1704, %v1700
    %v1897 = vpack.c.b16 %v1705, %v1701
    %v1898 = vpack.c.b16 %v1706, %v1702
    %v1899 = vpack.c.b16 %v1707, %v1703
    %v1900 = vpack.c.b16 %v1712, %v1708
    %v1901 = vpack.c.b16 %v1713, %v1709
    %v1902 = vpack.c.b16 %v1714, %v1710
    %v1903 = vpack.c.b16 %v1715, %v1711
    %v1904 = vpack.c.b16 %v1720, %v1716
    %v1905 = vpack.c.b16 %v1721, %v1717
    %v1906 = vpack.c.b16 %v1722, %v1718
    %v1907 = vpack.c.b16 %v1723, %v1719
    %v1908 = vpack.c.b16 %v1728, %v1724
    %v1909 = vpack.c.b16 %v1729, %v1725
    %v1910 = vpack.c.b16 %v1730, %v1726
    %v1911 = vpack.c.b16 %v1731, %v1727
    %v1912 = vpack.c.b16 %v1736, %v1732
    %v1913 = vpack.c.b16 %v1737, %v1733
    %v1914 = vpack.c.b16 %v1738, %v1734
    %v1915 = vpack.c.b16 %v1739, %v1735
    %v1916 = vpack.c.b16 %v1744, %v1740
    %v1917 = vpack.c.b16 %v1745, %v1741
    %v1918 = vpack.c.b16 %v1746, %v1742
    %v1919 = vpack.c.b16 %v1747, %v1743
    %v1920 = vpack.c.b16 %v1752, %v1748
    %v1921 = vpack.c.b16 %v1753, %v1749
    %v1922 = vpack.c.b16 %v1754, %v1750
    %v1923 = vpack.c.b16 %v1755, %v1751
    %v1924 = vpack.c.b16 %v1760, %v1756
    %v1925 = vpack.c.b16 %v1761, %v1757
    %v1926 = vpack.c.b16 %v1762, %v1758
    %v1927 = vpack.c.b16 %v1763, %v1759
    %v1928 = vpack.c.b16 %v1768, %v1764
    %v1929 = vpack.c.b16 %v1769, %v1765
    %v1930 = vpack.c.b16 %v1770, %v1766
    %v1931 = vpack.c.b16 %v1771, %v1767
    %v1932 = vpack.c.b16 %v1776, %v1772
    %v1933 = vpack.c.b16 %v1777, %v1773
    %v1934 = vpack.c.b16 %v1778, %v1774
    %v1935 = vpack.c.b16 %v1779, %v1775
    %v1936 = vpack.c.b16 %v1784, %v1780
    %v1937 = vpack.c.b16 %v1785, %v1781
    %v1938 = vpack.c.b16 %v1786, %v1782
    %v1939 = vpack.c.b16 %v1787, %v1783
    %v1940 = vpack.c.b16 %v1792, %v1788
    %v1941 = vpack.c.b16 %v1793, %v1789
    %v1942 = vpack.c.b16 %v1794, %v1790
    %v1943 = vpack.c.b16 %v1795, %v1791
    %v1944 = vpack.c.b16 %v1800, %v1796
    %v1945 = vpack.c.b16 %v1801, %v1797
    %v1946 = vpack.c.b16 %v1802, %v1798
    %v1947 = vpack.c.b16 %v1803, %v1799
    %v1948 = vpack.c.b16 %v1808, %v1804
    %v1949 = vpack.c.b16 %v1809, %v1805
    %v1950 = vpack.c.b16 %v1810, %v1806
    %v1951 = vpack.c.b16 %v1811, %v1807
    %v1952 = vpack.c.b16 %v1816, %v1812
    %v1953 = vpack.c.b16 %v1817, %v1813
    %v1954 = vpack.c.b16 %v1818, %v1814
    %v1955 = vpack.c.b16 %v1819, %v1815
    %v1956 = vpack.c.b16 %v1824, %v1820
    %v1957 = vpack.c.b16 %v1825, %v1821
    %v1958 = vpack.c.b16 %v1826, %v1822
    %v1959 = vpack.c.b16 %v1827, %v1823
    %v1960 = vpack.c.b16 %v1832, %v1828
    %v1961 = vpack.c.b16 %v1833, %v1829
    %v1962 = vpack.c.b16 %v1834, %v1830
    %v1963 = vpack.c.b16 %v1835, %v1831
    %2092 = vmatprep.subr.bf16.mxu0 %v1865
    %2093 = vmatpush1.bf16.msra.mxu0 %v1864
    %2094 = vmatprep.subr.bf16.mxu0 %v1861
    %2095 = vmatpush1.bf16.msra.mxu0 %v1860
    %2096 = vmatprep.subr.bf16.mxu0 %v1857
    %2097 = vmatpush1.bf16.msra.mxu0 %v1856
    %2098 = vmatprep.subr.bf16.mxu0 %v1853
    %2099 = vmatpush1.bf16.msra.mxu0 %v1852
    %2100 = vmatprep.subr.bf16.mxu0 %v1849
    %2101 = vmatpush1.bf16.msra.mxu0 %v1848
    %2102 = vmatprep.subr.bf16.mxu0 %v1845
    %2103 = vmatpush1.bf16.msra.mxu0 %v1844
    %2104 = vmatprep.subr.bf16.mxu0 %v1841
    %2105 = vmatpush1.bf16.msra.mxu0 %v1840
    %2106 = vmatprep.subr.bf16.mxu0 %v1837
    %2107 = vmatpush1.bf16.msra.mxu0 %v1836
    %2108 = vmatprep.subr.bf16.mxu0 %v1897
    %2109 = vmatpush2.bf16.msra.mxu0 %v1896
    %2110 = vmatprep.subr.bf16.mxu0 %v1893
    %2111 = vmatpush2.bf16.msra.mxu0 %v1892
    %2112 = vmatprep.subr.bf16.mxu0 %v1889
    %2113 = vmatpush2.bf16.msra.mxu0 %v1888
    %2114 = vmatprep.subr.bf16.mxu0 %v1885
    %2115 = vmatpush2.bf16.msra.mxu0 %v1884
    %2116 = vmatprep.subr.bf16.mxu0 %v1881
    %2117 = vmatpush2.bf16.msra.mxu0 %v1880
    %2118 = vmatprep.subr.bf16.mxu0 %v1877
    %2119 = vmatpush2.bf16.msra.mxu0 %v1876
    %2120 = vmatprep.subr.bf16.mxu0 %v1873
    %2121 = vmatpush2.bf16.msra.mxu0 %v1872
    %2122 = vmatprep.subr.bf16.mxu0 %v1869
    %2123 = vmatpush2.bf16.msra.mxu0 %v1868
    %2124 = vmatprep.mubr.bf16.mxu0 %v1299
    %2125 = vmatmul.mubr.bf16.gmra.mxu0 %v1298
    %v2126 = vpop.f32.mrf.mxu0
    %v2127 = vadd.f32 %v1435, %v2126
    %v2128 = vpop.f32.mrf.mxu0
    %v2129 = vadd.f32 %v1439, %v2128
    %v2130 = vpop.f32.mrf.mxu0
    %v2131 = vpop.f32.mrf.mxu0
    %2132 = vdwg.mxu0
    %2133 = vmatprep.subr.bf16.mxu0 %v1929
    %2134 = vmatpush1.bf16.msra.mxu0 %v1928
    %2135 = vmatprep.subr.bf16.mxu0 %v1925
    %2136 = vmatpush1.bf16.msra.mxu0 %v1924
    %2137 = vmatprep.subr.bf16.mxu0 %v1921
    %2138 = vmatpush1.bf16.msra.mxu0 %v1920
    %2139 = vmatprep.subr.bf16.mxu0 %v1917
    %2140 = vmatpush1.bf16.msra.mxu0 %v1916
    %2141 = vmatprep.subr.bf16.mxu0 %v1913
    %2142 = vmatpush1.bf16.msra.mxu0 %v1912
    %2143 = vmatprep.subr.bf16.mxu0 %v1909
    %2144 = vmatpush1.bf16.msra.mxu0 %v1908
    %2145 = vmatprep.subr.bf16.mxu0 %v1905
    %2146 = vmatpush1.bf16.msra.mxu0 %v1904
    %2147 = vmatprep.subr.bf16.mxu0 %v1901
    %2148 = vmatpush1.bf16.msra.mxu0 %v1900
    %2149 = vmatprep.subr.bf16.mxu0 %v1961
    %2150 = vmatpush2.bf16.msra.mxu0 %v1960
    %2151 = vmatprep.subr.bf16.mxu0 %v1957
    %2152 = vmatpush2.bf16.msra.mxu0 %v1956
    %2153 = vmatprep.subr.bf16.mxu0 %v1953
    %2154 = vmatpush2.bf16.msra.mxu0 %v1952
    %2155 = vmatprep.subr.bf16.mxu0 %v1949
    %2156 = vmatpush2.bf16.msra.mxu0 %v1948
    %2157 = vmatprep.subr.bf16.mxu0 %v1945
    %2158 = vmatpush2.bf16.msra.mxu0 %v1944
    %2159 = vmatprep.subr.bf16.mxu0 %v1941
    %2160 = vmatpush2.bf16.msra.mxu0 %v1940
    %2161 = vmatprep.subr.bf16.mxu0 %v1937
    %2162 = vmatpush2.bf16.msra.mxu0 %v1936
    %2163 = vmatprep.subr.bf16.mxu0 %v1933
    %2164 = vmatpush2.bf16.msra.mxu0 %v1932
    %2165 = vmatprep.mubr.bf16.mxu0 %v1301
    %2166 = vmatmul.mubr.bf16.gmra.mxu0 %v1300
    %v2167 = vpop.f32.mrf.mxu0
    %v2168 = vadd.f32 %v2127, %v2167
    %v2169 = vpop.f32.mrf.mxu0
    %v2170 = vadd.f32 %v2129, %v2169
    %v2171 = vpop.f32.mrf.mxu0
    %v2172 = vpop.f32.mrf.mxu0
    %2173 = vdwg.mxu0
    %2174 = vmatprep.subr.bf16.mxu0 %v1867
    %2175 = vmatpush1.bf16.msra.mxu0 %v1866
    %2176 = vmatprep.subr.bf16.mxu0 %v1863
    %2177 = vmatpush1.bf16.msra.mxu0 %v1862
    %2178 = vmatprep.subr.bf16.mxu0 %v1859
    %2179 = vmatpush1.bf16.msra.mxu0 %v1858
    %2180 = vmatprep.subr.bf16.mxu0 %v1855
    %2181 = vmatpush1.bf16.msra.mxu0 %v1854
    %2182 = vmatprep.subr.bf16.mxu0 %v1851
    %2183 = vmatpush1.bf16.msra.mxu0 %v1850
    %2184 = vmatprep.subr.bf16.mxu0 %v1847
    %2185 = vmatpush1.bf16.msra.mxu0 %v1846
    %2186 = vmatprep.subr.bf16.mxu0 %v1843
    %2187 = vmatpush1.bf16.msra.mxu0 %v1842
    %2188 = vmatprep.subr.bf16.mxu0 %v1839
    %2189 = vmatpush1.bf16.msra.mxu0 %v1838
    %2190 = vmatprep.subr.bf16.mxu0 %v1899
    %2191 = vmatpush2.bf16.msra.mxu0 %v1898
    %2192 = vmatprep.subr.bf16.mxu0 %v1895
    %2193 = vmatpush2.bf16.msra.mxu0 %v1894
    %2194 = vmatprep.subr.bf16.mxu0 %v1891
    %2195 = vmatpush2.bf16.msra.mxu0 %v1890
    %2196 = vmatprep.subr.bf16.mxu0 %v1887
    %2197 = vmatpush2.bf16.msra.mxu0 %v1886
    %2198 = vmatprep.subr.bf16.mxu0 %v1883
    %2199 = vmatpush2.bf16.msra.mxu0 %v1882
    %2200 = vmatprep.subr.bf16.mxu0 %v1879
    %2201 = vmatpush2.bf16.msra.mxu0 %v1878
    %2202 = vmatprep.subr.bf16.mxu0 %v1875
    %2203 = vmatpush2.bf16.msra.mxu0 %v1874
    %2204 = vmatprep.subr.bf16.mxu0 %v1871
    %2205 = vmatpush2.bf16.msra.mxu0 %v1870
    %2206 = vmatprep.mubr.bf16.mxu0 %v1299
    %2207 = vmatmul.mubr.bf16.gmra.mxu0 %v1298
    %v2208 = vpop.f32.mrf.mxu0
    %v2209 = vadd.f32 %v1443, %v2208
    %v2210 = vpop.f32.mrf.mxu0
    %v2211 = vadd.f32 %v1447, %v2210
    %v2212 = vpop.f32.mrf.mxu0
    %v2213 = vpop.f32.mrf.mxu0
    %2214 = vdwg.mxu0
    %2215 = vmatprep.subr.bf16.mxu0 %v1931
    %2216 = vmatpush1.bf16.msra.mxu0 %v1930
    %2217 = vmatprep.subr.bf16.mxu0 %v1927
    %2218 = vmatpush1.bf16.msra.mxu0 %v1926
    %2219 = vmatprep.subr.bf16.mxu0 %v1923
    %2220 = vmatpush1.bf16.msra.mxu0 %v1922
    %2221 = vmatprep.subr.bf16.mxu0 %v1919
    %2222 = vmatpush1.bf16.msra.mxu0 %v1918
    %2223 = vmatprep.subr.bf16.mxu0 %v1915
    %2224 = vmatpush1.bf16.msra.mxu0 %v1914
    %2225 = vmatprep.subr.bf16.mxu0 %v1911
    %2226 = vmatpush1.bf16.msra.mxu0 %v1910
    %2227 = vmatprep.subr.bf16.mxu0 %v1907
    %2228 = vmatpush1.bf16.msra.mxu0 %v1906
    %2229 = vmatprep.subr.bf16.mxu0 %v1903
    %2230 = vmatpush1.bf16.msra.mxu0 %v1902
    %2231 = vmatprep.subr.bf16.mxu0 %v1963
    %2232 = vmatpush2.bf16.msra.mxu0 %v1962
    %2233 = vmatprep.subr.bf16.mxu0 %v1959
    %2234 = vmatpush2.bf16.msra.mxu0 %v1958
    %2235 = vmatprep.subr.bf16.mxu0 %v1955
    %2236 = vmatpush2.bf16.msra.mxu0 %v1954
    %2237 = vmatprep.subr.bf16.mxu0 %v1951
    %2238 = vmatpush2.bf16.msra.mxu0 %v1950
    %2239 = vmatprep.subr.bf16.mxu0 %v1947
    %2240 = vmatpush2.bf16.msra.mxu0 %v1946
    %2241 = vmatprep.subr.bf16.mxu0 %v1943
    %2242 = vmatpush2.bf16.msra.mxu0 %v1942
    %2243 = vmatprep.subr.bf16.mxu0 %v1939
    %2244 = vmatpush2.bf16.msra.mxu0 %v1938
    %2245 = vmatprep.subr.bf16.mxu0 %v1935
    %2246 = vmatpush2.bf16.msra.mxu0 %v1934
    %2247 = vmatprep.mubr.bf16.mxu0 %v1301
    %2248 = vmatmul.mubr.bf16.gmra.mxu0 %v1300
    %v2249 = vpop.f32.mrf.mxu0
    %v2250 = vadd.f32 %v2209, %v2249
    %v2251 = vpop.f32.mrf.mxu0
    %v2252 = vadd.f32 %v2211, %v2251
    %v2253 = vpop.f32.mrf.mxu0
    %v2254 = vpop.f32.mrf.mxu0
    %2255 = vdwg.mxu0
    %v2256 = vmax.f32 %v2168, 0.0
    %v2257 = vmax.f32 %v2170, 0.0
    %v2258 = vmax.f32 %v2250, 0.0
    %v2259 = vmax.f32 %v2252, 0.0
    %v2260 = vpack.c.bf16 %v2256, %v2256
    %v2261 = vpack.c.bf16 %v2257, %v2257
    %v2262 = vpack.c.bf16 %v2258, %v2258
    %v2263 = vpack.c.bf16 %v2259, %v2259
    %v2264 = vld [vmem:[%s7] sm:$0xf]
    %v2265 = vld [vmem:[%s7 + $0x4] sm:$0xf]
    %v2266 = vld [vmem:[%s7 + $0x8] sm:$0xf]
    %v2267 = vld [vmem:[%s7 + $0xc] sm:$0xf]
    %v2268 = vld [vmem:[%s7 + $0x10] sm:$0xf]
    %v2269 = vld [vmem:[%s7 + $0x14] sm:$0xf]
    %v2270 = vld [vmem:[%s7 + $0x18] sm:$0xf]
    %v2271 = vld [vmem:[%s7 + $0x1c] sm:$0xf]
    %v2272 = vld [vmem:[%s7 + $0x20] sm:$0xf]
    %v2273 = vld [vmem:[%s7 + $0x24] sm:$0xf]
    %v2274 = vld [vmem:[%s7 + $0x28] sm:$0xf]
    %v2275 = vld [vmem:[%s7 + $0x2c] sm:$0xf]
    %v2276 = vld [vmem:[%s7 + $0x30] sm:$0xf]
    %v2277 = vld [vmem:[%s7 + $0x34] sm:$0xf]
    %v2278 = vld [vmem:[%s7 + $0x38] sm:$0xf]
    %v2279 = vld [vmem:[%s7 + $0x3c] sm:$0xf]
    %v2280 = vld [vmem:[%s7 + $0x40] sm:$0xf]
    %v2281 = vld [vmem:[%s7 + $0x44] sm:$0xf]
    %v2282 = vld [vmem:[%s7 + $0x48] sm:$0xf]
    %v2283 = vld [vmem:[%s7 + $0x4c] sm:$0xf]
    %v2284 = vld [vmem:[%s7 + $0x50] sm:$0xf]
    %v2285 = vld [vmem:[%s7 + $0x54] sm:$0xf]
    %v2286 = vld [vmem:[%s7 + $0x58] sm:$0xf]
    %v2287 = vld [vmem:[%s7 + $0x5c] sm:$0xf]
    %v2288 = vld [vmem:[%s7 + $0x60] sm:$0xf]
    %v2289 = vld [vmem:[%s7 + $0x64] sm:$0xf]
    %v2290 = vld [vmem:[%s7 + $0x68] sm:$0xf]
    %v2291 = vld [vmem:[%s7 + $0x6c] sm:$0xf]
    %v2292 = vld [vmem:[%s7 + $0x70] sm:$0xf]
    %v2293 = vld [vmem:[%s7 + $0x74] sm:$0xf]
    %v2294 = vld [vmem:[%s7 + $0x78] sm:$0xf]
    %v2295 = vld [vmem:[%s7 + $0x7c] sm:$0xf]
    %v2296 = vld [vmem:[%s7 + $0x80] sm:$0xf]
    %v2297 = vld [vmem:[%s7 + $0x84] sm:$0xf]
    %v2298 = vld [vmem:[%s7 + $0x88] sm:$0xf]
    %v2299 = vld [vmem:[%s7 + $0x8c] sm:$0xf]
    %v2300 = vld [vmem:[%s7 + $0x90] sm:$0xf]
    %v2301 = vld [vmem:[%s7 + $0x94] sm:$0xf]
    %v2302 = vld [vmem:[%s7 + $0x98] sm:$0xf]
    %v2303 = vld [vmem:[%s7 + $0x9c] sm:$0xf]
    %v2304 = vld [vmem:[%s7 + $0xa0] sm:$0xf]
    %v2305 = vld [vmem:[%s7 + $0xa4] sm:$0xf]
    %v2306 = vld [vmem:[%s7 + $0xa8] sm:$0xf]
    %v2307 = vld [vmem:[%s7 + $0xac] sm:$0xf]
    %v2308 = vld [vmem:[%s7 + $0xb0] sm:$0xf]
    %v2309 = vld [vmem:[%s7 + $0xb4] sm:$0xf]
    %v2310 = vld [vmem:[%s7 + $0xb8] sm:$0xf]
    %v2311 = vld [vmem:[%s7 + $0xbc] sm:$0xf]
    %v2312 = vld [vmem:[%s7 + $0xc0] sm:$0xf]
    %v2313 = vld [vmem:[%s7 + $0xc4] sm:$0xf]
    %v2314 = vld [vmem:[%s7 + $0xc8] sm:$0xf]
    %v2315 = vld [vmem:[%s7 + $0xcc] sm:$0xf]
    %v2316 = vld [vmem:[%s7 + $0xd0] sm:$0xf]
    %v2317 = vld [vmem:[%s7 + $0xd4] sm:$0xf]
    %v2318 = vld [vmem:[%s7 + $0xd8] sm:$0xf]
    %v2319 = vld [vmem:[%s7 + $0xdc] sm:$0xf]
    %v2320 = vld [vmem:[%s7 + $0xe0] sm:$0xf]
    %v2321 = vld [vmem:[%s7 + $0xe4] sm:$0xf]
    %v2322 = vld [vmem:[%s7 + $0xe8] sm:$0xf]
    %v2323 = vld [vmem:[%s7 + $0xec] sm:$0xf]
    %v2324 = vld [vmem:[%s7 + $0xf0] sm:$0xf]
    %v2325 = vld [vmem:[%s7 + $0xf4] sm:$0xf]
    %v2326 = vld [vmem:[%s7 + $0xf8] sm:$0xf]
    %v2327 = vld [vmem:[%s7 + $0xfc] sm:$0xf]
    %v2328 = vld [vmem:[%s8] sm:$0x1]
    %v2330 = vlaneseq
    %v2331 = vshrl.u32 %v2330, 7
    %v2332 = vsub.s32 0, %v2331
    %v2333 = vrot.slane %v2328, %v2332
    %v2399 = vunpack.c.l.b16 %v2264
    %v2400 = vunpack.c.l.b16 %v2265
    %v2401 = vunpack.c.l.b16 %v2266
    %v2402 = vunpack.c.l.b16 %v2267
    %v2403 = vunpack.c.l.b16 %v2268
    %v2404 = vunpack.c.l.b16 %v2269
    %v2405 = vunpack.c.l.b16 %v2270
    %v2406 = vunpack.c.l.b16 %v2271
    %v2407 = vunpack.c.l.b16 %v2272
    %v2408 = vunpack.c.l.b16 %v2273
    %v2409 = vunpack.c.l.b16 %v2274
    %v2410 = vunpack.c.l.b16 %v2275
    %v2411 = vunpack.c.l.b16 %v2276
    %v2412 = vunpack.c.l.b16 %v2277
    %v2413 = vunpack.c.l.b16 %v2278
    %v2414 = vunpack.c.l.b16 %v2279
    %v2415 = vunpack.c.l.b16 %v2280
    %v2416 = vunpack.c.l.b16 %v2281
    %v2417 = vunpack.c.l.b16 %v2282
    %v2418 = vunpack.c.l.b16 %v2283
    %v2419 = vunpack.c.l.b16 %v2284
    %v2420 = vunpack.c.l.b16 %v2285
    %v2421 = vunpack.c.l.b16 %v2286
    %v2422 = vunpack.c.l.b16 %v2287
    %v2423 = vunpack.c.l.b16 %v2288
    %v2424 = vunpack.c.l.b16 %v2289
    %v2425 = vunpack.c.l.b16 %v2290
    %v2426 = vunpack.c.l.b16 %v2291
    %v2427 = vunpack.c.l.b16 %v2292
    %v2428 = vunpack.c.l.b16 %v2293
    %v2429 = vunpack.c.l.b16 %v2294
    %v2430 = vunpack.c.l.b16 %v2295
    %v2431 = vunpack.c.l.b16 %v2296
    %v2432 = vunpack.c.l.b16 %v2297
    %v2433 = vunpack.c.l.b16 %v2298
    %v2434 = vunpack.c.l.b16 %v2299
    %v2435 = vunpack.c.l.b16 %v2300
    %v2436 = vunpack.c.l.b16 %v2301
    %v2437 = vunpack.c.l.b16 %v2302
    %v2438 = vunpack.c.l.b16 %v2303
    %v2439 = vunpack.c.l.b16 %v2304
    %v2440 = vunpack.c.l.b16 %v2305
    %v2441 = vunpack.c.l.b16 %v2306
    %v2442 = vunpack.c.l.b16 %v2307
    %v2443 = vunpack.c.l.b16 %v2308
    %v2444 = vunpack.c.l.b16 %v2309
    %v2445 = vunpack.c.l.b16 %v2310
    %v2446 = vunpack.c.l.b16 %v2311
    %v2447 = vunpack.c.l.b16 %v2312
    %v2448 = vunpack.c.l.b16 %v2313
    %v2449 = vunpack.c.l.b16 %v2314
    %v2450 = vunpack.c.l.b16 %v2315
    %v2451 = vunpack.c.l.b16 %v2316
    %v2452 = vunpack.c.l.b16 %v2317
    %v2453 = vunpack.c.l.b16 %v2318
    %v2454 = vunpack.c.l.b16 %v2319
    %v2455 = vunpack.c.l.b16 %v2320
    %v2456 = vunpack.c.l.b16 %v2321
    %v2457 = vunpack.c.l.b16 %v2322
    %v2458 = vunpack.c.l.b16 %v2323
    %v2459 = vunpack.c.l.b16 %v2324
    %v2460 = vunpack.c.l.b16 %v2325
    %v2461 = vunpack.c.l.b16 %v2326
    %v2462 = vunpack.c.l.b16 %v2327
    %v2463 = vpack.c.b16 %v2400, %v2399
    %v2464 = vpack.c.b16 %v2402, %v2401
    %v2465 = vpack.c.b16 %v2404, %v2403
    %v2466 = vpack.c.b16 %v2406, %v2405
    %v2467 = vpack.c.b16 %v2408, %v2407
    %v2468 = vpack.c.b16 %v2410, %v2409
    %v2469 = vpack.c.b16 %v2412, %v2411
    %v2470 = vpack.c.b16 %v2414, %v2413
    %v2471 = vpack.c.b16 %v2416, %v2415
    %v2472 = vpack.c.b16 %v2418, %v2417
    %v2473 = vpack.c.b16 %v2420, %v2419
    %v2474 = vpack.c.b16 %v2422, %v2421
    %v2475 = vpack.c.b16 %v2424, %v2423
    %v2476 = vpack.c.b16 %v2426, %v2425
    %v2477 = vpack.c.b16 %v2428, %v2427
    %v2478 = vpack.c.b16 %v2430, %v2429
    %v2479 = vpack.c.b16 %v2432, %v2431
    %v2480 = vpack.c.b16 %v2434, %v2433
    %v2481 = vpack.c.b16 %v2436, %v2435
    %v2482 = vpack.c.b16 %v2438, %v2437
    %v2483 = vpack.c.b16 %v2440, %v2439
    %v2484 = vpack.c.b16 %v2442, %v2441
    %v2485 = vpack.c.b16 %v2444, %v2443
    %v2486 = vpack.c.b16 %v2446, %v2445
    %v2487 = vpack.c.b16 %v2448, %v2447
    %v2488 = vpack.c.b16 %v2450, %v2449
    %v2489 = vpack.c.b16 %v2452, %v2451
    %v2490 = vpack.c.b16 %v2454, %v2453
    %v2491 = vpack.c.b16 %v2456, %v2455
    %v2492 = vpack.c.b16 %v2458, %v2457
    %v2493 = vpack.c.b16 %v2460, %v2459
    %v2494 = vpack.c.b16 %v2462, %v2461
    %2527 = vmatprep.subr.bf16.mxu0 0
    %2528 = vmatpush1.bf16.msra.mxu0 %v2470
    %2529 = vmatprep.subr.bf16.mxu0 0
    %2530 = vmatpush1.bf16.msra.mxu0 %v2469
    %2531 = vmatprep.subr.bf16.mxu0 0
    %2532 = vmatpush1.bf16.msra.mxu0 %v2468
    %2533 = vmatprep.subr.bf16.mxu0 0
    %2534 = vmatpush1.bf16.msra.mxu0 %v2467
    %2535 = vmatprep.subr.bf16.mxu0 0
    %2536 = vmatpush1.bf16.msra.mxu0 %v2466
    %2537 = vmatprep.subr.bf16.mxu0 0
    %2538 = vmatpush1.bf16.msra.mxu0 %v2465
    %2539 = vmatprep.subr.bf16.mxu0 0
    %2540 = vmatpush1.bf16.msra.mxu0 %v2464
    %2541 = vmatprep.subr.bf16.mxu0 0
    %2542 = vmatpush1.bf16.msra.mxu0 %v2463
    %2543 = vmatprep.subr.bf16.mxu0 0
    %2544 = vmatpush2.bf16.msra.mxu0 %v2478
    %2545 = vmatprep.subr.bf16.mxu0 0
    %2546 = vmatpush2.bf16.msra.mxu0 %v2477
    %2547 = vmatprep.subr.bf16.mxu0 0
    %2548 = vmatpush2.bf16.msra.mxu0 %v2476
    %2549 = vmatprep.subr.bf16.mxu0 0
    %2550 = vmatpush2.bf16.msra.mxu0 %v2475
    %2551 = vmatprep.subr.bf16.mxu0 0
    %2552 = vmatpush2.bf16.msra.mxu0 %v2474
    %2553 = vmatprep.subr.bf16.mxu0 0
    %2554 = vmatpush2.bf16.msra.mxu0 %v2473
    %2555 = vmatprep.subr.bf16.mxu0 0
    %2556 = vmatpush2.bf16.msra.mxu0 %v2472
    %2557 = vmatprep.subr.bf16.mxu0 0
    %2558 = vmatpush2.bf16.msra.mxu0 %v2471
    %2559 = vmatprep.mubr.bf16.mxu0 %v2261
    %2560 = vmatmul.mubr.bf16.gmra.mxu0 %v2260
    %v2561 = vpop.f32.mrf.mxu0
    %v2562 = vadd.f32 %v2333, %v2561
    %v2563 = vpop.f32.mrf.mxu0
    %v2564 = vpop.f32.mrf.mxu0
    %v2565 = vpop.f32.mrf.mxu0
    %2566 = vdwg.mxu0
    %2567 = vmatprep.subr.bf16.mxu0 0
    %2568 = vmatpush1.bf16.msra.mxu0 %v2486
    %2569 = vmatprep.subr.bf16.mxu0 0
    %2570 = vmatpush1.bf16.msra.mxu0 %v2485
    %2571 = vmatprep.subr.bf16.mxu0 0
    %2572 = vmatpush1.bf16.msra.mxu0 %v2484
    %2573 = vmatprep.subr.bf16.mxu0 0
    %2574 = vmatpush1.bf16.msra.mxu0 %v2483
    %2575 = vmatprep.subr.bf16.mxu0 0
    %2576 = vmatpush1.bf16.msra.mxu0 %v2482
    %2577 = vmatprep.subr.bf16.mxu0 0
    %2578 = vmatpush1.bf16.msra.mxu0 %v2481
    %2579 = vmatprep.subr.bf16.mxu0 0
    %2580 = vmatpush1.bf16.msra.mxu0 %v2480
    %2581 = vmatprep.subr.bf16.mxu0 0
    %2582 = vmatpush1.bf16.msra.mxu0 %v2479
    %2583 = vmatprep.subr.bf16.mxu0 0
    %2584 = vmatpush2.bf16.msra.mxu0 %v2494
    %2585 = vmatprep.subr.bf16.mxu0 0
    %2586 = vmatpush2.bf16.msra.mxu0 %v2493
    %2587 = vmatprep.subr.bf16.mxu0 0
    %2588 = vmatpush2.bf16.msra.mxu0 %v2492
    %2589 = vmatprep.subr.bf16.mxu0 0
    %2590 = vmatpush2.bf16.msra.mxu0 %v2491
    %2591 = vmatprep.subr.bf16.mxu0 0
    %2592 = vmatpush2.bf16.msra.mxu0 %v2490
    %2593 = vmatprep.subr.bf16.mxu0 0
    %2594 = vmatpush2.bf16.msra.mxu0 %v2489
    %2595 = vmatprep.subr.bf16.mxu0 0
    %2596 = vmatpush2.bf16.msra.mxu0 %v2488
    %2597 = vmatprep.subr.bf16.mxu0 0
    %2598 = vmatpush2.bf16.msra.mxu0 %v2487
    %2599 = vmatprep.mubr.bf16.mxu0 %v2263
    %2600 = vmatmul.mubr.bf16.gmra.mxu0 %v2262
    %v2601 = vpop.f32.mrf.mxu0
    %v2602 = vadd.f32 %v2562, %v2601
    %v2603 = vpop.f32.mrf.mxu0
    %v2604 = vpop.f32.mrf.mxu0
    %v2605 = vpop.f32.mrf.mxu0
    %2606 = vdwg.mxu0
    %2607 = vst [vmem:[#allocation2] sm:$0xff] %v2602
    // Predicated region
    $region38: #{_generator_forward_impl.1} parent=1 // pred_check
      _
    $region39: #{_generator_forward_impl.1} parent=1 // pred_check_branch
      %2609 = sbr.rel (0) target = $region41
    $region40: #{_generator_forward_impl.1} parent=1 // pred_region
      %s2611 = ssub.s32 128, 128
      %2612 = vsyncadd [#allocation3], %s2611
      %s2614 = sshll.u32 [#allocation2], 4
      %s2615 = int_to_ptr.vmem [resolvable:$true] %s2614
      %2617 = dma.vmem_to_hbm [thread:$0]  %s2615, 128, %s9, [#allocation3]
    $region41: #{_generator_forward_impl.1} parent=1 // pred_fallthru
      _
    // Predicated region
    $region42: #{_generator_forward_impl.1} parent=1 // pred_check
      _
    $region43: #{_generator_forward_impl.1} parent=1 // pred_check_branch
      %2619 = sbr.rel (0) target = $region45
    $region44: #{_generator_forward_impl.1} parent=1 // pred_region
      %2620 = dma.done [#allocation3], 128
    $region45: #{_generator_forward_impl.1} parent=1 // pred_fallthru
      _
    %2621 = vsyncpa [#allocation3], 1

</llo_original>
